<compile_context>
chip_gen: v7x
topology: tpu7x:2x2x1
jax: 0.10.0
libtpu: 0.0.40
codegen_flags: <defaults>
</compile_context>

<pallas_src>
import jax
import jax.numpy as jnp
from jax.experimental import pallas as pl
from jax.experimental.pallas import tpu as pltpu

# ---- module constants from the PyTorch spec -------------------------------------
CHAT_SIZE = 6        # T; hard-wired by nn.LayerNorm((chat_size, chat_size))
N_HEAD = 10          # only used by the dead adj_matrices assembly in the reference
N_SEM = 8            # number_of_semantic_matrixes (S)
RAW_EMB = 1536       # raw_embedding_size (Cr)
SEM_EMB = 50         # semantic_embedding_size (Cs)
MSG_EMB = 128        # message_embedding_size (constructor arg) — chosen lane-dense (128)
_LN_EPS = 1e-5       # torch.nn.LayerNorm default eps


# ----------------------------- fused Pallas kernel --------------------------------
def _zero_block_kernel(x_ref, w_ref, b_ref, gamma_ref, beta_ref, msg_ref, sres_ref):
    """One batch row of the full Zero_block forward.

    x_ref     : (1, T, Cr)                 current batch row
    w_ref     : (Cr, MSG_EMB + S*Cs)       fused [linear_2 | linear] weight, (in, out)
    b_ref     : (1,  MSG_EMB + S*Cs)       fused bias
    gamma_ref : (T, T)                     ln1 weight
    beta_ref  : (T, T)                     ln1 bias
    msg_ref   : (1, T, MSG_EMB)            message_embeddings (the module's return value)
    sres_ref  : (1, S, T, T)               ln1(s_reshaped): normalized distance matrices
    """
    T = x_ref.shape[1]
    x = x_ref[0]                                                      # (T, Cr)

    # One wide MXU pass covers both Linear layers.
    y = jnp.dot(x, w_ref[...], preferred_element_type=jnp.float32) + b_ref[...]
    msg_ref[0] = y[:, :MSG_EMB].astype(msg_ref.dtype)                 # lane-aligned slab

    # Pairwise token distances per semantic matrix via small Gram matrices
    # (keeps everything 2-D: MXU matmul + lane/sublane reductions, no relayout-heavy
    #  4-D broadcasts or transposes).
    row_ids = jax.lax.broadcasted_iota(jnp.int32, (T, T), 0)
    col_ids = jax.lax.broadcasted_iota(jnp.int32, (T, T), 1)
    eye = (row_ids == col_ids).astype(jnp.float32)                    # (T, T)
    gamma = gamma_ref[...]
    beta = beta_ref[...]

    for s in range(N_SEM):                                            # 8 tiny unrolled steps
        a = y[:, MSG_EMB + s * SEM_EMB: MSG_EMB + (s + 1) * SEM_EMB]  # (T, Cs) = btsc[:, :, s]
        gram = jax.lax.dot_general(                                   # (T, T) = A @ A.T
            a, a, (((1,), (1,)), ((), ())),
            preferred_element_type=jnp.float32)
        sq_col = jnp.sum(gram * eye, axis=1, keepdims=True)           # (T, 1): ||a_i||^2
        sq_row = jnp.sum(gram * eye, axis=0, keepdims=True)           # (1, T): ||a_j||^2
        # torch: sum_c((a_j - a_i)^2 + 0.001) then sqrt; the +0.001 per element = +0.05 total.
        d2 = sq_col + sq_row - 2.0 * gram + (0.001 * SEM_EMB)
        dist = -jnp.sqrt(jnp.maximum(d2, 0.0))                        # symmetric => matches
                                                                      # the transposed view.
        # LayerNorm over the whole (T, T) matrix (normalized_shape=(T, T)).
        mu = jnp.mean(jnp.mean(dist, axis=1, keepdims=True), axis=0, keepdims=True)
        cent = dist - mu
        var = jnp.mean(jnp.mean(cent * cent, axis=1, keepdims=True), axis=0, keepdims=True)
        normed = cent * jax.lax.rsqrt(var + _LN_EPS)
        sres_ref[0, s] = (normed * gamma + beta).astype(sres_ref.dtype)


# ----------------------------- wrapper ---------------------------------------------
def zero_block_forward(x, params, batch_of_links=None, return_semantic=False):
    """Mirrors Zero_block.forward. Returns message_embeddings (B, T, MSG_EMB) exactly
    like the PyTorch module; pass return_semantic=True to also get the normalized
    semantic distance matrices s_reshaped (B, S, T, T) produced by the same kernel.

    batch_of_links only feeds `adj_matrices`, a local the reference forward never
    returns, so that dead concat is specialized away at trace time.
    """
    del batch_of_links  # dead w.r.t. the module's return value
    B, T, Cr = x.shape
    S, Cs, E = N_SEM, SEM_EMB, MSG_EMB
    out_w = E + S * Cs

    msg, sres = pl.pallas_call(
        _zero_block_kernel,
        out_shape=(
            jax.ShapeDtypeStruct((B, T, E), x.dtype),
            jax.ShapeDtypeStruct((B, S, T, T), x.dtype),
        ),
        grid=(B,),
        in_specs=[
            pl.BlockSpec((1, T, Cr), lambda b: (b, 0, 0)),     # x: one batch row / step
            pl.BlockSpec((Cr, out_w), lambda b: (0, 0)),       # fused weights (VMEM-resident)
            pl.BlockSpec((1, out_w), lambda b: (0, 0)),        # fused bias
            pl.BlockSpec((T, T), lambda b: (0, 0)),            # ln1 gamma
            pl.BlockSpec((T, T), lambda b: (0, 0)),            # ln1 beta
        ],
        out_specs=(
            pl.BlockSpec((1, T, E), lambda b: (b, 0, 0)),
            pl.BlockSpec((1, S, T, T), lambda b: (b, 0, 0, 0)),
        ),
        compiler_params=pltpu.CompilerParams(
            dimension_semantics=("parallel",)),                # megacore over B on v7x
    )(x, params["w_lin"], params["b_lin"], params["ln_gamma"], params["ln_beta"])

    if return_semantic:
        return msg, sres
    return msg


def init_params(key):
    """torch-Linear-style init; weights stored (in, out) and fused as [linear_2 | linear]."""
    k1, k2, k3, k4, k5, k6 = jax.random.split(key, 6)
    bound = 1.0 / (RAW_EMB ** 0.5)
    w2 = jax.random.uniform(k1, (RAW_EMB, MSG_EMB), jnp.float32, -bound, bound)          # linear_2
    b2 = jax.random.uniform(k2, (MSG_EMB,), jnp.float32, -bound, bound)
    w1 = jax.random.uniform(k3, (RAW_EMB, N_SEM * SEM_EMB), jnp.float32, -bound, bound)  # linear
    b1 = jax.random.uniform(k4, (N_SEM * SEM_EMB,), jnp.float32, -bound, bound)
    return {
        "w_lin": jnp.concatenate([w2, w1], axis=1),        # (Cr, MSG_EMB + S*Cs)
        "b_lin": jnp.concatenate([b2, b1])[None, :],       # (1,  MSG_EMB + S*Cs)
        # ln1 affine params randomized (torch default is ones/zeros) to make the test non-trivial
        "ln_gamma": 1.0 + 0.1 * jax.random.normal(k5, (CHAT_SIZE, CHAT_SIZE), jnp.float32),
        "ln_beta": 0.1 * jax.random.normal(k6, (CHAT_SIZE, CHAT_SIZE), jnp.float32),
    }


def _reference(x, params):
    """Pure-JAX mirror of the torch forward (also returns the s_reshaped it computes)."""
    B, T, _ = x.shape
    hi = jax.lax.Precision.HIGHEST
    y = jnp.dot(x, params["w_lin"], precision=hi) + params["b_lin"][0]
    msg = y[..., :MSG_EMB]                                  # linear_2(x) -> returned value
    ln = y[..., MSG_EMB:]                                   # linear(x)
    btsc = ln.reshape(B, T, N_SEM, SEM_EMB)
    srep = jnp.tile(btsc, (1, T, 1, 1))                     # torch .repeat(1, T, 1, 1)
    intl = jnp.repeat(btsc, T, axis=1)                      # torch .repeat_interleave(T, dim=1)
    s = jnp.sqrt(jnp.sum((srep - intl) ** 2 + 0.001, axis=-1))       # (B, T*T, S)
    s_reshaped = -jnp.swapaxes(s, -2, -1).reshape(B, N_SEM, T, T)
    mu = jnp.mean(s_reshaped, axis=(-2, -1), keepdims=True)
    var = jnp.mean((s_reshaped - mu) ** 2, axis=(-2, -1), keepdims=True)
    normed = (s_reshaped - mu) / jnp.sqrt(var + _LN_EPS)
    s_reshaped = normed * params["ln_gamma"] + params["ln_beta"]
    return msg, s_reshaped


if __name__ == "__main__":
    B, T = 2, CHAT_SIZE
    key = jax.random.PRNGKey(0)
    kx, kl, kp = jax.random.split(key, 3)

    x = jax.random.normal(kx, (B, T, RAW_EMB), jnp.float32)
    params = init_params(kp)

    msg, sres = zero_block_forward(x, params, return_semantic=True)
    jax.block_until_ready(msg)
    jax.block_until_ready(sres)

    ref_msg, ref_sres = _reference(x, params)
    assert msg.shape == (B, T, MSG_EMB) and sres.shape == (B, N_SEM, T, T)
    assert jnp.allclose(msg, ref_msg, atol=2e-4, rtol=2e-4), \
        float(jnp.max(jnp.abs(msg - ref_msg)))
    assert jnp.allclose(sres, ref_sres, atol=2e-4, rtol=2e-4), \
        float(jnp.max(jnp.abs(sres - ref_sres)))

    # batch_of_links only feeds a local (`adj_matrices`) that the reference forward
    # discards; the wrapper specializes it away, so the returned value is unchanged.
    links = jax.random.uniform(kl, (B, 1, T, T), jnp.float32)  # G=1 -> free heads = 10-8-1 >= 0
    msg_links = zero_block_forward(x, params, batch_of_links=links)
    jax.block_until_ready(msg_links)
    assert jnp.allclose(msg_links, msg)

    print("KERNEL_OK")
</pallas_src>

<mosaic_0001>
module attributes {stable_mosaic.version = 11 : i64} {
  func.func @_zero_block_kernel(%arg0: i32, %arg1: memref<1x6x1536xf32, #tpu.memory_space<vmem>>, %arg2: memref<1536x528xf32, #tpu.memory_space<vmem>>, %arg3: memref<1x528xf32, #tpu.memory_space<vmem>>, %arg4: memref<6x6xf32, #tpu.memory_space<vmem>>, %arg5: memref<6x6xf32, #tpu.memory_space<vmem>>, %arg6: memref<1x6x128xf32, #tpu.memory_space<vmem>>, %arg7: memref<1x8x6x6xf32, #tpu.memory_space<vmem>>) attributes {dimension_semantics = [#tpu.dimension_semantics<parallel>], iteration_bounds = array<i64: 2>, scalar_prefetch = 0 : i64, scratch_operands = 0 : i64, tpu.core_type = #tpu.core_type<tc>, window_params = [{transform_indices = @transform_0, window_bounds = array<i64: 1, 6, 1536>}, {pipeline_mode = #tpu.pipeline_mode<synchronous>, transform_indices = @transform_1, window_bounds = array<i64: 1536, 528>}, {pipeline_mode = #tpu.pipeline_mode<synchronous>, transform_indices = @transform_2, window_bounds = array<i64: 1, 528>}, {pipeline_mode = #tpu.pipeline_mode<synchronous>, transform_indices = @transform_3, window_bounds = array<i64: 6, 6>}, {pipeline_mode = #tpu.pipeline_mode<synchronous>, transform_indices = @transform_4, window_bounds = array<i64: 6, 6>}, {transform_indices = @transform_5, window_bounds = array<i64: 1, 6, 128>}, {transform_indices = @transform_6, window_bounds = array<i64: 1, 8, 6, 6>}]} {
    %c0 = arith.constant 0 : index
    %c0_0 = arith.constant 0 : index
    %c0_1 = arith.constant 0 : index
    %0 = vector.load %arg1[%c0, %c0_0, %c0_1] : memref<1x6x1536xf32, #tpu.memory_space<vmem>>, vector<1x6x1536xf32>
    %1 = vector.shape_cast %0 : vector<1x6x1536xf32> to vector<6x1536xf32>
    %c0_2 = arith.constant 0 : index
    %c0_3 = arith.constant 0 : index
    %2 = vector.load %arg2[%c0_2, %c0_3] : memref<1536x528xf32, #tpu.memory_space<vmem>>, vector<1536x528xf32>
    %cst = arith.constant dense<0.000000e+00> : vector<6x528xf32>
    %3 = tpu.matmul %1, %2, %cst {dimension_numbers = #tpu.dot_dimension_numbers<[1], [0], [0], [1], [0, 0, 1, 1], [], []>} : vector<6x1536xf32>, vector<1536x528xf32>, vector<6x528xf32> -> vector<6x528xf32>
    %c0_4 = arith.constant 0 : index
    %c0_5 = arith.constant 0 : index
    %4 = vector.load %arg3[%c0_4, %c0_5] : memref<1x528xf32, #tpu.memory_space<vmem>>, vector<1x528xf32>
    %5 = vector.broadcast %4 : vector<1x528xf32> to vector<6x528xf32>
    %6 = arith.addf %3, %5 : vector<6x528xf32>
    %7 = vector.extract_strided_slice %6 {offsets = [0, 0], sizes = [6, 128], strides = [1, 1]} : vector<6x528xf32> to vector<6x128xf32>
    %c0_6 = arith.constant 0 : index
    %c0_7 = arith.constant 0 : index
    %c0_8 = arith.constant 0 : index
    %8 = vector.load %arg6[%c0_6, %c0_7, %c0_8] : memref<1x6x128xf32, #tpu.memory_space<vmem>>, vector<1x6x128xf32>
    %9 = vector.shape_cast %8 : vector<1x6x128xf32> to vector<6x128xf32>
    %10 = vector.shape_cast %7 : vector<6x128xf32> to vector<1x6x128xf32>
    tpu.vector_store %arg6[%c0_6, %c0_7, %c0_8], %10 {strides = array<i32>} : memref<1x6x128xf32, #tpu.memory_space<vmem>>, vector<1x6x128xf32>,
    %11 = tpu.iota {dimensions = array<i32: 0>} : vector<6x6xi32>
    %12 = tpu.iota {dimensions = array<i32: 1>} : vector<6x6xi32>
    %13 = arith.cmpi eq, %11, %12 : vector<6x6xi32>
    %14 = arith.extui %13 : vector<6x6xi1> to vector<6x6xi32>
    %15 = arith.sitofp %14 : vector<6x6xi32> to vector<6x6xf32>
    %c0_9 = arith.constant 0 : index
    %c0_10 = arith.constant 0 : index
    %16 = vector.load %arg4[%c0_9, %c0_10] : memref<6x6xf32, #tpu.memory_space<vmem>>, vector<6x6xf32>
    %c0_11 = arith.constant 0 : index
    %c0_12 = arith.constant 0 : index
    %17 = vector.load %arg5[%c0_11, %c0_12] : memref<6x6xf32, #tpu.memory_space<vmem>>, vector<6x6xf32>
    %18 = vector.extract_strided_slice %6 {offsets = [0, 128], sizes = [6, 50], strides = [1, 1]} : vector<6x528xf32> to vector<6x50xf32>
    %cst_13 = arith.constant dense<0.000000e+00> : vector<6x6xf32>
    %19 = tpu.matmul %18, %18, %cst_13 {dimension_numbers = #tpu.dot_dimension_numbers<[1], [1], [0], [0], [0, 0, 1, 0], [], []>} : vector<6x50xf32>, vector<6x50xf32>, vector<6x6xf32> -> vector<6x6xf32>
    %20 = arith.mulf %19, %15 : vector<6x6xf32>
    %cst_14 = arith.constant dense<0.000000e+00> : vector<6xf32>
    %21 = vector.multi_reduction <add>, %20, %cst_14 [1] : vector<6x6xf32> to vector<6xf32>
    %22 = vector.shape_cast %21 : vector<6xf32> to vector<6x1xf32>
    %23 = arith.mulf %19, %15 : vector<6x6xf32>
    %cst_15 = arith.constant dense<0.000000e+00> : vector<6xf32>
    %24 = vector.multi_reduction <add>, %23, %cst_15 [0] : vector<6x6xf32> to vector<6xf32>
    %25 = vector.shape_cast %24 : vector<6xf32> to vector<1x6xf32>
    %26 = vector.broadcast %22 : vector<6x1xf32> to vector<6x6xf32>
    %27 = vector.broadcast %25 : vector<1x6xf32> to vector<6x6xf32>
    %28 = arith.addf %26, %27 : vector<6x6xf32>
    %cst_16 = arith.constant 2.000000e+00 : f32
    %29 = vector.broadcast %cst_16 : f32 to vector<6x6xf32>
    %30 = arith.mulf %29, %19 : vector<6x6xf32>
    %31 = arith.subf %28, %30 : vector<6x6xf32>
    %cst_17 = arith.constant 5.000000e-02 : f32
    %32 = vector.broadcast %cst_17 : f32 to vector<6x6xf32>
    %33 = arith.addf %31, %32 : vector<6x6xf32>
    %cst_18 = arith.constant 0.000000e+00 : f32
    %34 = vector.broadcast %cst_18 : f32 to vector<6x6xf32>
    %35 = arith.maximumf %33, %34 : vector<6x6xf32>
    %36 = math.sqrt %35 : vector<6x6xf32>
    %cst_19 = arith.constant 0.000000e+00 : f32
    %37 = vector.broadcast %cst_19 : f32 to vector<6x6xf32>
    %38 = arith.subf %37, %36 : vector<6x6xf32>
    %cst_20 = arith.constant dense<0.000000e+00> : vector<6xf32>
    %39 = vector.multi_reduction <add>, %38, %cst_20 [1] : vector<6x6xf32> to vector<6xf32>
    %40 = vector.shape_cast %39 : vector<6xf32> to vector<6x1xf32>
    %cst_21 = arith.constant 6.000000e+00 : f32
    %41 = vector.broadcast %cst_21 : f32 to vector<6x1xf32>
    %42 = arith.divf %40, %41 : vector<6x1xf32>
    %cst_22 = arith.constant dense<0.000000e+00> : vector<1xf32>
    %43 = vector.multi_reduction <add>, %42, %cst_22 [0] : vector<6x1xf32> to vector<1xf32>
    %44 = vector.shape_cast %43 : vector<1xf32> to vector<1x1xf32>
    %cst_23 = arith.constant 6.000000e+00 : f32
    %45 = vector.broadcast %cst_23 : f32 to vector<1x1xf32>
    %46 = arith.divf %44, %45 : vector<1x1xf32>
    %47 = vector.broadcast %46 : vector<1x1xf32> to vector<6x6xf32>
    %48 = arith.subf %38, %47 : vector<6x6xf32>
    %49 = arith.mulf %48, %48 : vector<6x6xf32>
    %cst_24 = arith.constant dense<0.000000e+00> : vector<6xf32>
    %50 = vector.multi_reduction <add>, %49, %cst_24 [1] : vector<6x6xf32> to vector<6xf32>
    %51 = vector.shape_cast %50 : vector<6xf32> to vector<6x1xf32>
    %cst_25 = arith.constant 6.000000e+00 : f32
    %52 = vector.broadcast %cst_25 : f32 to vector<6x1xf32>
    %53 = arith.divf %51, %52 : vector<6x1xf32>
    %cst_26 = arith.constant dense<0.000000e+00> : vector<1xf32>
    %54 = vector.multi_reduction <add>, %53, %cst_26 [0] : vector<6x1xf32> to vector<1xf32>
    %55 = vector.shape_cast %54 : vector<1xf32> to vector<1x1xf32>
    %cst_27 = arith.constant 6.000000e+00 : f32
    %56 = vector.broadcast %cst_27 : f32 to vector<1x1xf32>
    %57 = arith.divf %55, %56 : vector<1x1xf32>
    %cst_28 = arith.constant 9.99999974E-6 : f32
    %58 = vector.broadcast %cst_28 : f32 to vector<1x1xf32>
    %59 = arith.addf %57, %58 : vector<1x1xf32>
    %60 = math.rsqrt %59 : vector<1x1xf32>
    %61 = vector.broadcast %60 : vector<1x1xf32> to vector<6x6xf32>
    %62 = arith.mulf %48, %61 : vector<6x6xf32>
    %63 = arith.mulf %62, %16 : vector<6x6xf32>
    %64 = arith.addf %63, %17 : vector<6x6xf32>
    %c0_29 = arith.constant 0 : index
    %c0_30 = arith.constant 0 : index
    %c0_31 = arith.constant 0 : index
    %c0_32 = arith.constant 0 : index
    %65 = vector.load %arg7[%c0_29, %c0_30, %c0_31, %c0_32] : memref<1x8x6x6xf32, #tpu.memory_space<vmem>>, vector<1x1x6x6xf32>
    %66 = vector.shape_cast %65 : vector<1x1x6x6xf32> to vector<6x6xf32>
    %67 = vector.shape_cast %64 : vector<6x6xf32> to vector<1x1x6x6xf32>
    tpu.vector_store %arg7[%c0_29, %c0_30, %c0_31, %c0_32], %67 {strides = array<i32>} : memref<1x8x6x6xf32, #tpu.memory_space<vmem>>, vector<1x1x6x6xf32>,
    %68 = vector.extract_strided_slice %6 {offsets = [0, 178], sizes = [6, 50], strides = [1, 1]} : vector<6x528xf32> to vector<6x50xf32>
    %cst_33 = arith.constant dense<0.000000e+00> : vector<6x6xf32>
    %69 = tpu.matmul %68, %68, %cst_33 {dimension_numbers = #tpu.dot_dimension_numbers<[1], [1], [0], [0], [0, 0, 1, 0], [], []>} : vector<6x50xf32>, vector<6x50xf32>, vector<6x6xf32> -> vector<6x6xf32>
    %70 = arith.mulf %69, %15 : vector<6x6xf32>
    %cst_34 = arith.constant dense<0.000000e+00> : vector<6xf32>
    %71 = vector.multi_reduction <add>, %70, %cst_34 [1] : vector<6x6xf32> to vector<6xf32>
    %72 = vector.shape_cast %71 : vector<6xf32> to vector<6x1xf32>
    %73 = arith.mulf %69, %15 : vector<6x6xf32>
    %cst_35 = arith.constant dense<0.000000e+00> : vector<6xf32>
    %74 = vector.multi_reduction <add>, %73, %cst_35 [0] : vector<6x6xf32> to vector<6xf32>
    %75 = vector.shape_cast %74 : vector<6xf32> to vector<1x6xf32>
    %76 = vector.broadcast %72 : vector<6x1xf32> to vector<6x6xf32>
    %77 = vector.broadcast %75 : vector<1x6xf32> to vector<6x6xf32>
    %78 = arith.addf %76, %77 : vector<6x6xf32>
    %cst_36 = arith.constant 2.000000e+00 : f32
    %79 = vector.broadcast %cst_36 : f32 to vector<6x6xf32>
    %80 = arith.mulf %79, %69 : vector<6x6xf32>
    %81 = arith.subf %78, %80 : vector<6x6xf32>
    %cst_37 = arith.constant 5.000000e-02 : f32
    %82 = vector.broadcast %cst_37 : f32 to vector<6x6xf32>
    %83 = arith.addf %81, %82 : vector<6x6xf32>
    %cst_38 = arith.constant 0.000000e+00 : f32
    %84 = vector.broadcast %cst_38 : f32 to vector<6x6xf32>
    %85 = arith.maximumf %83, %84 : vector<6x6xf32>
    %86 = math.sqrt %85 : vector<6x6xf32>
    %cst_39 = arith.constant 0.000000e+00 : f32
    %87 = vector.broadcast %cst_39 : f32 to vector<6x6xf32>
    %88 = arith.subf %87, %86 : vector<6x6xf32>
    %cst_40 = arith.constant dense<0.000000e+00> : vector<6xf32>
    %89 = vector.multi_reduction <add>, %88, %cst_40 [1] : vector<6x6xf32> to vector<6xf32>
    %90 = vector.shape_cast %89 : vector<6xf32> to vector<6x1xf32>
    %cst_41 = arith.constant 6.000000e+00 : f32
    %91 = vector.broadcast %cst_41 : f32 to vector<6x1xf32>
    %92 = arith.divf %90, %91 : vector<6x1xf32>
    %cst_42 = arith.constant dense<0.000000e+00> : vector<1xf32>
    %93 = vector.multi_reduction <add>, %92, %cst_42 [0] : vector<6x1xf32> to vector<1xf32>
    %94 = vector.shape_cast %93 : vector<1xf32> to vector<1x1xf32>
    %cst_43 = arith.constant 6.000000e+00 : f32
    %95 = vector.broadcast %cst_43 : f32 to vector<1x1xf32>
    %96 = arith.divf %94, %95 : vector<1x1xf32>
    %97 = vector.broadcast %96 : vector<1x1xf32> to vector<6x6xf32>
    %98 = arith.subf %88, %97 : vector<6x6xf32>
    %99 = arith.mulf %98, %98 : vector<6x6xf32>
    %cst_44 = arith.constant dense<0.000000e+00> : vector<6xf32>
    %100 = vector.multi_reduction <add>, %99, %cst_44 [1] : vector<6x6xf32> to vector<6xf32>
    %101 = vector.shape_cast %100 : vector<6xf32> to vector<6x1xf32>
    %cst_45 = arith.constant 6.000000e+00 : f32
    %102 = vector.broadcast %cst_45 : f32 to vector<6x1xf32>
    %103 = arith.divf %101, %102 : vector<6x1xf32>
    %cst_46 = arith.constant dense<0.000000e+00> : vector<1xf32>
    %104 = vector.multi_reduction <add>, %103, %cst_46 [0] : vector<6x1xf32> to vector<1xf32>
    %105 = vector.shape_cast %104 : vector<1xf32> to vector<1x1xf32>
    %cst_47 = arith.constant 6.000000e+00 : f32
    %106 = vector.broadcast %cst_47 : f32 to vector<1x1xf32>
    %107 = arith.divf %105, %106 : vector<1x1xf32>
    %cst_48 = arith.constant 9.99999974E-6 : f32
    %108 = vector.broadcast %cst_48 : f32 to vector<1x1xf32>
    %109 = arith.addf %107, %108 : vector<1x1xf32>
    %110 = math.rsqrt %109 : vector<1x1xf32>
    %111 = vector.broadcast %110 : vector<1x1xf32> to vector<6x6xf32>
    %112 = arith.mulf %98, %111 : vector<6x6xf32>
    %113 = arith.mulf %112, %16 : vector<6x6xf32>
    %114 = arith.addf %113, %17 : vector<6x6xf32>
    %c0_49 = arith.constant 0 : index
    %c1 = arith.constant 1 : index
    %c0_50 = arith.constant 0 : index
    %c0_51 = arith.constant 0 : index
    %115 = vector.load %arg7[%c0_49, %c1, %c0_50, %c0_51] : memref<1x8x6x6xf32, #tpu.memory_space<vmem>>, vector<1x1x6x6xf32>
    %116 = vector.shape_cast %115 : vector<1x1x6x6xf32> to vector<6x6xf32>
    %117 = vector.shape_cast %114 : vector<6x6xf32> to vector<1x1x6x6xf32>
    tpu.vector_store %arg7[%c0_49, %c1, %c0_50, %c0_51], %117 {strides = array<i32>} : memref<1x8x6x6xf32, #tpu.memory_space<vmem>>, vector<1x1x6x6xf32>,
    %118 = vector.extract_strided_slice %6 {offsets = [0, 228], sizes = [6, 50], strides = [1, 1]} : vector<6x528xf32> to vector<6x50xf32>
    %cst_52 = arith.constant dense<0.000000e+00> : vector<6x6xf32>
    %119 = tpu.matmul %118, %118, %cst_52 {dimension_numbers = #tpu.dot_dimension_numbers<[1], [1], [0], [0], [0, 0, 1, 0], [], []>} : vector<6x50xf32>, vector<6x50xf32>, vector<6x6xf32> -> vector<6x6xf32>
    %120 = arith.mulf %119, %15 : vector<6x6xf32>
    %cst_53 = arith.constant dense<0.000000e+00> : vector<6xf32>
    %121 = vector.multi_reduction <add>, %120, %cst_53 [1] : vector<6x6xf32> to vector<6xf32>
    %122 = vector.shape_cast %121 : vector<6xf32> to vector<6x1xf32>
    %123 = arith.mulf %119, %15 : vector<6x6xf32>
    %cst_54 = arith.constant dense<0.000000e+00> : vector<6xf32>
    %124 = vector.multi_reduction <add>, %123, %cst_54 [0] : vector<6x6xf32> to vector<6xf32>
    %125 = vector.shape_cast %124 : vector<6xf32> to vector<1x6xf32>
    %126 = vector.broadcast %122 : vector<6x1xf32> to vector<6x6xf32>
    %127 = vector.broadcast %125 : vector<1x6xf32> to vector<6x6xf32>
    %128 = arith.addf %126, %127 : vector<6x6xf32>
    %cst_55 = arith.constant 2.000000e+00 : f32
    %129 = vector.broadcast %cst_55 : f32 to vector<6x6xf32>
    %130 = arith.mulf %129, %119 : vector<6x6xf32>
    %131 = arith.subf %128, %130 : vector<6x6xf32>
    %cst_56 = arith.constant 5.000000e-02 : f32
    %132 = vector.broadcast %cst_56 : f32 to vector<6x6xf32>
    %133 = arith.addf %131, %132 : vector<6x6xf32>
    %cst_57 = arith.constant 0.000000e+00 : f32
    %134 = vector.broadcast %cst_57 : f32 to vector<6x6xf32>
    %135 = arith.maximumf %133, %134 : vector<6x6xf32>
    %136 = math.sqrt %135 : vector<6x6xf32>
    %cst_58 = arith.constant 0.000000e+00 : f32
    %137 = vector.broadcast %cst_58 : f32 to vector<6x6xf32>
    %138 = arith.subf %137, %136 : vector<6x6xf32>
    %cst_59 = arith.constant dense<0.000000e+00> : vector<6xf32>
    %139 = vector.multi_reduction <add>, %138, %cst_59 [1] : vector<6x6xf32> to vector<6xf32>
    %140 = vector.shape_cast %139 : vector<6xf32> to vector<6x1xf32>
    %cst_60 = arith.constant 6.000000e+00 : f32
    %141 = vector.broadcast %cst_60 : f32 to vector<6x1xf32>
    %142 = arith.divf %140, %141 : vector<6x1xf32>
    %cst_61 = arith.constant dense<0.000000e+00> : vector<1xf32>
    %143 = vector.multi_reduction <add>, %142, %cst_61 [0] : vector<6x1xf32> to vector<1xf32>
    %144 = vector.shape_cast %143 : vector<1xf32> to vector<1x1xf32>
    %cst_62 = arith.constant 6.000000e+00 : f32
    %145 = vector.broadcast %cst_62 : f32 to vector<1x1xf32>
    %146 = arith.divf %144, %145 : vector<1x1xf32>
    %147 = vector.broadcast %146 : vector<1x1xf32> to vector<6x6xf32>
    %148 = arith.subf %138, %147 : vector<6x6xf32>
    %149 = arith.mulf %148, %148 : vector<6x6xf32>
    %cst_63 = arith.constant dense<0.000000e+00> : vector<6xf32>
    %150 = vector.multi_reduction <add>, %149, %cst_63 [1] : vector<6x6xf32> to vector<6xf32>
    %151 = vector.shape_cast %150 : vector<6xf32> to vector<6x1xf32>
    %cst_64 = arith.constant 6.000000e+00 : f32
    %152 = vector.broadcast %cst_64 : f32 to vector<6x1xf32>
    %153 = arith.divf %151, %152 : vector<6x1xf32>
    %cst_65 = arith.constant dense<0.000000e+00> : vector<1xf32>
    %154 = vector.multi_reduction <add>, %153, %cst_65 [0] : vector<6x1xf32> to vector<1xf32>
    %155 = vector.shape_cast %154 : vector<1xf32> to vector<1x1xf32>
    %cst_66 = arith.constant 6.000000e+00 : f32
    %156 = vector.broadcast %cst_66 : f32 to vector<1x1xf32>
    %157 = arith.divf %155, %156 : vector<1x1xf32>
    %cst_67 = arith.constant 9.99999974E-6 : f32
    %158 = vector.broadcast %cst_67 : f32 to vector<1x1xf32>
    %159 = arith.addf %157, %158 : vector<1x1xf32>
    %160 = math.rsqrt %159 : vector<1x1xf32>
    %161 = vector.broadcast %160 : vector<1x1xf32> to vector<6x6xf32>
    %162 = arith.mulf %148, %161 : vector<6x6xf32>
    %163 = arith.mulf %162, %16 : vector<6x6xf32>
    %164 = arith.addf %163, %17 : vector<6x6xf32>
    %c0_68 = arith.constant 0 : index
    %c2 = arith.constant 2 : index
    %c0_69 = arith.constant 0 : index
    %c0_70 = arith.constant 0 : index
    %165 = vector.load %arg7[%c0_68, %c2, %c0_69, %c0_70] : memref<1x8x6x6xf32, #tpu.memory_space<vmem>>, vector<1x1x6x6xf32>
    %166 = vector.shape_cast %165 : vector<1x1x6x6xf32> to vector<6x6xf32>
    %167 = vector.shape_cast %164 : vector<6x6xf32> to vector<1x1x6x6xf32>
    tpu.vector_store %arg7[%c0_68, %c2, %c0_69, %c0_70], %167 {strides = array<i32>} : memref<1x8x6x6xf32, #tpu.memory_space<vmem>>, vector<1x1x6x6xf32>,
    %168 = vector.extract_strided_slice %6 {offsets = [0, 278], sizes = [6, 50], strides = [1, 1]} : vector<6x528xf32> to vector<6x50xf32>
    %cst_71 = arith.constant dense<0.000000e+00> : vector<6x6xf32>
    %169 = tpu.matmul %168, %168, %cst_71 {dimension_numbers = #tpu.dot_dimension_numbers<[1], [1], [0], [0], [0, 0, 1, 0], [], []>} : vector<6x50xf32>, vector<6x50xf32>, vector<6x6xf32> -> vector<6x6xf32>
    %170 = arith.mulf %169, %15 : vector<6x6xf32>
    %cst_72 = arith.constant dense<0.000000e+00> : vector<6xf32>
    %171 = vector.multi_reduction <add>, %170, %cst_72 [1] : vector<6x6xf32> to vector<6xf32>
    %172 = vector.shape_cast %171 : vector<6xf32> to vector<6x1xf32>
    %173 = arith.mulf %169, %15 : vector<6x6xf32>
    %cst_73 = arith.constant dense<0.000000e+00> : vector<6xf32>
    %174 = vector.multi_reduction <add>, %173, %cst_73 [0] : vector<6x6xf32> to vector<6xf32>
    %175 = vector.shape_cast %174 : vector<6xf32> to vector<1x6xf32>
    %176 = vector.broadcast %172 : vector<6x1xf32> to vector<6x6xf32>
    %177 = vector.broadcast %175 : vector<1x6xf32> to vector<6x6xf32>
    %178 = arith.addf %176, %177 : vector<6x6xf32>
    %cst_74 = arith.constant 2.000000e+00 : f32
    %179 = vector.broadcast %cst_74 : f32 to vector<6x6xf32>
    %180 = arith.mulf %179, %169 : vector<6x6xf32>
    %181 = arith.subf %178, %180 : vector<6x6xf32>
    %cst_75 = arith.constant 5.000000e-02 : f32
    %182 = vector.broadcast %cst_75 : f32 to vector<6x6xf32>
    %183 = arith.addf %181, %182 : vector<6x6xf32>
    %cst_76 = arith.constant 0.000000e+00 : f32
    %184 = vector.broadcast %cst_76 : f32 to vector<6x6xf32>
    %185 = arith.maximumf %183, %184 : vector<6x6xf32>
    %186 = math.sqrt %185 : vector<6x6xf32>
    %cst_77 = arith.constant 0.000000e+00 : f32
    %187 = vector.broadcast %cst_77 : f32 to vector<6x6xf32>
    %188 = arith.subf %187, %186 : vector<6x6xf32>
    %cst_78 = arith.constant dense<0.000000e+00> : vector<6xf32>
    %189 = vector.multi_reduction <add>, %188, %cst_78 [1] : vector<6x6xf32> to vector<6xf32>
    %190 = vector.shape_cast %189 : vector<6xf32> to vector<6x1xf32>
    %cst_79 = arith.constant 6.000000e+00 : f32
    %191 = vector.broadcast %cst_79 : f32 to vector<6x1xf32>
    %192 = arith.divf %190, %191 : vector<6x1xf32>
    %cst_80 = arith.constant dense<0.000000e+00> : vector<1xf32>
    %193 = vector.multi_reduction <add>, %192, %cst_80 [0] : vector<6x1xf32> to vector<1xf32>
    %194 = vector.shape_cast %193 : vector<1xf32> to vector<1x1xf32>
    %cst_81 = arith.constant 6.000000e+00 : f32
    %195 = vector.broadcast %cst_81 : f32 to vector<1x1xf32>
    %196 = arith.divf %194, %195 : vector<1x1xf32>
    %197 = vector.broadcast %196 : vector<1x1xf32> to vector<6x6xf32>
    %198 = arith.subf %188, %197 : vector<6x6xf32>
    %199 = arith.mulf %198, %198 : vector<6x6xf32>
    %cst_82 = arith.constant dense<0.000000e+00> : vector<6xf32>
    %200 = vector.multi_reduction <add>, %199, %cst_82 [1] : vector<6x6xf32> to vector<6xf32>
    %201 = vector.shape_cast %200 : vector<6xf32> to vector<6x1xf32>
    %cst_83 = arith.constant 6.000000e+00 : f32
    %202 = vector.broadcast %cst_83 : f32 to vector<6x1xf32>
    %203 = arith.divf %201, %202 : vector<6x1xf32>
    %cst_84 = arith.constant dense<0.000000e+00> : vector<1xf32>
    %204 = vector.multi_reduction <add>, %203, %cst_84 [0] : vector<6x1xf32> to vector<1xf32>
    %205 = vector.shape_cast %204 : vector<1xf32> to vector<1x1xf32>
    %cst_85 = arith.constant 6.000000e+00 : f32
    %206 = vector.broadcast %cst_85 : f32 to vector<1x1xf32>
    %207 = arith.divf %205, %206 : vector<1x1xf32>
    %cst_86 = arith.constant 9.99999974E-6 : f32
    %208 = vector.broadcast %cst_86 : f32 to vector<1x1xf32>
    %209 = arith.addf %207, %208 : vector<1x1xf32>
    %210 = math.rsqrt %209 : vector<1x1xf32>
    %211 = vector.broadcast %210 : vector<1x1xf32> to vector<6x6xf32>
    %212 = arith.mulf %198, %211 : vector<6x6xf32>
    %213 = arith.mulf %212, %16 : vector<6x6xf32>
    %214 = arith.addf %213, %17 : vector<6x6xf32>
    %c0_87 = arith.constant 0 : index
    %c3 = arith.constant 3 : index
    %c0_88 = arith.constant 0 : index
    %c0_89 = arith.constant 0 : index
    %215 = vector.load %arg7[%c0_87, %c3, %c0_88, %c0_89] : memref<1x8x6x6xf32, #tpu.memory_space<vmem>>, vector<1x1x6x6xf32>
    %216 = vector.shape_cast %215 : vector<1x1x6x6xf32> to vector<6x6xf32>
    %217 = vector.shape_cast %214 : vector<6x6xf32> to vector<1x1x6x6xf32>
    tpu.vector_store %arg7[%c0_87, %c3, %c0_88, %c0_89], %217 {strides = array<i32>} : memref<1x8x6x6xf32, #tpu.memory_space<vmem>>, vector<1x1x6x6xf32>,
    %218 = vector.extract_strided_slice %6 {offsets = [0, 328], sizes = [6, 50], strides = [1, 1]} : vector<6x528xf32> to vector<6x50xf32>
    %cst_90 = arith.constant dense<0.000000e+00> : vector<6x6xf32>
    %219 = tpu.matmul %218, %218, %cst_90 {dimension_numbers = #tpu.dot_dimension_numbers<[1], [1], [0], [0], [0, 0, 1, 0], [], []>} : vector<6x50xf32>, vector<6x50xf32>, vector<6x6xf32> -> vector<6x6xf32>
    %220 = arith.mulf %219, %15 : vector<6x6xf32>
    %cst_91 = arith.constant dense<0.000000e+00> : vector<6xf32>
    %221 = vector.multi_reduction <add>, %220, %cst_91 [1] : vector<6x6xf32> to vector<6xf32>
    %222 = vector.shape_cast %221 : vector<6xf32> to vector<6x1xf32>
    %223 = arith.mulf %219, %15 : vector<6x6xf32>
    %cst_92 = arith.constant dense<0.000000e+00> : vector<6xf32>
    %224 = vector.multi_reduction <add>, %223, %cst_92 [0] : vector<6x6xf32> to vector<6xf32>
    %225 = vector.shape_cast %224 : vector<6xf32> to vector<1x6xf32>
    %226 = vector.broadcast %222 : vector<6x1xf32> to vector<6x6xf32>
    %227 = vector.broadcast %225 : vector<1x6xf32> to vector<6x6xf32>
    %228 = arith.addf %226, %227 : vector<6x6xf32>
    %cst_93 = arith.constant 2.000000e+00 : f32
    %229 = vector.broadcast %cst_93 : f32 to vector<6x6xf32>
    %230 = arith.mulf %229, %219 : vector<6x6xf32>
    %231 = arith.subf %228, %230 : vector<6x6xf32>
    %cst_94 = arith.constant 5.000000e-02 : f32
    %232 = vector.broadcast %cst_94 : f32 to vector<6x6xf32>
    %233 = arith.addf %231, %232 : vector<6x6xf32>
    %cst_95 = arith.constant 0.000000e+00 : f32
    %234 = vector.broadcast %cst_95 : f32 to vector<6x6xf32>
    %235 = arith.maximumf %233, %234 : vector<6x6xf32>
    %236 = math.sqrt %235 : vector<6x6xf32>
    %cst_96 = arith.constant 0.000000e+00 : f32
    %237 = vector.broadcast %cst_96 : f32 to vector<6x6xf32>
    %238 = arith.subf %237, %236 : vector<6x6xf32>
    %cst_97 = arith.constant dense<0.000000e+00> : vector<6xf32>
    %239 = vector.multi_reduction <add>, %238, %cst_97 [1] : vector<6x6xf32> to vector<6xf32>
    %240 = vector.shape_cast %239 : vector<6xf32> to vector<6x1xf32>
    %cst_98 = arith.constant 6.000000e+00 : f32
    %241 = vector.broadcast %cst_98 : f32 to vector<6x1xf32>
    %242 = arith.divf %240, %241 : vector<6x1xf32>
    %cst_99 = arith.constant dense<0.000000e+00> : vector<1xf32>
    %243 = vector.multi_reduction <add>, %242, %cst_99 [0] : vector<6x1xf32> to vector<1xf32>
    %244 = vector.shape_cast %243 : vector<1xf32> to vector<1x1xf32>
    %cst_100 = arith.constant 6.000000e+00 : f32
    %245 = vector.broadcast %cst_100 : f32 to vector<1x1xf32>
    %246 = arith.divf %244, %245 : vector<1x1xf32>
    %247 = vector.broadcast %246 : vector<1x1xf32> to vector<6x6xf32>
    %248 = arith.subf %238, %247 : vector<6x6xf32>
    %249 = arith.mulf %248, %248 : vector<6x6xf32>
    %cst_101 = arith.constant dense<0.000000e+00> : vector<6xf32>
    %250 = vector.multi_reduction <add>, %249, %cst_101 [1] : vector<6x6xf32> to vector<6xf32>
    %251 = vector.shape_cast %250 : vector<6xf32> to vector<6x1xf32>
    %cst_102 = arith.constant 6.000000e+00 : f32
    %252 = vector.broadcast %cst_102 : f32 to vector<6x1xf32>
    %253 = arith.divf %251, %252 : vector<6x1xf32>
    %cst_103 = arith.constant dense<0.000000e+00> : vector<1xf32>
    %254 = vector.multi_reduction <add>, %253, %cst_103 [0] : vector<6x1xf32> to vector<1xf32>
    %255 = vector.shape_cast %254 : vector<1xf32> to vector<1x1xf32>
    %cst_104 = arith.constant 6.000000e+00 : f32
    %256 = vector.broadcast %cst_104 : f32 to vector<1x1xf32>
    %257 = arith.divf %255, %256 : vector<1x1xf32>
    %cst_105 = arith.constant 9.99999974E-6 : f32
    %258 = vector.broadcast %cst_105 : f32 to vector<1x1xf32>
    %259 = arith.addf %257, %258 : vector<1x1xf32>
    %260 = math.rsqrt %259 : vector<1x1xf32>
    %261 = vector.broadcast %260 : vector<1x1xf32> to vector<6x6xf32>
    %262 = arith.mulf %248, %261 : vector<6x6xf32>
    %263 = arith.mulf %262, %16 : vector<6x6xf32>
    %264 = arith.addf %263, %17 : vector<6x6xf32>
    %c0_106 = arith.constant 0 : index
    %c4 = arith.constant 4 : index
    %c0_107 = arith.constant 0 : index
    %c0_108 = arith.constant 0 : index
    %265 = vector.load %arg7[%c0_106, %c4, %c0_107, %c0_108] : memref<1x8x6x6xf32, #tpu.memory_space<vmem>>, vector<1x1x6x6xf32>
    %266 = vector.shape_cast %265 : vector<1x1x6x6xf32> to vector<6x6xf32>
    %267 = vector.shape_cast %264 : vector<6x6xf32> to vector<1x1x6x6xf32>
    tpu.vector_store %arg7[%c0_106, %c4, %c0_107, %c0_108], %267 {strides = array<i32>} : memref<1x8x6x6xf32, #tpu.memory_space<vmem>>, vector<1x1x6x6xf32>,
    %268 = vector.extract_strided_slice %6 {offsets = [0, 378], sizes = [6, 50], strides = [1, 1]} : vector<6x528xf32> to vector<6x50xf32>
    %cst_109 = arith.constant dense<0.000000e+00> : vector<6x6xf32>
    %269 = tpu.matmul %268, %268, %cst_109 {dimension_numbers = #tpu.dot_dimension_numbers<[1], [1], [0], [0], [0, 0, 1, 0], [], []>} : vector<6x50xf32>, vector<6x50xf32>, vector<6x6xf32> -> vector<6x6xf32>
    %270 = arith.mulf %269, %15 : vector<6x6xf32>
    %cst_110 = arith.constant dense<0.000000e+00> : vector<6xf32>
    %271 = vector.multi_reduction <add>, %270, %cst_110 [1] : vector<6x6xf32> to vector<6xf32>
    %272 = vector.shape_cast %271 : vector<6xf32> to vector<6x1xf32>
    %273 = arith.mulf %269, %15 : vector<6x6xf32>
    %cst_111 = arith.constant dense<0.000000e+00> : vector<6xf32>
    %274 = vector.multi_reduction <add>, %273, %cst_111 [0] : vector<6x6xf32> to vector<6xf32>
    %275 = vector.shape_cast %274 : vector<6xf32> to vector<1x6xf32>
    %276 = vector.broadcast %272 : vector<6x1xf32> to vector<6x6xf32>
    %277 = vector.broadcast %275 : vector<1x6xf32> to vector<6x6xf32>
    %278 = arith.addf %276, %277 : vector<6x6xf32>
    %cst_112 = arith.constant 2.000000e+00 : f32
    %279 = vector.broadcast %cst_112 : f32 to vector<6x6xf32>
    %280 = arith.mulf %279, %269 : vector<6x6xf32>
    %281 = arith.subf %278, %280 : vector<6x6xf32>
    %cst_113 = arith.constant 5.000000e-02 : f32
    %282 = vector.broadcast %cst_113 : f32 to vector<6x6xf32>
    %283 = arith.addf %281, %282 : vector<6x6xf32>
    %cst_114 = arith.constant 0.000000e+00 : f32
    %284 = vector.broadcast %cst_114 : f32 to vector<6x6xf32>
    %285 = arith.maximumf %283, %284 : vector<6x6xf32>
    %286 = math.sqrt %285 : vector<6x6xf32>
    %cst_115 = arith.constant 0.000000e+00 : f32
    %287 = vector.broadcast %cst_115 : f32 to vector<6x6xf32>
    %288 = arith.subf %287, %286 : vector<6x6xf32>
    %cst_116 = arith.constant dense<0.000000e+00> : vector<6xf32>
    %289 = vector.multi_reduction <add>, %288, %cst_116 [1] : vector<6x6xf32> to vector<6xf32>
    %290 = vector.shape_cast %289 : vector<6xf32> to vector<6x1xf32>
    %cst_117 = arith.constant 6.000000e+00 : f32
    %291 = vector.broadcast %cst_117 : f32 to vector<6x1xf32>
    %292 = arith.divf %290, %291 : vector<6x1xf32>
    %cst_118 = arith.constant dense<0.000000e+00> : vector<1xf32>
    %293 = vector.multi_reduction <add>, %292, %cst_118 [0] : vector<6x1xf32> to vector<1xf32>
    %294 = vector.shape_cast %293 : vector<1xf32> to vector<1x1xf32>
    %cst_119 = arith.constant 6.000000e+00 : f32
    %295 = vector.broadcast %cst_119 : f32 to vector<1x1xf32>
    %296 = arith.divf %294, %295 : vector<1x1xf32>
    %297 = vector.broadcast %296 : vector<1x1xf32> to vector<6x6xf32>
    %298 = arith.subf %288, %297 : vector<6x6xf32>
    %299 = arith.mulf %298, %298 : vector<6x6xf32>
    %cst_120 = arith.constant dense<0.000000e+00> : vector<6xf32>
    %300 = vector.multi_reduction <add>, %299, %cst_120 [1] : vector<6x6xf32> to vector<6xf32>
    %301 = vector.shape_cast %300 : vector<6xf32> to vector<6x1xf32>
    %cst_121 = arith.constant 6.000000e+00 : f32
    %302 = vector.broadcast %cst_121 : f32 to vector<6x1xf32>
    %303 = arith.divf %301, %302 : vector<6x1xf32>
    %cst_122 = arith.constant dense<0.000000e+00> : vector<1xf32>
    %304 = vector.multi_reduction <add>, %303, %cst_122 [0] : vector<6x1xf32> to vector<1xf32>
    %305 = vector.shape_cast %304 : vector<1xf32> to vector<1x1xf32>
    %cst_123 = arith.constant 6.000000e+00 : f32
    %306 = vector.broadcast %cst_123 : f32 to vector<1x1xf32>
    %307 = arith.divf %305, %306 : vector<1x1xf32>
    %cst_124 = arith.constant 9.99999974E-6 : f32
    %308 = vector.broadcast %cst_124 : f32 to vector<1x1xf32>
    %309 = arith.addf %307, %308 : vector<1x1xf32>
    %310 = math.rsqrt %309 : vector<1x1xf32>
    %311 = vector.broadcast %310 : vector<1x1xf32> to vector<6x6xf32>
    %312 = arith.mulf %298, %311 : vector<6x6xf32>
    %313 = arith.mulf %312, %16 : vector<6x6xf32>
    %314 = arith.addf %313, %17 : vector<6x6xf32>
    %c0_125 = arith.constant 0 : index
    %c5 = arith.constant 5 : index
    %c0_126 = arith.constant 0 : index
    %c0_127 = arith.constant 0 : index
    %315 = vector.load %arg7[%c0_125, %c5, %c0_126, %c0_127] : memref<1x8x6x6xf32, #tpu.memory_space<vmem>>, vector<1x1x6x6xf32>
    %316 = vector.shape_cast %315 : vector<1x1x6x6xf32> to vector<6x6xf32>
    %317 = vector.shape_cast %314 : vector<6x6xf32> to vector<1x1x6x6xf32>
    tpu.vector_store %arg7[%c0_125, %c5, %c0_126, %c0_127], %317 {strides = array<i32>} : memref<1x8x6x6xf32, #tpu.memory_space<vmem>>, vector<1x1x6x6xf32>,
    %318 = vector.extract_strided_slice %6 {offsets = [0, 428], sizes = [6, 50], strides = [1, 1]} : vector<6x528xf32> to vector<6x50xf32>
    %cst_128 = arith.constant dense<0.000000e+00> : vector<6x6xf32>
    %319 = tpu.matmul %318, %318, %cst_128 {dimension_numbers = #tpu.dot_dimension_numbers<[1], [1], [0], [0], [0, 0, 1, 0], [], []>} : vector<6x50xf32>, vector<6x50xf32>, vector<6x6xf32> -> vector<6x6xf32>
    %320 = arith.mulf %319, %15 : vector<6x6xf32>
    %cst_129 = arith.constant dense<0.000000e+00> : vector<6xf32>
    %321 = vector.multi_reduction <add>, %320, %cst_129 [1] : vector<6x6xf32> to vector<6xf32>
    %322 = vector.shape_cast %321 : vector<6xf32> to vector<6x1xf32>
    %323 = arith.mulf %319, %15 : vector<6x6xf32>
    %cst_130 = arith.constant dense<0.000000e+00> : vector<6xf32>
    %324 = vector.multi_reduction <add>, %323, %cst_130 [0] : vector<6x6xf32> to vector<6xf32>
    %325 = vector.shape_cast %324 : vector<6xf32> to vector<1x6xf32>
    %326 = vector.broadcast %322 : vector<6x1xf32> to vector<6x6xf32>
    %327 = vector.broadcast %325 : vector<1x6xf32> to vector<6x6xf32>
    %328 = arith.addf %326, %327 : vector<6x6xf32>
    %cst_131 = arith.constant 2.000000e+00 : f32
    %329 = vector.broadcast %cst_131 : f32 to vector<6x6xf32>
    %330 = arith.mulf %329, %319 : vector<6x6xf32>
    %331 = arith.subf %328, %330 : vector<6x6xf32>
    %cst_132 = arith.constant 5.000000e-02 : f32
    %332 = vector.broadcast %cst_132 : f32 to vector<6x6xf32>
    %333 = arith.addf %331, %332 : vector<6x6xf32>
    %cst_133 = arith.constant 0.000000e+00 : f32
    %334 = vector.broadcast %cst_133 : f32 to vector<6x6xf32>
    %335 = arith.maximumf %333, %334 : vector<6x6xf32>
    %336 = math.sqrt %335 : vector<6x6xf32>
    %cst_134 = arith.constant 0.000000e+00 : f32
    %337 = vector.broadcast %cst_134 : f32 to vector<6x6xf32>
    %338 = arith.subf %337, %336 : vector<6x6xf32>
    %cst_135 = arith.constant dense<0.000000e+00> : vector<6xf32>
    %339 = vector.multi_reduction <add>, %338, %cst_135 [1] : vector<6x6xf32> to vector<6xf32>
    %340 = vector.shape_cast %339 : vector<6xf32> to vector<6x1xf32>
    %cst_136 = arith.constant 6.000000e+00 : f32
    %341 = vector.broadcast %cst_136 : f32 to vector<6x1xf32>
    %342 = arith.divf %340, %341 : vector<6x1xf32>
    %cst_137 = arith.constant dense<0.000000e+00> : vector<1xf32>
    %343 = vector.multi_reduction <add>, %342, %cst_137 [0] : vector<6x1xf32> to vector<1xf32>
    %344 = vector.shape_cast %343 : vector<1xf32> to vector<1x1xf32>
    %cst_138 = arith.constant 6.000000e+00 : f32
    %345 = vector.broadcast %cst_138 : f32 to vector<1x1xf32>
    %346 = arith.divf %344, %345 : vector<1x1xf32>
    %347 = vector.broadcast %346 : vector<1x1xf32> to vector<6x6xf32>
    %348 = arith.subf %338, %347 : vector<6x6xf32>
    %349 = arith.mulf %348, %348 : vector<6x6xf32>
    %cst_139 = arith.constant dense<0.000000e+00> : vector<6xf32>
    %350 = vector.multi_reduction <add>, %349, %cst_139 [1] : vector<6x6xf32> to vector<6xf32>
    %351 = vector.shape_cast %350 : vector<6xf32> to vector<6x1xf32>
    %cst_140 = arith.constant 6.000000e+00 : f32
    %352 = vector.broadcast %cst_140 : f32 to vector<6x1xf32>
    %353 = arith.divf %351, %352 : vector<6x1xf32>
    %cst_141 = arith.constant dense<0.000000e+00> : vector<1xf32>
    %354 = vector.multi_reduction <add>, %353, %cst_141 [0] : vector<6x1xf32> to vector<1xf32>
    %355 = vector.shape_cast %354 : vector<1xf32> to vector<1x1xf32>
    %cst_142 = arith.constant 6.000000e+00 : f32
    %356 = vector.broadcast %cst_142 : f32 to vector<1x1xf32>
    %357 = arith.divf %355, %356 : vector<1x1xf32>
    %cst_143 = arith.constant 9.99999974E-6 : f32
    %358 = vector.broadcast %cst_143 : f32 to vector<1x1xf32>
    %359 = arith.addf %357, %358 : vector<1x1xf32>
    %360 = math.rsqrt %359 : vector<1x1xf32>
    %361 = vector.broadcast %360 : vector<1x1xf32> to vector<6x6xf32>
    %362 = arith.mulf %348, %361 : vector<6x6xf32>
    %363 = arith.mulf %362, %16 : vector<6x6xf32>
    %364 = arith.addf %363, %17 : vector<6x6xf32>
    %c0_144 = arith.constant 0 : index
    %c6 = arith.constant 6 : index
    %c0_145 = arith.constant 0 : index
    %c0_146 = arith.constant 0 : index
    %365 = vector.load %arg7[%c0_144, %c6, %c0_145, %c0_146] : memref<1x8x6x6xf32, #tpu.memory_space<vmem>>, vector<1x1x6x6xf32>
    %366 = vector.shape_cast %365 : vector<1x1x6x6xf32> to vector<6x6xf32>
    %367 = vector.shape_cast %364 : vector<6x6xf32> to vector<1x1x6x6xf32>
    tpu.vector_store %arg7[%c0_144, %c6, %c0_145, %c0_146], %367 {strides = array<i32>} : memref<1x8x6x6xf32, #tpu.memory_space<vmem>>, vector<1x1x6x6xf32>,
    %368 = vector.extract_strided_slice %6 {offsets = [0, 478], sizes = [6, 50], strides = [1, 1]} : vector<6x528xf32> to vector<6x50xf32>
    %cst_147 = arith.constant dense<0.000000e+00> : vector<6x6xf32>
    %369 = tpu.matmul %368, %368, %cst_147 {dimension_numbers = #tpu.dot_dimension_numbers<[1], [1], [0], [0], [0, 0, 1, 0], [], []>} : vector<6x50xf32>, vector<6x50xf32>, vector<6x6xf32> -> vector<6x6xf32>
    %370 = arith.mulf %369, %15 : vector<6x6xf32>
    %cst_148 = arith.constant dense<0.000000e+00> : vector<6xf32>
    %371 = vector.multi_reduction <add>, %370, %cst_148 [1] : vector<6x6xf32> to vector<6xf32>
    %372 = vector.shape_cast %371 : vector<6xf32> to vector<6x1xf32>
    %373 = arith.mulf %369, %15 : vector<6x6xf32>
    %cst_149 = arith.constant dense<0.000000e+00> : vector<6xf32>
    %374 = vector.multi_reduction <add>, %373, %cst_149 [0] : vector<6x6xf32> to vector<6xf32>
    %375 = vector.shape_cast %374 : vector<6xf32> to vector<1x6xf32>
    %376 = vector.broadcast %372 : vector<6x1xf32> to vector<6x6xf32>
    %377 = vector.broadcast %375 : vector<1x6xf32> to vector<6x6xf32>
    %378 = arith.addf %376, %377 : vector<6x6xf32>
    %cst_150 = arith.constant 2.000000e+00 : f32
    %379 = vector.broadcast %cst_150 : f32 to vector<6x6xf32>
    %380 = arith.mulf %379, %369 : vector<6x6xf32>
    %381 = arith.subf %378, %380 : vector<6x6xf32>
    %cst_151 = arith.constant 5.000000e-02 : f32
    %382 = vector.broadcast %cst_151 : f32 to vector<6x6xf32>
    %383 = arith.addf %381, %382 : vector<6x6xf32>
    %cst_152 = arith.constant 0.000000e+00 : f32
    %384 = vector.broadcast %cst_152 : f32 to vector<6x6xf32>
    %385 = arith.maximumf %383, %384 : vector<6x6xf32>
    %386 = math.sqrt %385 : vector<6x6xf32>
    %cst_153 = arith.constant 0.000000e+00 : f32
    %387 = vector.broadcast %cst_153 : f32 to vector<6x6xf32>
    %388 = arith.subf %387, %386 : vector<6x6xf32>
    %cst_154 = arith.constant dense<0.000000e+00> : vector<6xf32>
    %389 = vector.multi_reduction <add>, %388, %cst_154 [1] : vector<6x6xf32> to vector<6xf32>
    %390 = vector.shape_cast %389 : vector<6xf32> to vector<6x1xf32>
    %cst_155 = arith.constant 6.000000e+00 : f32
    %391 = vector.broadcast %cst_155 : f32 to vector<6x1xf32>
    %392 = arith.divf %390, %391 : vector<6x1xf32>
    %cst_156 = arith.constant dense<0.000000e+00> : vector<1xf32>
    %393 = vector.multi_reduction <add>, %392, %cst_156 [0] : vector<6x1xf32> to vector<1xf32>
    %394 = vector.shape_cast %393 : vector<1xf32> to vector<1x1xf32>
    %cst_157 = arith.constant 6.000000e+00 : f32
    %395 = vector.broadcast %cst_157 : f32 to vector<1x1xf32>
    %396 = arith.divf %394, %395 : vector<1x1xf32>
    %397 = vector.broadcast %396 : vector<1x1xf32> to vector<6x6xf32>
    %398 = arith.subf %388, %397 : vector<6x6xf32>
    %399 = arith.mulf %398, %398 : vector<6x6xf32>
    %cst_158 = arith.constant dense<0.000000e+00> : vector<6xf32>
    %400 = vector.multi_reduction <add>, %399, %cst_158 [1] : vector<6x6xf32> to vector<6xf32>
    %401 = vector.shape_cast %400 : vector<6xf32> to vector<6x1xf32>
    %cst_159 = arith.constant 6.000000e+00 : f32
    %402 = vector.broadcast %cst_159 : f32 to vector<6x1xf32>
    %403 = arith.divf %401, %402 : vector<6x1xf32>
    %cst_160 = arith.constant dense<0.000000e+00> : vector<1xf32>
    %404 = vector.multi_reduction <add>, %403, %cst_160 [0] : vector<6x1xf32> to vector<1xf32>
    %405 = vector.shape_cast %404 : vector<1xf32> to vector<1x1xf32>
    %cst_161 = arith.constant 6.000000e+00 : f32
    %406 = vector.broadcast %cst_161 : f32 to vector<1x1xf32>
    %407 = arith.divf %405, %406 : vector<1x1xf32>
    %cst_162 = arith.constant 9.99999974E-6 : f32
    %408 = vector.broadcast %cst_162 : f32 to vector<1x1xf32>
    %409 = arith.addf %407, %408 : vector<1x1xf32>
    %410 = math.rsqrt %409 : vector<1x1xf32>
    %411 = vector.broadcast %410 : vector<1x1xf32> to vector<6x6xf32>
    %412 = arith.mulf %398, %411 : vector<6x6xf32>
    %413 = arith.mulf %412, %16 : vector<6x6xf32>
    %414 = arith.addf %413, %17 : vector<6x6xf32>
    %c0_163 = arith.constant 0 : index
    %c7 = arith.constant 7 : index
    %c0_164 = arith.constant 0 : index
    %c0_165 = arith.constant 0 : index
    %415 = vector.load %arg7[%c0_163, %c7, %c0_164, %c0_165] : memref<1x8x6x6xf32, #tpu.memory_space<vmem>>, vector<1x1x6x6xf32>
    %416 = vector.shape_cast %415 : vector<1x1x6x6xf32> to vector<6x6xf32>
    %417 = vector.shape_cast %414 : vector<6x6xf32> to vector<1x1x6x6xf32>
    tpu.vector_store %arg7[%c0_163, %c7, %c0_164, %c0_165], %417 {strides = array<i32>} : memref<1x8x6x6xf32, #tpu.memory_space<vmem>>, vector<1x1x6x6xf32>,
    return
  }
  func.func @transform_0(%arg0: i32) -> (i32, i32, i32) {
    %c0_i32 = arith.constant 0 : i32
    %c0_i32_0 = arith.constant 0 : i32
    %c0_i32_1 = arith.constant 0 : i32
    return %arg0, %c0_i32, %c0_i32_0 : i32, i32, i32
  }
  func.func @transform_1(%arg0: i32) -> (i32, i32) {
    %c0_i32 = arith.constant 0 : i32
    %c0_i32_0 = arith.constant 0 : i32
    %c0_i32_1 = arith.constant 0 : i32
    return %c0_i32, %c0_i32_0 : i32, i32
  }
  func.func @transform_2(%arg0: i32) -> (i32, i32) {
    %c0_i32 = arith.constant 0 : i32
    %c0_i32_0 = arith.constant 0 : i32
    %c0_i32_1 = arith.constant 0 : i32
    return %c0_i32, %c0_i32_0 : i32, i32
  }
  func.func @transform_3(%arg0: i32) -> (i32, i32) {
    %c0_i32 = arith.constant 0 : i32
    %c0_i32_0 = arith.constant 0 : i32
    %c0_i32_1 = arith.constant 0 : i32
    return %c0_i32, %c0_i32_0 : i32, i32
  }
  func.func @transform_4(%arg0: i32) -> (i32, i32) {
    %c0_i32 = arith.constant 0 : i32
    %c0_i32_0 = arith.constant 0 : i32
    %c0_i32_1 = arith.constant 0 : i32
    return %c0_i32, %c0_i32_0 : i32, i32
  }
  func.func @transform_5(%arg0: i32) -> (i32, i32, i32) {
    %c0_i32 = arith.constant 0 : i32
    %c0_i32_0 = arith.constant 0 : i32
    %c0_i32_1 = arith.constant 0 : i32
    return %arg0, %c0_i32, %c0_i32_0 : i32, i32, i32
  }
  func.func @transform_6(%arg0: i32) -> (i32, i32, i32, i32) {
    %c0_i32 = arith.constant 0 : i32
    %c0_i32_0 = arith.constant 0 : i32
    %c0_i32_1 = arith.constant 0 : i32
    %c0_i32_2 = arith.constant 0 : i32
    return %arg0, %c0_i32, %c0_i32_0, %c0_i32_1 : i32, i32, i32, i32
  }
}

</mosaic_0001>

<llo_original>
// kernel: tpu_custom_call.1
$region0: #{tpu_custom_call.1}
  #allocation0 [shape = 'u32[]', space=smem, size = 0x4, offset = 0x4, fixed_abs, tag = 'smem constant byte address 0x4 - core index']
  #allocation1 [shape = 'u32[144,128]{1,0:T(1,128)}', space=vmem, size = 0x12000, scoped, tag = 'internal scratch']
  %s0 = inlined_call_operand.vmem [shape: f32[2,6,1536], index: 0, kind: input, shape index: {}]
  %s1 = inlined_call_operand.vmem [shape: f32[1536,528], index: 1, kind: input, shape index: {}]
  %s2 = inlined_call_operand.vmem [shape: f32[1,528], index: 2, kind: input, shape index: {}]
  %s3 = inlined_call_operand.vmem [shape: f32[6,6], index: 3, kind: input, shape index: {}]
  %s4 = inlined_call_operand.vmem [shape: f32[6,6], index: 4, kind: input, shape index: {}]
  %s5 = inlined_call_operand.vmem [shape: f32[2,6,128], index: 5, kind: output, shape index: {0}]
  %s6 = inlined_call_operand.vmem [shape: f32[2,8,6,6], index: 6, kind: output, shape index: {1}]
  %7 = xla_tuple %s5, %s6
  %s8 = sld [smem:[#allocation0]]
  $region61: #{tpu_custom_call.1} parent=0
    _
  %s10 = ssub.s32 1, %s8
  %s11 = scalar_select 0, %s10, %s8
  loop: start=0, step=1, limit=4
  $region2: #{tpu_custom_call.1} parent=0 // loop_pre_header
    _
  $region3: #{tpu_custom_call.1} parent=0 // loop_header
    %s13 = sphi 0, %s17
    %p14 = scmp.ge.s32.totalorder %s13, 4
    %s23 = sphi 0, %s25
    %s26 = sphi 0, %s23
    %s27 = sphi 0, %s26
    %s43 = sphi 0, %s27
    %s47 = sphi 0, %s47
    %s49 = sphi 0, %s47
    %s50 = sphi 0, %s49
    %s64 = sphi 0, %s50
    %s68 = sphi 0, %s68
    %s70 = sphi 0, %s68
    %s71 = sphi 0, %s70
    %s85 = sphi 0, %s71
    %s89 = sphi 0, %s89
    %s91 = sphi 0, %s89
    %s92 = sphi 0, %s91
    %s106 = sphi 0, %s92
    %s110 = sphi 0, %s110
    %s112 = sphi 0, %s110
    %s113 = sphi 0, %s112
    %s127 = sphi 0, %s113
    %s133 = sphi 0, %s135
    %s136 = sphi 0, %s133
    %s137 = sphi 0, %s136
    %s153 = sphi 0, %s137
    %s159 = sphi 0, %s161
    %s162 = sphi 0, %s159
    %s163 = sphi 0, %s162
    %s179 = sphi 0, %s163
  $region4: #{tpu_custom_call.1} parent=0 // loop_header_branch
    %16 = sbr.rel (%p14) target = $region8
  $region5: #{tpu_custom_call.1} parent=0 // loop_body
    %s18 = ssub.s32 %s13, 1
    %s19 = ssub.s32 %s13, 2
    %s20 = sadd.s32 %s13, 1
    %s21 = ssub.s32 %s13, %s20
    %p22 = scmp.eq.s32.totalorder %s21, 0
    %s24 = sadd.s32 %s23, 1
    %s25 = scalar_select %p22, %s23, %s24
    %p28 = pneg %p22
    %p29 = scmp.eq.s32.totalorder %s13, 1
    %p30 = por %p28, %p29
    %p31 = scmp.ne.s32.totalorder %s23, %s26
    %p32 = scmp.eq.s32.totalorder %s13, 0
    %p33 = por %p31, %p32
    %p34 = scmp.ne.s32.totalorder %s23, %s26
    %p35 = scmp.eq.s32.totalorder %s18, 1
    %p36 = por %p34, %p35
    %p37 = scmp.ne.s32.totalorder %s26, %s27
    %p38 = scmp.eq.s32.totalorder %s18, 0
    %p39 = por %p37, %p38
    %p40 = scmp.ne.s32.totalorder %s26, %s27
    %p41 = scmp.eq.s32.totalorder %s19, 1
    %p42 = por %p40, %p41
    %p44 = scmp.ne.s32.totalorder %s27, %s43
    %p45 = scmp.eq.s32.totalorder %s19, 0
    %p46 = por %p44, %p45
    %s48 = sadd.s32 %s47, 1
    %p51 = scmp.eq.s32.totalorder %s13, 1
    %p52 = scmp.ne.s32.totalorder %s47, %s49
    %p53 = scmp.eq.s32.totalorder %s13, 0
    %p54 = por %p52, %p53
    %p55 = scmp.ne.s32.totalorder %s47, %s49
    %p56 = scmp.eq.s32.totalorder %s18, 1
    %p57 = por %p55, %p56
    %p58 = scmp.ne.s32.totalorder %s49, %s50
    %p59 = scmp.eq.s32.totalorder %s18, 0
    %p60 = por %p58, %p59
    %p61 = scmp.ne.s32.totalorder %s49, %s50
    %p62 = scmp.eq.s32.totalorder %s19, 1
    %p63 = por %p61, %p62
    %p65 = scmp.ne.s32.totalorder %s50, %s64
    %p66 = scmp.eq.s32.totalorder %s19, 0
    %p67 = por %p65, %p66
    %s69 = sadd.s32 %s68, 1
    %p72 = scmp.eq.s32.totalorder %s13, 1
    %p73 = scmp.ne.s32.totalorder %s68, %s70
    %p74 = scmp.eq.s32.totalorder %s13, 0
    %p75 = por %p73, %p74
    %p76 = scmp.ne.s32.totalorder %s68, %s70
    %p77 = scmp.eq.s32.totalorder %s18, 1
    %p78 = por %p76, %p77
    %p79 = scmp.ne.s32.totalorder %s70, %s71
    %p80 = scmp.eq.s32.totalorder %s18, 0
    %p81 = por %p79, %p80
    %p82 = scmp.ne.s32.totalorder %s70, %s71
    %p83 = scmp.eq.s32.totalorder %s19, 1
    %p84 = por %p82, %p83
    %p86 = scmp.ne.s32.totalorder %s71, %s85
    %p87 = scmp.eq.s32.totalorder %s19, 0
    %p88 = por %p86, %p87
    %s90 = sadd.s32 %s89, 1
    %p93 = scmp.eq.s32.totalorder %s13, 1
    %p94 = scmp.ne.s32.totalorder %s89, %s91
    %p95 = scmp.eq.s32.totalorder %s13, 0
    %p96 = por %p94, %p95
    %p97 = scmp.ne.s32.totalorder %s89, %s91
    %p98 = scmp.eq.s32.totalorder %s18, 1
    %p99 = por %p97, %p98
    %p100 = scmp.ne.s32.totalorder %s91, %s92
    %p101 = scmp.eq.s32.totalorder %s18, 0
    %p102 = por %p100, %p101
    %p103 = scmp.ne.s32.totalorder %s91, %s92
    %p104 = scmp.eq.s32.totalorder %s19, 1
    %p105 = por %p103, %p104
    %p107 = scmp.ne.s32.totalorder %s92, %s106
    %p108 = scmp.eq.s32.totalorder %s19, 0
    %p109 = por %p107, %p108
    %s111 = sadd.s32 %s110, 1
    %p114 = scmp.eq.s32.totalorder %s13, 1
    %p115 = scmp.ne.s32.totalorder %s110, %s112
    %p116 = scmp.eq.s32.totalorder %s13, 0
    %p117 = por %p115, %p116
    %p118 = scmp.ne.s32.totalorder %s110, %s112
    %p119 = scmp.eq.s32.totalorder %s18, 1
    %p120 = por %p118, %p119
    %p121 = scmp.ne.s32.totalorder %s112, %s113
    %p122 = scmp.eq.s32.totalorder %s18, 0
    %p123 = por %p121, %p122
    %p124 = scmp.ne.s32.totalorder %s112, %s113
    %p125 = scmp.eq.s32.totalorder %s19, 1
    %p126 = por %p124, %p125
    %p128 = scmp.ne.s32.totalorder %s113, %s127
    %p129 = scmp.eq.s32.totalorder %s19, 0
    %p130 = por %p128, %p129
    %s131 = ssub.s32 %s13, %s20
    %p132 = scmp.eq.s32.totalorder %s131, 0
    %s134 = sadd.s32 %s133, 1
    %s135 = scalar_select %p132, %s133, %s134
    %p138 = pneg %p132
    %p139 = scmp.eq.s32.totalorder %s13, 1
    %p140 = por %p138, %p139
    %p141 = scmp.ne.s32.totalorder %s133, %s136
    %p142 = scmp.eq.s32.totalorder %s13, 0
    %p143 = por %p141, %p142
    %p144 = scmp.ne.s32.totalorder %s133, %s136
    %p145 = scmp.eq.s32.totalorder %s18, 1
    %p146 = por %p144, %p145
    %p147 = scmp.ne.s32.totalorder %s136, %s137
    %p148 = scmp.eq.s32.totalorder %s18, 0
    %p149 = por %p147, %p148
    %p150 = scmp.ne.s32.totalorder %s136, %s137
    %p151 = scmp.eq.s32.totalorder %s19, 1
    %p152 = por %p150, %p151
    %p154 = scmp.ne.s32.totalorder %s137, %s153
    %p155 = scmp.eq.s32.totalorder %s19, 0
    %p156 = por %p154, %p155
    %s157 = ssub.s32 %s13, %s20
    %p158 = scmp.eq.s32.totalorder %s157, 0
    %s160 = sadd.s32 %s159, 1
    %s161 = scalar_select %p158, %s159, %s160
    %p164 = pneg %p158
    %p165 = scmp.eq.s32.totalorder %s13, 1
    %p166 = por %p164, %p165
    %p167 = scmp.ne.s32.totalorder %s159, %s162
    %p168 = scmp.eq.s32.totalorder %s13, 0
    %p169 = por %p167, %p168
    %p170 = scmp.ne.s32.totalorder %s159, %s162
    %p171 = scmp.eq.s32.totalorder %s18, 1
    %p172 = por %p170, %p171
    %p173 = scmp.ne.s32.totalorder %s162, %s163
    %p174 = scmp.eq.s32.totalorder %s18, 0
    %p175 = por %p173, %p174
    %p176 = scmp.ne.s32.totalorder %s162, %s163
    %p177 = scmp.eq.s32.totalorder %s19, 1
    %p178 = por %p176, %p177
    %p180 = scmp.ne.s32.totalorder %s163, %s179
    %p181 = scmp.eq.s32.totalorder %s19, 0
    %p182 = por %p180, %p181
    %p183 = scmp.le.s32.totalorder 1, %s13
    %p184 = scmp.lt.s32.totalorder %s13, 3
    %p185 = pnand %p183, %p184
    %p186 = pneg %p185
    // Predicated region
    $region9: #{tpu_custom_call.1} parent=5 // pred_check
      _
    $region10: #{tpu_custom_call.1} parent=5 // pred_check_branch
      %188 = sbr.rel (%p185) target = $region12
    $region11: #{tpu_custom_call.1} parent=5 // pred_region
      %s189 = ssub.s32 %s13, 1
      // Predicated region
      $region13: #{tpu_custom_call.1} parent=11 // pred_check
        %p190 = pneg %p60
      $region14: #{tpu_custom_call.1} parent=11 // pred_check_branch
        %192 = sbr.rel (%p190) target = $region16
      $region15: #{tpu_custom_call.1} parent=11 // pred_region
        _
      $region16: #{tpu_custom_call.1} parent=11 // pred_fallthru
        _
      // Predicated region
      $region17: #{tpu_custom_call.1} parent=11 // pred_check
        %p193 = pneg %p81
      $region18: #{tpu_custom_call.1} parent=11 // pred_check_branch
        %195 = sbr.rel (%p193) target = $region20
      $region19: #{tpu_custom_call.1} parent=11 // pred_region
        _
      $region20: #{tpu_custom_call.1} parent=11 // pred_fallthru
        _
      // Predicated region
      $region21: #{tpu_custom_call.1} parent=11 // pred_check
        %p196 = pneg %p102
      $region22: #{tpu_custom_call.1} parent=11 // pred_check_branch
        %198 = sbr.rel (%p196) target = $region24
      $region23: #{tpu_custom_call.1} parent=11 // pred_region
        _
      $region24: #{tpu_custom_call.1} parent=11 // pred_fallthru
        _
      // Predicated region
      $region25: #{tpu_custom_call.1} parent=11 // pred_check
        %p199 = pneg %p123
      $region26: #{tpu_custom_call.1} parent=11 // pred_check_branch
        %201 = sbr.rel (%p199) target = $region28
      $region27: #{tpu_custom_call.1} parent=11 // pred_region
        _
      $region28: #{tpu_custom_call.1} parent=11 // pred_fallthru
        _
    $region12: #{tpu_custom_call.1} parent=5 // pred_fallthru
      _
    %p202 = scmp.lt.s32.totalorder %s13, 2
    // Predicated region
    $region29: #{tpu_custom_call.1} parent=5 // pred_check
      %p203 = pneg %p202
    $region30: #{tpu_custom_call.1} parent=5 // pred_check_branch
      %205 = sbr.rel (%p203) target = $region32
    $region31: #{tpu_custom_call.1} parent=5 // pred_region
      // Predicated region
      $region33: #{tpu_custom_call.1} parent=31 // pred_check
        %p206 = pneg %p33
      $region34: #{tpu_custom_call.1} parent=31 // pred_check_branch
        %208 = sbr.rel (%p206) target = $region36
      $region35: #{tpu_custom_call.1} parent=31 // pred_region
        %p209 = scmp.lt.s32.totalorder %s13, 1
        %s210 = scalar_select %p209, %s13, 1
        %s211 = smul.addr %s210, 12
        %s212 = smul.addr %s211, 8
        %s213 = scalar_lea.vmem %s0, %s212
      $region36: #{tpu_custom_call.1} parent=31 // pred_fallthru
        _
    $region32: #{tpu_custom_call.1} parent=5 // pred_fallthru
      _
    %p214 = scmp.le.s32.totalorder 1, %s13
    %p215 = scmp.lt.s32.totalorder %s13, 3
    %p216 = pnand %p214, %p215
    %p217 = pneg %p216
    // Predicated region
    $region37: #{tpu_custom_call.1} parent=5 // pred_check
      _
    $region38: #{tpu_custom_call.1} parent=5 // pred_check_branch
      %219 = sbr.rel (%p216) target = $region40
    $region39: #{tpu_custom_call.1} parent=5 // pred_region
      %s220 = ssub.s32 %s13, 1
      %p221 = scmp.lt.s32.totalorder %s18, 1
      %s222 = scalar_select %p221, %s18, 1
      %s223 = smul.addr %s222, 12
      %s224 = smul.addr %s223, 8
      %s225 = scalar_lea.vmem %s0, %s224
      %p226 = pneg %p39
      %p227 = pneg %p36
      %p228 = pneg %p60
      %p229 = pneg %p57
      %p230 = pneg %p81
      %p231 = pneg %p78
      %p232 = pneg %p102
      %p233 = pneg %p99
      %p234 = pneg %p123
      %p235 = pneg %p120
      %p236 = pneg %p149
      %p237 = pneg %p146
      %p238 = scmp.lt.s32.totalorder %s18, 1
      %s239 = scalar_select %p238, %s18, 1
      %s240 = smul.addr %s239, 8
      %s241 = scalar_lea.vmem %s5, %s240
      %p242 = pneg %p175
      %p243 = pneg %p172
      %p244 = scmp.lt.s32.totalorder %s18, 1
      %s245 = scalar_select %p244, %s18, 1
      %s246 = smul.addr %s245, 8
      %s247 = smul.addr %s246, 8
      %s248 = scalar_lea.vmem %s6, %s247
      %p249 = scmp.lt.s32.totalorder %s18, 1
      %s250 = scalar_select %p249, %s18, 1
      %s251 = smul.addr %s250, 12
      %s252 = smul.addr %s251, 8
      %s253 = scalar_lea.vmem %s0, %s252
      %p254 = scmp.lt.s32.totalorder %s18, 1
      %s255 = scalar_select %p254, %s18, 1
      %s256 = smul.addr %s255, 8
      %s257 = scalar_lea.vmem %s5, %s256
      %p258 = scmp.lt.s32.totalorder %s18, 1
      %s259 = scalar_select %p258, %s18, 1
      %s260 = smul.addr %s259, 8
      %s261 = smul.addr %s260, 8
      %s262 = scalar_lea.vmem %s6, %s261
      %v263 = vld [vmem:[%s253] sm:$0x3f]
      %v264 = vld [vmem:[%s253 + $0x8] sm:$0x3f]
      %v265 = vld [vmem:[%s253 + $0x10] sm:$0x3f]
      %v266 = vld [vmem:[%s253 + $0x18] sm:$0x3f]
      %v267 = vld [vmem:[%s253 + $0x20] sm:$0x3f]
      %v268 = vld [vmem:[%s253 + $0x28] sm:$0x3f]
      %v269 = vld [vmem:[%s253 + $0x30] sm:$0x3f]
      %v270 = vld [vmem:[%s253 + $0x38] sm:$0x3f]
      %v271 = vld [vmem:[%s253 + $0x40] sm:$0x3f]
      %v272 = vld [vmem:[%s253 + $0x48] sm:$0x3f]
      %v273 = vld [vmem:[%s253 + $0x50] sm:$0x3f]
      %v274 = vld [vmem:[%s253 + $0x58] sm:$0x3f]
      %v275 = vld [vmem:[%s1] sm:$0xff]
      %v276 = vld [vmem:[%s1 + $0x8] sm:$0xff]
      %v277 = vld [vmem:[%s1 + $0x10] sm:$0xff]
      %v278 = vld [vmem:[%s1 + $0x18] sm:$0xff]
      %v279 = vld [vmem:[%s1 + $0x20] sm:$0xff]
      %v280 = vld [vmem:[%s1 + $0x28] sm:$0xff]
      %v281 = vld [vmem:[%s1 + $0x30] sm:$0xff]
      %v282 = vld [vmem:[%s1 + $0x38] sm:$0xff]
      %v283 = vld [vmem:[%s1 + $0x40] sm:$0xff]
      %v284 = vld [vmem:[%s1 + $0x48] sm:$0xff]
      %v285 = vld [vmem:[%s1 + $0x50] sm:$0xff]
      %v286 = vld [vmem:[%s1 + $0x58] sm:$0xff]
      %v287 = vld [vmem:[%s1 + $0x60] sm:$0xff]
      %v288 = vld [vmem:[%s1 + $0x68] sm:$0xff]
      %v289 = vld [vmem:[%s1 + $0x70] sm:$0xff]
      %v290 = vld [vmem:[%s1 + $0x78] sm:$0xff]
      %v291 = vld [vmem:[%s1 + $0x80] sm:$0xff]
      %v292 = vld [vmem:[%s1 + $0x88] sm:$0xff]
      %v293 = vld [vmem:[%s1 + $0x90] sm:$0xff]
      %v294 = vld [vmem:[%s1 + $0x98] sm:$0xff]
      %v295 = vld [vmem:[%s1 + $0xa0] sm:$0xff]
      %v296 = vld [vmem:[%s1 + $0xa8] sm:$0xff]
      %v297 = vld [vmem:[%s1 + $0xb0] sm:$0xff]
      %v298 = vld [vmem:[%s1 + $0xb8] sm:$0xff]
      %v299 = vld [vmem:[%s1 + $0xc0] sm:$0xff]
      %v300 = vld [vmem:[%s1 + $0xc8] sm:$0xff]
      %v301 = vld [vmem:[%s1 + $0xd0] sm:$0xff]
      %v302 = vld [vmem:[%s1 + $0xd8] sm:$0xff]
      %v303 = vld [vmem:[%s1 + $0xe0] sm:$0xff]
      %v304 = vld [vmem:[%s1 + $0xe8] sm:$0xff]
      %v305 = vld [vmem:[%s1 + $0xf0] sm:$0xff]
      %v306 = vld [vmem:[%s1 + $0xf8] sm:$0xff]
      %v307 = vld [vmem:[%s1 + $0x100] sm:$0xff]
      %v308 = vld [vmem:[%s1 + $0x108] sm:$0xff]
      %v309 = vld [vmem:[%s1 + $0x110] sm:$0xff]
      %v310 = vld [vmem:[%s1 + $0x118] sm:$0xff]
      %v311 = vld [vmem:[%s1 + $0x120] sm:$0xff]
      %v312 = vld [vmem:[%s1 + $0x128] sm:$0xff]
      %v313 = vld [vmem:[%s1 + $0x130] sm:$0xff]
      %v314 = vld [vmem:[%s1 + $0x138] sm:$0xff]
      %v315 = vld [vmem:[%s1 + $0x140] sm:$0xff]
      %v316 = vld [vmem:[%s1 + $0x148] sm:$0xff]
      %v317 = vld [vmem:[%s1 + $0x150] sm:$0xff]
      %v318 = vld [vmem:[%s1 + $0x158] sm:$0xff]
      %v319 = vld [vmem:[%s1 + $0x160] sm:$0xff]
      %v320 = vld [vmem:[%s1 + $0x168] sm:$0xff]
      %v321 = vld [vmem:[%s1 + $0x170] sm:$0xff]
      %v322 = vld [vmem:[%s1 + $0x178] sm:$0xff]
      %v323 = vld [vmem:[%s1 + $0x180] sm:$0xff]
      %v324 = vld [vmem:[%s1 + $0x188] sm:$0xff]
      %v325 = vld [vmem:[%s1 + $0x190] sm:$0xff]
      %v326 = vld [vmem:[%s1 + $0x198] sm:$0xff]
      %v327 = vld [vmem:[%s1 + $0x1a0] sm:$0xff]
      %v328 = vld [vmem:[%s1 + $0x1a8] sm:$0xff]
      %v329 = vld [vmem:[%s1 + $0x1b0] sm:$0xff]
      %v330 = vld [vmem:[%s1 + $0x1b8] sm:$0xff]
      %v331 = vld [vmem:[%s1 + $0x1c0] sm:$0xff]
      %v332 = vld [vmem:[%s1 + $0x1c8] sm:$0xff]
      %v333 = vld [vmem:[%s1 + $0x1d0] sm:$0xff]
      %v334 = vld [vmem:[%s1 + $0x1d8] sm:$0xff]
      %v335 = vld [vmem:[%s1 + $0x1e0] sm:$0xff]
      %v336 = vld [vmem:[%s1 + $0x1e8] sm:$0xff]
      %v337 = vld [vmem:[%s1 + $0x1f0] sm:$0xff]
      %v338 = vld [vmem:[%s1 + $0x1f8] sm:$0xff]
      %v339 = vld [vmem:[%s1 + $0x200] sm:$0xff]
      %v340 = vld [vmem:[%s1 + $0x208] sm:$0xff]
      %v341 = vld [vmem:[%s1 + $0x210] sm:$0xff]
      %v342 = vld [vmem:[%s1 + $0x218] sm:$0xff]
      %v343 = vld [vmem:[%s1 + $0x220] sm:$0xff]
      %v344 = vld [vmem:[%s1 + $0x228] sm:$0xff]
      %v345 = vld [vmem:[%s1 + $0x230] sm:$0xff]
      %v346 = vld [vmem:[%s1 + $0x238] sm:$0xff]
      %v347 = vld [vmem:[%s1 + $0x240] sm:$0xff]
      %v348 = vld [vmem:[%s1 + $0x248] sm:$0xff]
      %v349 = vld [vmem:[%s1 + $0x250] sm:$0xff]
      %v350 = vld [vmem:[%s1 + $0x258] sm:$0xff]
      %v351 = vld [vmem:[%s1 + $0x260] sm:$0xff]
      %v352 = vld [vmem:[%s1 + $0x268] sm:$0xff]
      %v353 = vld [vmem:[%s1 + $0x270] sm:$0xff]
      %v354 = vld [vmem:[%s1 + $0x278] sm:$0xff]
      %v355 = vld [vmem:[%s1 + $0x280] sm:$0xff]
      %v356 = vld [vmem:[%s1 + $0x288] sm:$0xff]
      %v357 = vld [vmem:[%s1 + $0x290] sm:$0xff]
      %v358 = vld [vmem:[%s1 + $0x298] sm:$0xff]
      %v359 = vld [vmem:[%s1 + $0x2a0] sm:$0xff]
      %v360 = vld [vmem:[%s1 + $0x2a8] sm:$0xff]
      %v361 = vld [vmem:[%s1 + $0x2b0] sm:$0xff]
      %v362 = vld [vmem:[%s1 + $0x2b8] sm:$0xff]
      %v363 = vld [vmem:[%s1 + $0x2c0] sm:$0xff]
      %v364 = vld [vmem:[%s1 + $0x2c8] sm:$0xff]
      %v365 = vld [vmem:[%s1 + $0x2d0] sm:$0xff]
      %v366 = vld [vmem:[%s1 + $0x2d8] sm:$0xff]
      %v367 = vld [vmem:[%s1 + $0x2e0] sm:$0xff]
      %v368 = vld [vmem:[%s1 + $0x2e8] sm:$0xff]
      %v369 = vld [vmem:[%s1 + $0x2f0] sm:$0xff]
      %v370 = vld [vmem:[%s1 + $0x2f8] sm:$0xff]
      %v371 = vld [vmem:[%s1 + $0x300] sm:$0xff]
      %v372 = vld [vmem:[%s1 + $0x308] sm:$0xff]
      %v373 = vld [vmem:[%s1 + $0x310] sm:$0xff]
      %v374 = vld [vmem:[%s1 + $0x318] sm:$0xff]
      %v375 = vld [vmem:[%s1 + $0x320] sm:$0xff]
      %v376 = vld [vmem:[%s1 + $0x328] sm:$0xff]
      %v377 = vld [vmem:[%s1 + $0x330] sm:$0xff]
      %v378 = vld [vmem:[%s1 + $0x338] sm:$0xff]
      %v379 = vld [vmem:[%s1 + $0x340] sm:$0xff]
      %v380 = vld [vmem:[%s1 + $0x348] sm:$0xff]
      %v381 = vld [vmem:[%s1 + $0x350] sm:$0xff]
      %v382 = vld [vmem:[%s1 + $0x358] sm:$0xff]
      %v383 = vld [vmem:[%s1 + $0x360] sm:$0xff]
      %v384 = vld [vmem:[%s1 + $0x368] sm:$0xff]
      %v385 = vld [vmem:[%s1 + $0x370] sm:$0xff]
      %v386 = vld [vmem:[%s1 + $0x378] sm:$0xff]
      %v387 = vld [vmem:[%s1 + $0x380] sm:$0xff]
      %v388 = vld [vmem:[%s1 + $0x388] sm:$0xff]
      %v389 = vld [vmem:[%s1 + $0x390] sm:$0xff]
      %v390 = vld [vmem:[%s1 + $0x398] sm:$0xff]
      %v391 = vld [vmem:[%s1 + $0x3a0] sm:$0xff]
      %v392 = vld [vmem:[%s1 + $0x3a8] sm:$0xff]
      %v393 = vld [vmem:[%s1 + $0x3b0] sm:$0xff]
      %v394 = vld [vmem:[%s1 + $0x3b8] sm:$0xff]
      %v395 = vld [vmem:[%s1 + $0x3c0] sm:$0xff]
      %v396 = vld [vmem:[%s1 + $0x3c8] sm:$0xff]
      %v397 = vld [vmem:[%s1 + $0x3d0] sm:$0xff]
      %v398 = vld [vmem:[%s1 + $0x3d8] sm:$0xff]
      %v399 = vld [vmem:[%s1 + $0x3e0] sm:$0xff]
      %v400 = vld [vmem:[%s1 + $0x3e8] sm:$0xff]
      %v401 = vld [vmem:[%s1 + $0x3f0] sm:$0xff]
      %v402 = vld [vmem:[%s1 + $0x3f8] sm:$0xff]
      %v403 = vld [vmem:[%s1 + $0x400] sm:$0xff]
      %v404 = vld [vmem:[%s1 + $0x408] sm:$0xff]
      %v405 = vld [vmem:[%s1 + $0x410] sm:$0xff]
      %v406 = vld [vmem:[%s1 + $0x418] sm:$0xff]
      %v407 = vld [vmem:[%s1 + $0x420] sm:$0xff]
      %v408 = vld [vmem:[%s1 + $0x428] sm:$0xff]
      %v409 = vld [vmem:[%s1 + $0x430] sm:$0xff]
      %v410 = vld [vmem:[%s1 + $0x438] sm:$0xff]
      %v411 = vld [vmem:[%s1 + $0x440] sm:$0xff]
      %v412 = vld [vmem:[%s1 + $0x448] sm:$0xff]
      %v413 = vld [vmem:[%s1 + $0x450] sm:$0xff]
      %v414 = vld [vmem:[%s1 + $0x458] sm:$0xff]
      %v415 = vld [vmem:[%s1 + $0x460] sm:$0xff]
      %v416 = vld [vmem:[%s1 + $0x468] sm:$0xff]
      %v417 = vld [vmem:[%s1 + $0x470] sm:$0xff]
      %v418 = vld [vmem:[%s1 + $0x478] sm:$0xff]
      %v419 = vld [vmem:[%s1 + $0x480] sm:$0xff]
      %v420 = vld [vmem:[%s1 + $0x488] sm:$0xff]
      %v421 = vld [vmem:[%s1 + $0x490] sm:$0xff]
      %v422 = vld [vmem:[%s1 + $0x498] sm:$0xff]
      %v423 = vld [vmem:[%s1 + $0x4a0] sm:$0xff]
      %v424 = vld [vmem:[%s1 + $0x4a8] sm:$0xff]
      %v425 = vld [vmem:[%s1 + $0x4b0] sm:$0xff]
      %v426 = vld [vmem:[%s1 + $0x4b8] sm:$0xff]
      %v427 = vld [vmem:[%s1 + $0x4c0] sm:$0xff]
      %v428 = vld [vmem:[%s1 + $0x4c8] sm:$0xff]
      %v429 = vld [vmem:[%s1 + $0x4d0] sm:$0xff]
      %v430 = vld [vmem:[%s1 + $0x4d8] sm:$0xff]
      %v431 = vld [vmem:[%s1 + $0x4e0] sm:$0xff]
      %v432 = vld [vmem:[%s1 + $0x4e8] sm:$0xff]
      %v433 = vld [vmem:[%s1 + $0x4f0] sm:$0xff]
      %v434 = vld [vmem:[%s1 + $0x4f8] sm:$0xff]
      %v435 = vld [vmem:[%s1 + $0x500] sm:$0xff]
      %v436 = vld [vmem:[%s1 + $0x508] sm:$0xff]
      %v437 = vld [vmem:[%s1 + $0x510] sm:$0xff]
      %v438 = vld [vmem:[%s1 + $0x518] sm:$0xff]
      %v439 = vld [vmem:[%s1 + $0x520] sm:$0xff]
      %v440 = vld [vmem:[%s1 + $0x528] sm:$0xff]
      %v441 = vld [vmem:[%s1 + $0x530] sm:$0xff]
      %v442 = vld [vmem:[%s1 + $0x538] sm:$0xff]
      %v443 = vld [vmem:[%s1 + $0x540] sm:$0xff]
      %v444 = vld [vmem:[%s1 + $0x548] sm:$0xff]
      %v445 = vld [vmem:[%s1 + $0x550] sm:$0xff]
      %v446 = vld [vmem:[%s1 + $0x558] sm:$0xff]
      %v447 = vld [vmem:[%s1 + $0x560] sm:$0xff]
      %v448 = vld [vmem:[%s1 + $0x568] sm:$0xff]
      %v449 = vld [vmem:[%s1 + $0x570] sm:$0xff]
      %v450 = vld [vmem:[%s1 + $0x578] sm:$0xff]
      %v451 = vld [vmem:[%s1 + $0x580] sm:$0xff]
      %v452 = vld [vmem:[%s1 + $0x588] sm:$0xff]
      %v453 = vld [vmem:[%s1 + $0x590] sm:$0xff]
      %v454 = vld [vmem:[%s1 + $0x598] sm:$0xff]
      %v455 = vld [vmem:[%s1 + $0x5a0] sm:$0xff]
      %v456 = vld [vmem:[%s1 + $0x5a8] sm:$0xff]
      %v457 = vld [vmem:[%s1 + $0x5b0] sm:$0xff]
      %v458 = vld [vmem:[%s1 + $0x5b8] sm:$0xff]
      %v459 = vld [vmem:[%s1 + $0x5c0] sm:$0xff]
      %v460 = vld [vmem:[%s1 + $0x5c8] sm:$0xff]
      %v461 = vld [vmem:[%s1 + $0x5d0] sm:$0xff]
      %v462 = vld [vmem:[%s1 + $0x5d8] sm:$0xff]
      %v463 = vld [vmem:[%s1 + $0x5e0] sm:$0xff]
      %v464 = vld [vmem:[%s1 + $0x5e8] sm:$0xff]
      %v465 = vld [vmem:[%s1 + $0x5f0] sm:$0xff]
      %v466 = vld [vmem:[%s1 + $0x5f8] sm:$0xff]
      %v467 = vld [vmem:[%s1 + $0x600] sm:$0xff]
      %v468 = vld [vmem:[%s1 + $0x608] sm:$0xff]
      %v469 = vld [vmem:[%s1 + $0x610] sm:$0xff]
      %v470 = vld [vmem:[%s1 + $0x618] sm:$0xff]
      %v471 = vld [vmem:[%s1 + $0x620] sm:$0xff]
      %v472 = vld [vmem:[%s1 + $0x628] sm:$0xff]
      %v473 = vld [vmem:[%s1 + $0x630] sm:$0xff]
      %v474 = vld [vmem:[%s1 + $0x638] sm:$0xff]
      %v475 = vld [vmem:[%s1 + $0x640] sm:$0xff]
      %v476 = vld [vmem:[%s1 + $0x648] sm:$0xff]
      %v477 = vld [vmem:[%s1 + $0x650] sm:$0xff]
      %v478 = vld [vmem:[%s1 + $0x658] sm:$0xff]
      %v479 = vld [vmem:[%s1 + $0x660] sm:$0xff]
      %v480 = vld [vmem:[%s1 + $0x668] sm:$0xff]
      %v481 = vld [vmem:[%s1 + $0x670] sm:$0xff]
      %v482 = vld [vmem:[%s1 + $0x678] sm:$0xff]
      %v483 = vld [vmem:[%s1 + $0x680] sm:$0xff]
      %v484 = vld [vmem:[%s1 + $0x688] sm:$0xff]
      %v485 = vld [vmem:[%s1 + $0x690] sm:$0xff]
      %v486 = vld [vmem:[%s1 + $0x698] sm:$0xff]
      %v487 = vld [vmem:[%s1 + $0x6a0] sm:$0xff]
      %v488 = vld [vmem:[%s1 + $0x6a8] sm:$0xff]
      %v489 = vld [vmem:[%s1 + $0x6b0] sm:$0xff]
      %v490 = vld [vmem:[%s1 + $0x6b8] sm:$0xff]
      %v491 = vld [vmem:[%s1 + $0x6c0] sm:$0xff]
      %v492 = vld [vmem:[%s1 + $0x6c8] sm:$0xff]
      %v493 = vld [vmem:[%s1 + $0x6d0] sm:$0xff]
      %v494 = vld [vmem:[%s1 + $0x6d8] sm:$0xff]
      %v495 = vld [vmem:[%s1 + $0x6e0] sm:$0xff]
      %v496 = vld [vmem:[%s1 + $0x6e8] sm:$0xff]
      %v497 = vld [vmem:[%s1 + $0x6f0] sm:$0xff]
      %v498 = vld [vmem:[%s1 + $0x6f8] sm:$0xff]
      %v499 = vld [vmem:[%s1 + $0x700] sm:$0xff]
      %v500 = vld [vmem:[%s1 + $0x708] sm:$0xff]
      %v501 = vld [vmem:[%s1 + $0x710] sm:$0xff]
      %v502 = vld [vmem:[%s1 + $0x718] sm:$0xff]
      %v503 = vld [vmem:[%s1 + $0x720] sm:$0xff]
      %v504 = vld [vmem:[%s1 + $0x728] sm:$0xff]
      %v505 = vld [vmem:[%s1 + $0x730] sm:$0xff]
      %v506 = vld [vmem:[%s1 + $0x738] sm:$0xff]
      %v507 = vld [vmem:[%s1 + $0x740] sm:$0xff]
      %v508 = vld [vmem:[%s1 + $0x748] sm:$0xff]
      %v509 = vld [vmem:[%s1 + $0x750] sm:$0xff]
      %v510 = vld [vmem:[%s1 + $0x758] sm:$0xff]
      %v511 = vld [vmem:[%s1 + $0x760] sm:$0xff]
      %v512 = vld [vmem:[%s1 + $0x768] sm:$0xff]
      %v513 = vld [vmem:[%s1 + $0x770] sm:$0xff]
      %v514 = vld [vmem:[%s1 + $0x778] sm:$0xff]
      %v515 = vld [vmem:[%s1 + $0x780] sm:$0xff]
      %v516 = vld [vmem:[%s1 + $0x788] sm:$0xff]
      %v517 = vld [vmem:[%s1 + $0x790] sm:$0xff]
      %v518 = vld [vmem:[%s1 + $0x798] sm:$0xff]
      %v519 = vld [vmem:[%s1 + $0x7a0] sm:$0xff]
      %v520 = vld [vmem:[%s1 + $0x7a8] sm:$0xff]
      %v521 = vld [vmem:[%s1 + $0x7b0] sm:$0xff]
      %v522 = vld [vmem:[%s1 + $0x7b8] sm:$0xff]
      %v523 = vld [vmem:[%s1 + $0x7c0] sm:$0xff]
      %v524 = vld [vmem:[%s1 + $0x7c8] sm:$0xff]
      %v525 = vld [vmem:[%s1 + $0x7d0] sm:$0xff]
      %v526 = vld [vmem:[%s1 + $0x7d8] sm:$0xff]
      %v527 = vld [vmem:[%s1 + $0x7e0] sm:$0xff]
      %v528 = vld [vmem:[%s1 + $0x7e8] sm:$0xff]
      %v529 = vld [vmem:[%s1 + $0x7f0] sm:$0xff]
      %v530 = vld [vmem:[%s1 + $0x7f8] sm:$0xff]
      %v531 = vld [vmem:[%s1 + $0x800] sm:$0xff]
      %v532 = vld [vmem:[%s1 + $0x808] sm:$0xff]
      %v533 = vld [vmem:[%s1 + $0x810] sm:$0xff]
      %v534 = vld [vmem:[%s1 + $0x818] sm:$0xff]
      %v535 = vld [vmem:[%s1 + $0x820] sm:$0xff]
      %v536 = vld [vmem:[%s1 + $0x828] sm:$0xff]
      %v537 = vld [vmem:[%s1 + $0x830] sm:$0xff]
      %v538 = vld [vmem:[%s1 + $0x838] sm:$0xff]
      %v539 = vld [vmem:[%s1 + $0x840] sm:$0xff]
      %v540 = vld [vmem:[%s1 + $0x848] sm:$0xff]
      %v541 = vld [vmem:[%s1 + $0x850] sm:$0xff]
      %v542 = vld [vmem:[%s1 + $0x858] sm:$0xff]
      %v543 = vld [vmem:[%s1 + $0x860] sm:$0xff]
      %v544 = vld [vmem:[%s1 + $0x868] sm:$0xff]
      %v545 = vld [vmem:[%s1 + $0x870] sm:$0xff]
      %v546 = vld [vmem:[%s1 + $0x878] sm:$0xff]
      %v547 = vld [vmem:[%s1 + $0x880] sm:$0xff]
      %v548 = vld [vmem:[%s1 + $0x888] sm:$0xff]
      %v549 = vld [vmem:[%s1 + $0x890] sm:$0xff]
      %v550 = vld [vmem:[%s1 + $0x898] sm:$0xff]
      %v551 = vld [vmem:[%s1 + $0x8a0] sm:$0xff]
      %v552 = vld [vmem:[%s1 + $0x8a8] sm:$0xff]
      %v553 = vld [vmem:[%s1 + $0x8b0] sm:$0xff]
      %v554 = vld [vmem:[%s1 + $0x8b8] sm:$0xff]
      %v555 = vld [vmem:[%s1 + $0x8c0] sm:$0xff]
      %v556 = vld [vmem:[%s1 + $0x8c8] sm:$0xff]
      %v557 = vld [vmem:[%s1 + $0x8d0] sm:$0xff]
      %v558 = vld [vmem:[%s1 + $0x8d8] sm:$0xff]
      %v559 = vld [vmem:[%s1 + $0x8e0] sm:$0xff]
      %v560 = vld [vmem:[%s1 + $0x8e8] sm:$0xff]
      %v561 = vld [vmem:[%s1 + $0x8f0] sm:$0xff]
      %v562 = vld [vmem:[%s1 + $0x8f8] sm:$0xff]
      %v563 = vld [vmem:[%s1 + $0x900] sm:$0xff]
      %v564 = vld [vmem:[%s1 + $0x908] sm:$0xff]
      %v565 = vld [vmem:[%s1 + $0x910] sm:$0xff]
      %v566 = vld [vmem:[%s1 + $0x918] sm:$0xff]
      %v567 = vld [vmem:[%s1 + $0x920] sm:$0xff]
      %v568 = vld [vmem:[%s1 + $0x928] sm:$0xff]
      %v569 = vld [vmem:[%s1 + $0x930] sm:$0xff]
      %v570 = vld [vmem:[%s1 + $0x938] sm:$0xff]
      %v571 = vld [vmem:[%s1 + $0x940] sm:$0xff]
      %v572 = vld [vmem:[%s1 + $0x948] sm:$0xff]
      %v573 = vld [vmem:[%s1 + $0x950] sm:$0xff]
      %v574 = vld [vmem:[%s1 + $0x958] sm:$0xff]
      %v575 = vld [vmem:[%s1 + $0x960] sm:$0xff]
      %v576 = vld [vmem:[%s1 + $0x968] sm:$0xff]
      %v577 = vld [vmem:[%s1 + $0x970] sm:$0xff]
      %v578 = vld [vmem:[%s1 + $0x978] sm:$0xff]
      %v579 = vld [vmem:[%s1 + $0x980] sm:$0xff]
      %v580 = vld [vmem:[%s1 + $0x988] sm:$0xff]
      %v581 = vld [vmem:[%s1 + $0x990] sm:$0xff]
      %v582 = vld [vmem:[%s1 + $0x998] sm:$0xff]
      %v583 = vld [vmem:[%s1 + $0x9a0] sm:$0xff]
      %v584 = vld [vmem:[%s1 + $0x9a8] sm:$0xff]
      %v585 = vld [vmem:[%s1 + $0x9b0] sm:$0xff]
      %v586 = vld [vmem:[%s1 + $0x9b8] sm:$0xff]
      %v587 = vld [vmem:[%s1 + $0x9c0] sm:$0xff]
      %v588 = vld [vmem:[%s1 + $0x9c8] sm:$0xff]
      %v589 = vld [vmem:[%s1 + $0x9d0] sm:$0xff]
      %v590 = vld [vmem:[%s1 + $0x9d8] sm:$0xff]
      %v591 = vld [vmem:[%s1 + $0x9e0] sm:$0xff]
      %v592 = vld [vmem:[%s1 + $0x9e8] sm:$0xff]
      %v593 = vld [vmem:[%s1 + $0x9f0] sm:$0xff]
      %v594 = vld [vmem:[%s1 + $0x9f8] sm:$0xff]
      %v595 = vld [vmem:[%s1 + $0xa00] sm:$0xff]
      %v596 = vld [vmem:[%s1 + $0xa08] sm:$0xff]
      %v597 = vld [vmem:[%s1 + $0xa10] sm:$0xff]
      %v598 = vld [vmem:[%s1 + $0xa18] sm:$0xff]
      %v599 = vld [vmem:[%s1 + $0xa20] sm:$0xff]
      %v600 = vld [vmem:[%s1 + $0xa28] sm:$0xff]
      %v601 = vld [vmem:[%s1 + $0xa30] sm:$0xff]
      %v602 = vld [vmem:[%s1 + $0xa38] sm:$0xff]
      %v603 = vld [vmem:[%s1 + $0xa40] sm:$0xff]
      %v604 = vld [vmem:[%s1 + $0xa48] sm:$0xff]
      %v605 = vld [vmem:[%s1 + $0xa50] sm:$0xff]
      %v606 = vld [vmem:[%s1 + $0xa58] sm:$0xff]
      %v607 = vld [vmem:[%s1 + $0xa60] sm:$0xff]
      %v608 = vld [vmem:[%s1 + $0xa68] sm:$0xff]
      %v609 = vld [vmem:[%s1 + $0xa70] sm:$0xff]
      %v610 = vld [vmem:[%s1 + $0xa78] sm:$0xff]
      %v611 = vld [vmem:[%s1 + $0xa80] sm:$0xff]
      %v612 = vld [vmem:[%s1 + $0xa88] sm:$0xff]
      %v613 = vld [vmem:[%s1 + $0xa90] sm:$0xff]
      %v614 = vld [vmem:[%s1 + $0xa98] sm:$0xff]
      %v615 = vld [vmem:[%s1 + $0xaa0] sm:$0xff]
      %v616 = vld [vmem:[%s1 + $0xaa8] sm:$0xff]
      %v617 = vld [vmem:[%s1 + $0xab0] sm:$0xff]
      %v618 = vld [vmem:[%s1 + $0xab8] sm:$0xff]
      %v619 = vld [vmem:[%s1 + $0xac0] sm:$0xff]
      %v620 = vld [vmem:[%s1 + $0xac8] sm:$0xff]
      %v621 = vld [vmem:[%s1 + $0xad0] sm:$0xff]
      %v622 = vld [vmem:[%s1 + $0xad8] sm:$0xff]
      %v623 = vld [vmem:[%s1 + $0xae0] sm:$0xff]
      %v624 = vld [vmem:[%s1 + $0xae8] sm:$0xff]
      %v625 = vld [vmem:[%s1 + $0xaf0] sm:$0xff]
      %v626 = vld [vmem:[%s1 + $0xaf8] sm:$0xff]
      %v627 = vld [vmem:[%s1 + $0xb00] sm:$0xff]
      %v628 = vld [vmem:[%s1 + $0xb08] sm:$0xff]
      %v629 = vld [vmem:[%s1 + $0xb10] sm:$0xff]
      %v630 = vld [vmem:[%s1 + $0xb18] sm:$0xff]
      %v631 = vld [vmem:[%s1 + $0xb20] sm:$0xff]
      %v632 = vld [vmem:[%s1 + $0xb28] sm:$0xff]
      %v633 = vld [vmem:[%s1 + $0xb30] sm:$0xff]
      %v634 = vld [vmem:[%s1 + $0xb38] sm:$0xff]
      %v635 = vld [vmem:[%s1 + $0xb40] sm:$0xff]
      %v636 = vld [vmem:[%s1 + $0xb48] sm:$0xff]
      %v637 = vld [vmem:[%s1 + $0xb50] sm:$0xff]
      %v638 = vld [vmem:[%s1 + $0xb58] sm:$0xff]
      %v639 = vld [vmem:[%s1 + $0xb60] sm:$0xff]
      %v640 = vld [vmem:[%s1 + $0xb68] sm:$0xff]
      %v641 = vld [vmem:[%s1 + $0xb70] sm:$0xff]
      %v642 = vld [vmem:[%s1 + $0xb78] sm:$0xff]
      %v643 = vld [vmem:[%s1 + $0xb80] sm:$0xff]
      %v644 = vld [vmem:[%s1 + $0xb88] sm:$0xff]
      %v645 = vld [vmem:[%s1 + $0xb90] sm:$0xff]
      %v646 = vld [vmem:[%s1 + $0xb98] sm:$0xff]
      %v647 = vld [vmem:[%s1 + $0xba0] sm:$0xff]
      %v648 = vld [vmem:[%s1 + $0xba8] sm:$0xff]
      %v649 = vld [vmem:[%s1 + $0xbb0] sm:$0xff]
      %v650 = vld [vmem:[%s1 + $0xbb8] sm:$0xff]
      %v651 = vld [vmem:[%s1 + $0xbc0] sm:$0xff]
      %v652 = vld [vmem:[%s1 + $0xbc8] sm:$0xff]
      %v653 = vld [vmem:[%s1 + $0xbd0] sm:$0xff]
      %v654 = vld [vmem:[%s1 + $0xbd8] sm:$0xff]
      %v655 = vld [vmem:[%s1 + $0xbe0] sm:$0xff]
      %v656 = vld [vmem:[%s1 + $0xbe8] sm:$0xff]
      %v657 = vld [vmem:[%s1 + $0xbf0] sm:$0xff]
      %v658 = vld [vmem:[%s1 + $0xbf8] sm:$0xff]
      %v659 = vld [vmem:[%s1 + $0xc00] sm:$0xff]
      %v660 = vld [vmem:[%s1 + $0xc08] sm:$0xff]
      %v661 = vld [vmem:[%s1 + $0xc10] sm:$0xff]
      %v662 = vld [vmem:[%s1 + $0xc18] sm:$0xff]
      %v663 = vld [vmem:[%s1 + $0xc20] sm:$0xff]
      %v664 = vld [vmem:[%s1 + $0xc28] sm:$0xff]
      %v665 = vld [vmem:[%s1 + $0xc30] sm:$0xff]
      %v666 = vld [vmem:[%s1 + $0xc38] sm:$0xff]
      %v667 = vld [vmem:[%s1 + $0xc40] sm:$0xff]
      %v668 = vld [vmem:[%s1 + $0xc48] sm:$0xff]
      %v669 = vld [vmem:[%s1 + $0xc50] sm:$0xff]
      %v670 = vld [vmem:[%s1 + $0xc58] sm:$0xff]
      %v671 = vld [vmem:[%s1 + $0xc60] sm:$0xff]
      %v672 = vld [vmem:[%s1 + $0xc68] sm:$0xff]
      %v673 = vld [vmem:[%s1 + $0xc70] sm:$0xff]
      %v674 = vld [vmem:[%s1 + $0xc78] sm:$0xff]
      %v675 = vld [vmem:[%s1 + $0xc80] sm:$0xff]
      %v676 = vld [vmem:[%s1 + $0xc88] sm:$0xff]
      %v677 = vld [vmem:[%s1 + $0xc90] sm:$0xff]
      %v678 = vld [vmem:[%s1 + $0xc98] sm:$0xff]
      %v679 = vld [vmem:[%s1 + $0xca0] sm:$0xff]
      %v680 = vld [vmem:[%s1 + $0xca8] sm:$0xff]
      %v681 = vld [vmem:[%s1 + $0xcb0] sm:$0xff]
      %v682 = vld [vmem:[%s1 + $0xcb8] sm:$0xff]
      %v683 = vld [vmem:[%s1 + $0xcc0] sm:$0xff]
      %v684 = vld [vmem:[%s1 + $0xcc8] sm:$0xff]
      %v685 = vld [vmem:[%s1 + $0xcd0] sm:$0xff]
      %v686 = vld [vmem:[%s1 + $0xcd8] sm:$0xff]
      %v687 = vld [vmem:[%s1 + $0xce0] sm:$0xff]
      %v688 = vld [vmem:[%s1 + $0xce8] sm:$0xff]
      %v689 = vld [vmem:[%s1 + $0xcf0] sm:$0xff]
      %v690 = vld [vmem:[%s1 + $0xcf8] sm:$0xff]
      %v691 = vld [vmem:[%s1 + $0xd00] sm:$0xff]
      %v692 = vld [vmem:[%s1 + $0xd08] sm:$0xff]
      %v693 = vld [vmem:[%s1 + $0xd10] sm:$0xff]
      %v694 = vld [vmem:[%s1 + $0xd18] sm:$0xff]
      %v695 = vld [vmem:[%s1 + $0xd20] sm:$0xff]
      %v696 = vld [vmem:[%s1 + $0xd28] sm:$0xff]
      %v697 = vld [vmem:[%s1 + $0xd30] sm:$0xff]
      %v698 = vld [vmem:[%s1 + $0xd38] sm:$0xff]
      %v699 = vld [vmem:[%s1 + $0xd40] sm:$0xff]
      %v700 = vld [vmem:[%s1 + $0xd48] sm:$0xff]
      %v701 = vld [vmem:[%s1 + $0xd50] sm:$0xff]
      %v702 = vld [vmem:[%s1 + $0xd58] sm:$0xff]
      %v703 = vld [vmem:[%s1 + $0xd60] sm:$0xff]
      %v704 = vld [vmem:[%s1 + $0xd68] sm:$0xff]
      %v705 = vld [vmem:[%s1 + $0xd70] sm:$0xff]
      %v706 = vld [vmem:[%s1 + $0xd78] sm:$0xff]
      %v707 = vld [vmem:[%s1 + $0xd80] sm:$0xff]
      %v708 = vld [vmem:[%s1 + $0xd88] sm:$0xff]
      %v709 = vld [vmem:[%s1 + $0xd90] sm:$0xff]
      %v710 = vld [vmem:[%s1 + $0xd98] sm:$0xff]
      %v711 = vld [vmem:[%s1 + $0xda0] sm:$0xff]
      %v712 = vld [vmem:[%s1 + $0xda8] sm:$0xff]
      %v713 = vld [vmem:[%s1 + $0xdb0] sm:$0xff]
      %v714 = vld [vmem:[%s1 + $0xdb8] sm:$0xff]
      %v715 = vld [vmem:[%s1 + $0xdc0] sm:$0xff]
      %v716 = vld [vmem:[%s1 + $0xdc8] sm:$0xff]
      %v717 = vld [vmem:[%s1 + $0xdd0] sm:$0xff]
      %v718 = vld [vmem:[%s1 + $0xdd8] sm:$0xff]
      %v719 = vld [vmem:[%s1 + $0xde0] sm:$0xff]
      %v720 = vld [vmem:[%s1 + $0xde8] sm:$0xff]
      %v721 = vld [vmem:[%s1 + $0xdf0] sm:$0xff]
      %v722 = vld [vmem:[%s1 + $0xdf8] sm:$0xff]
      %v723 = vld [vmem:[%s1 + $0xe00] sm:$0xff]
      %v724 = vld [vmem:[%s1 + $0xe08] sm:$0xff]
      %v725 = vld [vmem:[%s1 + $0xe10] sm:$0xff]
      %v726 = vld [vmem:[%s1 + $0xe18] sm:$0xff]
      %v727 = vld [vmem:[%s1 + $0xe20] sm:$0xff]
      %v728 = vld [vmem:[%s1 + $0xe28] sm:$0xff]
      %v729 = vld [vmem:[%s1 + $0xe30] sm:$0xff]
      %v730 = vld [vmem:[%s1 + $0xe38] sm:$0xff]
      %v731 = vld [vmem:[%s1 + $0xe40] sm:$0xff]
      %v732 = vld [vmem:[%s1 + $0xe48] sm:$0xff]
      %v733 = vld [vmem:[%s1 + $0xe50] sm:$0xff]
      %v734 = vld [vmem:[%s1 + $0xe58] sm:$0xff]
      %v735 = vld [vmem:[%s1 + $0xe60] sm:$0xff]
      %v736 = vld [vmem:[%s1 + $0xe68] sm:$0xff]
      %v737 = vld [vmem:[%s1 + $0xe70] sm:$0xff]
      %v738 = vld [vmem:[%s1 + $0xe78] sm:$0xff]
      %v739 = vld [vmem:[%s1 + $0xe80] sm:$0xff]
      %v740 = vld [vmem:[%s1 + $0xe88] sm:$0xff]
      %v741 = vld [vmem:[%s1 + $0xe90] sm:$0xff]
      %v742 = vld [vmem:[%s1 + $0xe98] sm:$0xff]
      %v743 = vld [vmem:[%s1 + $0xea0] sm:$0xff]
      %v744 = vld [vmem:[%s1 + $0xea8] sm:$0xff]
      %v745 = vld [vmem:[%s1 + $0xeb0] sm:$0xff]
      %v746 = vld [vmem:[%s1 + $0xeb8] sm:$0xff]
      %v747 = vld [vmem:[%s1 + $0xec0] sm:$0xff]
      %v748 = vld [vmem:[%s1 + $0xec8] sm:$0xff]
      %v749 = vld [vmem:[%s1 + $0xed0] sm:$0xff]
      %v750 = vld [vmem:[%s1 + $0xed8] sm:$0xff]
      %v751 = vld [vmem:[%s1 + $0xee0] sm:$0xff]
      %v752 = vld [vmem:[%s1 + $0xee8] sm:$0xff]
      %v753 = vld [vmem:[%s1 + $0xef0] sm:$0xff]
      %v754 = vld [vmem:[%s1 + $0xef8] sm:$0xff]
      %v755 = vld [vmem:[%s1 + $0xf00] sm:$0xff]
      %v756 = vld [vmem:[%s1 + $0xf08] sm:$0xff]
      %v757 = vld [vmem:[%s1 + $0xf10] sm:$0xff]
      %v758 = vld [vmem:[%s1 + $0xf18] sm:$0xff]
      %v759 = vld [vmem:[%s1 + $0xf20] sm:$0xff]
      %v760 = vld [vmem:[%s1 + $0xf28] sm:$0xff]
      %v761 = vld [vmem:[%s1 + $0xf30] sm:$0xff]
      %v762 = vld [vmem:[%s1 + $0xf38] sm:$0xff]
      %v763 = vld [vmem:[%s1 + $0xf40] sm:$0xff]
      %v764 = vld [vmem:[%s1 + $0xf48] sm:$0xff]
      %v765 = vld [vmem:[%s1 + $0xf50] sm:$0xff]
      %v766 = vld [vmem:[%s1 + $0xf58] sm:$0xff]
      %v767 = vld [vmem:[%s1 + $0xf60] sm:$0xff]
      %v768 = vld [vmem:[%s1 + $0xf68] sm:$0xff]
      %v769 = vld [vmem:[%s1 + $0xf70] sm:$0xff]
      %v770 = vld [vmem:[%s1 + $0xf78] sm:$0xff]
      %v771 = vld [vmem:[%s1 + $0xf80] sm:$0xff]
      %v772 = vld [vmem:[%s1 + $0xf88] sm:$0xff]
      %v773 = vld [vmem:[%s1 + $0xf90] sm:$0xff]
      %v774 = vld [vmem:[%s1 + $0xf98] sm:$0xff]
      %v775 = vld [vmem:[%s1 + $0xfa0] sm:$0xff]
      %v776 = vld [vmem:[%s1 + $0xfa8] sm:$0xff]
      %v777 = vld [vmem:[%s1 + $0xfb0] sm:$0xff]
      %v778 = vld [vmem:[%s1 + $0xfb8] sm:$0xff]
      %v779 = vld [vmem:[%s1 + $0xfc0] sm:$0xff]
      %v780 = vld [vmem:[%s1 + $0xfc8] sm:$0xff]
      %v781 = vld [vmem:[%s1 + $0xfd0] sm:$0xff]
      %v782 = vld [vmem:[%s1 + $0xfd8] sm:$0xff]
      %v783 = vld [vmem:[%s1 + $0xfe0] sm:$0xff]
      %v784 = vld [vmem:[%s1 + $0xfe8] sm:$0xff]
      %v785 = vld [vmem:[%s1 + $0xff0] sm:$0xff]
      %v786 = vld [vmem:[%s1 + $0xff8] sm:$0xff]
      %v787 = vld [vmem:[%s1 + $0x1000] sm:$0xff]
      %v788 = vld [vmem:[%s1 + $0x1008] sm:$0xff]
      %v789 = vld [vmem:[%s1 + $0x1010] sm:$0xff]
      %v790 = vld [vmem:[%s1 + $0x1018] sm:$0xff]
      %v791 = vld [vmem:[%s1 + $0x1020] sm:$0xff]
      %v792 = vld [vmem:[%s1 + $0x1028] sm:$0xff]
      %v793 = vld [vmem:[%s1 + $0x1030] sm:$0xff]
      %v794 = vld [vmem:[%s1 + $0x1038] sm:$0xff]
      %v795 = vld [vmem:[%s1 + $0x1040] sm:$0xff]
      %v796 = vld [vmem:[%s1 + $0x1048] sm:$0xff]
      %v797 = vld [vmem:[%s1 + $0x1050] sm:$0xff]
      %v798 = vld [vmem:[%s1 + $0x1058] sm:$0xff]
      %v799 = vld [vmem:[%s1 + $0x1060] sm:$0xff]
      %v800 = vld [vmem:[%s1 + $0x1068] sm:$0xff]
      %v801 = vld [vmem:[%s1 + $0x1070] sm:$0xff]
      %v802 = vld [vmem:[%s1 + $0x1078] sm:$0xff]
      %v803 = vld [vmem:[%s1 + $0x1080] sm:$0xff]
      %v804 = vld [vmem:[%s1 + $0x1088] sm:$0xff]
      %v805 = vld [vmem:[%s1 + $0x1090] sm:$0xff]
      %v806 = vld [vmem:[%s1 + $0x1098] sm:$0xff]
      %v807 = vld [vmem:[%s1 + $0x10a0] sm:$0xff]
      %v808 = vld [vmem:[%s1 + $0x10a8] sm:$0xff]
      %v809 = vld [vmem:[%s1 + $0x10b0] sm:$0xff]
      %v810 = vld [vmem:[%s1 + $0x10b8] sm:$0xff]
      %v811 = vld [vmem:[%s1 + $0x10c0] sm:$0xff]
      %v812 = vld [vmem:[%s1 + $0x10c8] sm:$0xff]
      %v813 = vld [vmem:[%s1 + $0x10d0] sm:$0xff]
      %v814 = vld [vmem:[%s1 + $0x10d8] sm:$0xff]
      %v815 = vld [vmem:[%s1 + $0x10e0] sm:$0xff]
      %v816 = vld [vmem:[%s1 + $0x10e8] sm:$0xff]
      %v817 = vld [vmem:[%s1 + $0x10f0] sm:$0xff]
      %v818 = vld [vmem:[%s1 + $0x10f8] sm:$0xff]
      %v819 = vld [vmem:[%s1 + $0x1100] sm:$0xff]
      %v820 = vld [vmem:[%s1 + $0x1108] sm:$0xff]
      %v821 = vld [vmem:[%s1 + $0x1110] sm:$0xff]
      %v822 = vld [vmem:[%s1 + $0x1118] sm:$0xff]
      %v823 = vld [vmem:[%s1 + $0x1120] sm:$0xff]
      %v824 = vld [vmem:[%s1 + $0x1128] sm:$0xff]
      %v825 = vld [vmem:[%s1 + $0x1130] sm:$0xff]
      %v826 = vld [vmem:[%s1 + $0x1138] sm:$0xff]
      %v827 = vld [vmem:[%s1 + $0x1140] sm:$0xff]
      %v828 = vld [vmem:[%s1 + $0x1148] sm:$0xff]
      %v829 = vld [vmem:[%s1 + $0x1150] sm:$0xff]
      %v830 = vld [vmem:[%s1 + $0x1158] sm:$0xff]
      %v831 = vld [vmem:[%s1 + $0x1160] sm:$0xff]
      %v832 = vld [vmem:[%s1 + $0x1168] sm:$0xff]
      %v833 = vld [vmem:[%s1 + $0x1170] sm:$0xff]
      %v834 = vld [vmem:[%s1 + $0x1178] sm:$0xff]
      %v835 = vld [vmem:[%s1 + $0x1180] sm:$0xff]
      %v836 = vld [vmem:[%s1 + $0x1188] sm:$0xff]
      %v837 = vld [vmem:[%s1 + $0x1190] sm:$0xff]
      %v838 = vld [vmem:[%s1 + $0x1198] sm:$0xff]
      %v839 = vld [vmem:[%s1 + $0x11a0] sm:$0xff]
      %v840 = vld [vmem:[%s1 + $0x11a8] sm:$0xff]
      %v841 = vld [vmem:[%s1 + $0x11b0] sm:$0xff]
      %v842 = vld [vmem:[%s1 + $0x11b8] sm:$0xff]
      %v843 = vld [vmem:[%s1 + $0x11c0] sm:$0xff]
      %v844 = vld [vmem:[%s1 + $0x11c8] sm:$0xff]
      %v845 = vld [vmem:[%s1 + $0x11d0] sm:$0xff]
      %v846 = vld [vmem:[%s1 + $0x11d8] sm:$0xff]
      %v847 = vld [vmem:[%s1 + $0x11e0] sm:$0xff]
      %v848 = vld [vmem:[%s1 + $0x11e8] sm:$0xff]
      %v849 = vld [vmem:[%s1 + $0x11f0] sm:$0xff]
      %v850 = vld [vmem:[%s1 + $0x11f8] sm:$0xff]
      %v851 = vld [vmem:[%s1 + $0x1200] sm:$0xff]
      %v852 = vld [vmem:[%s1 + $0x1208] sm:$0xff]
      %v853 = vld [vmem:[%s1 + $0x1210] sm:$0xff]
      %v854 = vld [vmem:[%s1 + $0x1218] sm:$0xff]
      %v855 = vld [vmem:[%s1 + $0x1220] sm:$0xff]
      %v856 = vld [vmem:[%s1 + $0x1228] sm:$0xff]
      %v857 = vld [vmem:[%s1 + $0x1230] sm:$0xff]
      %v858 = vld [vmem:[%s1 + $0x1238] sm:$0xff]
      %v859 = vld [vmem:[%s1 + $0x1240] sm:$0xff]
      %v860 = vld [vmem:[%s1 + $0x1248] sm:$0xff]
      %v861 = vld [vmem:[%s1 + $0x1250] sm:$0xff]
      %v862 = vld [vmem:[%s1 + $0x1258] sm:$0xff]
      %v863 = vld [vmem:[%s1 + $0x1260] sm:$0xff]
      %v864 = vld [vmem:[%s1 + $0x1268] sm:$0xff]
      %v865 = vld [vmem:[%s1 + $0x1270] sm:$0xff]
      %v866 = vld [vmem:[%s1 + $0x1278] sm:$0xff]
      %v867 = vld [vmem:[%s1 + $0x1280] sm:$0xff]
      %v868 = vld [vmem:[%s1 + $0x1288] sm:$0xff]
      %v869 = vld [vmem:[%s1 + $0x1290] sm:$0xff]
      %v870 = vld [vmem:[%s1 + $0x1298] sm:$0xff]
      %v871 = vld [vmem:[%s1 + $0x12a0] sm:$0xff]
      %v872 = vld [vmem:[%s1 + $0x12a8] sm:$0xff]
      %v873 = vld [vmem:[%s1 + $0x12b0] sm:$0xff]
      %v874 = vld [vmem:[%s1 + $0x12b8] sm:$0xff]
      %v875 = vld [vmem:[%s1 + $0x12c0] sm:$0xff]
      %v876 = vld [vmem:[%s1 + $0x12c8] sm:$0xff]
      %v877 = vld [vmem:[%s1 + $0x12d0] sm:$0xff]
      %v878 = vld [vmem:[%s1 + $0x12d8] sm:$0xff]
      %v879 = vld [vmem:[%s1 + $0x12e0] sm:$0xff]
      %v880 = vld [vmem:[%s1 + $0x12e8] sm:$0xff]
      %v881 = vld [vmem:[%s1 + $0x12f0] sm:$0xff]
      %v882 = vld [vmem:[%s1 + $0x12f8] sm:$0xff]
      %v883 = vld [vmem:[%s1 + $0x1300] sm:$0xff]
      %v884 = vld [vmem:[%s1 + $0x1308] sm:$0xff]
      %v885 = vld [vmem:[%s1 + $0x1310] sm:$0xff]
      %v886 = vld [vmem:[%s1 + $0x1318] sm:$0xff]
      %v887 = vld [vmem:[%s1 + $0x1320] sm:$0xff]
      %v888 = vld [vmem:[%s1 + $0x1328] sm:$0xff]
      %v889 = vld [vmem:[%s1 + $0x1330] sm:$0xff]
      %v890 = vld [vmem:[%s1 + $0x1338] sm:$0xff]
      %v891 = vld [vmem:[%s1 + $0x1340] sm:$0xff]
      %v892 = vld [vmem:[%s1 + $0x1348] sm:$0xff]
      %v893 = vld [vmem:[%s1 + $0x1350] sm:$0xff]
      %v894 = vld [vmem:[%s1 + $0x1358] sm:$0xff]
      %v895 = vld [vmem:[%s1 + $0x1360] sm:$0xff]
      %v896 = vld [vmem:[%s1 + $0x1368] sm:$0xff]
      %v897 = vld [vmem:[%s1 + $0x1370] sm:$0xff]
      %v898 = vld [vmem:[%s1 + $0x1378] sm:$0xff]
      %v899 = vld [vmem:[%s1 + $0x1380] sm:$0xff]
      %v900 = vld [vmem:[%s1 + $0x1388] sm:$0xff]
      %v901 = vld [vmem:[%s1 + $0x1390] sm:$0xff]
      %v902 = vld [vmem:[%s1 + $0x1398] sm:$0xff]
      %v903 = vld [vmem:[%s1 + $0x13a0] sm:$0xff]
      %v904 = vld [vmem:[%s1 + $0x13a8] sm:$0xff]
      %v905 = vld [vmem:[%s1 + $0x13b0] sm:$0xff]
      %v906 = vld [vmem:[%s1 + $0x13b8] sm:$0xff]
      %v907 = vld [vmem:[%s1 + $0x13c0] sm:$0xff]
      %v908 = vld [vmem:[%s1 + $0x13c8] sm:$0xff]
      %v909 = vld [vmem:[%s1 + $0x13d0] sm:$0xff]
      %v910 = vld [vmem:[%s1 + $0x13d8] sm:$0xff]
      %v911 = vld [vmem:[%s1 + $0x13e0] sm:$0xff]
      %v912 = vld [vmem:[%s1 + $0x13e8] sm:$0xff]
      %v913 = vld [vmem:[%s1 + $0x13f0] sm:$0xff]
      %v914 = vld [vmem:[%s1 + $0x13f8] sm:$0xff]
      %v915 = vld [vmem:[%s1 + $0x1400] sm:$0xff]
      %v916 = vld [vmem:[%s1 + $0x1408] sm:$0xff]
      %v917 = vld [vmem:[%s1 + $0x1410] sm:$0xff]
      %v918 = vld [vmem:[%s1 + $0x1418] sm:$0xff]
      %v919 = vld [vmem:[%s1 + $0x1420] sm:$0xff]
      %v920 = vld [vmem:[%s1 + $0x1428] sm:$0xff]
      %v921 = vld [vmem:[%s1 + $0x1430] sm:$0xff]
      %v922 = vld [vmem:[%s1 + $0x1438] sm:$0xff]
      %v923 = vld [vmem:[%s1 + $0x1440] sm:$0xff]
      %v924 = vld [vmem:[%s1 + $0x1448] sm:$0xff]
      %v925 = vld [vmem:[%s1 + $0x1450] sm:$0xff]
      %v926 = vld [vmem:[%s1 + $0x1458] sm:$0xff]
      %v927 = vld [vmem:[%s1 + $0x1460] sm:$0xff]
      %v928 = vld [vmem:[%s1 + $0x1468] sm:$0xff]
      %v929 = vld [vmem:[%s1 + $0x1470] sm:$0xff]
      %v930 = vld [vmem:[%s1 + $0x1478] sm:$0xff]
      %v931 = vld [vmem:[%s1 + $0x1480] sm:$0xff]
      %v932 = vld [vmem:[%s1 + $0x1488] sm:$0xff]
      %v933 = vld [vmem:[%s1 + $0x1490] sm:$0xff]
      %v934 = vld [vmem:[%s1 + $0x1498] sm:$0xff]
      %v935 = vld [vmem:[%s1 + $0x14a0] sm:$0xff]
      %v936 = vld [vmem:[%s1 + $0x14a8] sm:$0xff]
      %v937 = vld [vmem:[%s1 + $0x14b0] sm:$0xff]
      %v938 = vld [vmem:[%s1 + $0x14b8] sm:$0xff]
      %v939 = vld [vmem:[%s1 + $0x14c0] sm:$0xff]
      %v940 = vld [vmem:[%s1 + $0x14c8] sm:$0xff]
      %v941 = vld [vmem:[%s1 + $0x14d0] sm:$0xff]
      %v942 = vld [vmem:[%s1 + $0x14d8] sm:$0xff]
      %v943 = vld [vmem:[%s1 + $0x14e0] sm:$0xff]
      %v944 = vld [vmem:[%s1 + $0x14e8] sm:$0xff]
      %v945 = vld [vmem:[%s1 + $0x14f0] sm:$0xff]
      %v946 = vld [vmem:[%s1 + $0x14f8] sm:$0xff]
      %v947 = vld [vmem:[%s1 + $0x1500] sm:$0xff]
      %v948 = vld [vmem:[%s1 + $0x1508] sm:$0xff]
      %v949 = vld [vmem:[%s1 + $0x1510] sm:$0xff]
      %v950 = vld [vmem:[%s1 + $0x1518] sm:$0xff]
      %v951 = vld [vmem:[%s1 + $0x1520] sm:$0xff]
      %v952 = vld [vmem:[%s1 + $0x1528] sm:$0xff]
      %v953 = vld [vmem:[%s1 + $0x1530] sm:$0xff]
      %v954 = vld [vmem:[%s1 + $0x1538] sm:$0xff]
      %v955 = vld [vmem:[%s1 + $0x1540] sm:$0xff]
      %v956 = vld [vmem:[%s1 + $0x1548] sm:$0xff]
      %v957 = vld [vmem:[%s1 + $0x1550] sm:$0xff]
      %v958 = vld [vmem:[%s1 + $0x1558] sm:$0xff]
      %v959 = vld [vmem:[%s1 + $0x1560] sm:$0xff]
      %v960 = vld [vmem:[%s1 + $0x1568] sm:$0xff]
      %v961 = vld [vmem:[%s1 + $0x1570] sm:$0xff]
      %v962 = vld [vmem:[%s1 + $0x1578] sm:$0xff]
      %v963 = vld [vmem:[%s1 + $0x1580] sm:$0xff]
      %v964 = vld [vmem:[%s1 + $0x1588] sm:$0xff]
      %v965 = vld [vmem:[%s1 + $0x1590] sm:$0xff]
      %v966 = vld [vmem:[%s1 + $0x1598] sm:$0xff]
      %v967 = vld [vmem:[%s1 + $0x15a0] sm:$0xff]
      %v968 = vld [vmem:[%s1 + $0x15a8] sm:$0xff]
      %v969 = vld [vmem:[%s1 + $0x15b0] sm:$0xff]
      %v970 = vld [vmem:[%s1 + $0x15b8] sm:$0xff]
      %v971 = vld [vmem:[%s1 + $0x15c0] sm:$0xff]
      %v972 = vld [vmem:[%s1 + $0x15c8] sm:$0xff]
      %v973 = vld [vmem:[%s1 + $0x15d0] sm:$0xff]
      %v974 = vld [vmem:[%s1 + $0x15d8] sm:$0xff]
      %v975 = vld [vmem:[%s1 + $0x15e0] sm:$0xff]
      %v976 = vld [vmem:[%s1 + $0x15e8] sm:$0xff]
      %v977 = vld [vmem:[%s1 + $0x15f0] sm:$0xff]
      %v978 = vld [vmem:[%s1 + $0x15f8] sm:$0xff]
      %v979 = vld [vmem:[%s1 + $0x1600] sm:$0xff]
      %v980 = vld [vmem:[%s1 + $0x1608] sm:$0xff]
      %v981 = vld [vmem:[%s1 + $0x1610] sm:$0xff]
      %v982 = vld [vmem:[%s1 + $0x1618] sm:$0xff]
      %v983 = vld [vmem:[%s1 + $0x1620] sm:$0xff]
      %v984 = vld [vmem:[%s1 + $0x1628] sm:$0xff]
      %v985 = vld [vmem:[%s1 + $0x1630] sm:$0xff]
      %v986 = vld [vmem:[%s1 + $0x1638] sm:$0xff]
      %v987 = vld [vmem:[%s1 + $0x1640] sm:$0xff]
      %v988 = vld [vmem:[%s1 + $0x1648] sm:$0xff]
      %v989 = vld [vmem:[%s1 + $0x1650] sm:$0xff]
      %v990 = vld [vmem:[%s1 + $0x1658] sm:$0xff]
      %v991 = vld [vmem:[%s1 + $0x1660] sm:$0xff]
      %v992 = vld [vmem:[%s1 + $0x1668] sm:$0xff]
      %v993 = vld [vmem:[%s1 + $0x1670] sm:$0xff]
      %v994 = vld [vmem:[%s1 + $0x1678] sm:$0xff]
      %v995 = vld [vmem:[%s1 + $0x1680] sm:$0xff]
      %v996 = vld [vmem:[%s1 + $0x1688] sm:$0xff]
      %v997 = vld [vmem:[%s1 + $0x1690] sm:$0xff]
      %v998 = vld [vmem:[%s1 + $0x1698] sm:$0xff]
      %v999 = vld [vmem:[%s1 + $0x16a0] sm:$0xff]
      %v1000 = vld [vmem:[%s1 + $0x16a8] sm:$0xff]
      %v1001 = vld [vmem:[%s1 + $0x16b0] sm:$0xff]
      %v1002 = vld [vmem:[%s1 + $0x16b8] sm:$0xff]
      %v1003 = vld [vmem:[%s1 + $0x16c0] sm:$0xff]
      %v1004 = vld [vmem:[%s1 + $0x16c8] sm:$0xff]
      %v1005 = vld [vmem:[%s1 + $0x16d0] sm:$0xff]
      %v1006 = vld [vmem:[%s1 + $0x16d8] sm:$0xff]
      %v1007 = vld [vmem:[%s1 + $0x16e0] sm:$0xff]
      %v1008 = vld [vmem:[%s1 + $0x16e8] sm:$0xff]
      %v1009 = vld [vmem:[%s1 + $0x16f0] sm:$0xff]
      %v1010 = vld [vmem:[%s1 + $0x16f8] sm:$0xff]
      %v1011 = vld [vmem:[%s1 + $0x1700] sm:$0xff]
      %v1012 = vld [vmem:[%s1 + $0x1708] sm:$0xff]
      %v1013 = vld [vmem:[%s1 + $0x1710] sm:$0xff]
      %v1014 = vld [vmem:[%s1 + $0x1718] sm:$0xff]
      %v1015 = vld [vmem:[%s1 + $0x1720] sm:$0xff]
      %v1016 = vld [vmem:[%s1 + $0x1728] sm:$0xff]
      %v1017 = vld [vmem:[%s1 + $0x1730] sm:$0xff]
      %v1018 = vld [vmem:[%s1 + $0x1738] sm:$0xff]
      %v1019 = vld [vmem:[%s1 + $0x1740] sm:$0xff]
      %v1020 = vld [vmem:[%s1 + $0x1748] sm:$0xff]
      %v1021 = vld [vmem:[%s1 + $0x1750] sm:$0xff]
      %v1022 = vld [vmem:[%s1 + $0x1758] sm:$0xff]
      %v1023 = vld [vmem:[%s1 + $0x1760] sm:$0xff]
      %v1024 = vld [vmem:[%s1 + $0x1768] sm:$0xff]
      %v1025 = vld [vmem:[%s1 + $0x1770] sm:$0xff]
      %v1026 = vld [vmem:[%s1 + $0x1778] sm:$0xff]
      %v1027 = vld [vmem:[%s1 + $0x1780] sm:$0xff]
      %v1028 = vld [vmem:[%s1 + $0x1788] sm:$0xff]
      %v1029 = vld [vmem:[%s1 + $0x1790] sm:$0xff]
      %v1030 = vld [vmem:[%s1 + $0x1798] sm:$0xff]
      %v1031 = vld [vmem:[%s1 + $0x17a0] sm:$0xff]
      %v1032 = vld [vmem:[%s1 + $0x17a8] sm:$0xff]
      %v1033 = vld [vmem:[%s1 + $0x17b0] sm:$0xff]
      %v1034 = vld [vmem:[%s1 + $0x17b8] sm:$0xff]
      %v1035 = vld [vmem:[%s1 + $0x17c0] sm:$0xff]
      %v1036 = vld [vmem:[%s1 + $0x17c8] sm:$0xff]
      %v1037 = vld [vmem:[%s1 + $0x17d0] sm:$0xff]
      %v1038 = vld [vmem:[%s1 + $0x17d8] sm:$0xff]
      %v1039 = vld [vmem:[%s1 + $0x17e0] sm:$0xff]
      %v1040 = vld [vmem:[%s1 + $0x17e8] sm:$0xff]
      %v1041 = vld [vmem:[%s1 + $0x17f0] sm:$0xff]
      %v1042 = vld [vmem:[%s1 + $0x17f8] sm:$0xff]
      %v1043 = vld [vmem:[%s1 + $0x1800] sm:$0xff]
      %v1044 = vld [vmem:[%s1 + $0x1808] sm:$0xff]
      %v1045 = vld [vmem:[%s1 + $0x1810] sm:$0xff]
      %v1046 = vld [vmem:[%s1 + $0x1818] sm:$0xff]
      %v1047 = vld [vmem:[%s1 + $0x1820] sm:$0xff]
      %v1048 = vld [vmem:[%s1 + $0x1828] sm:$0xff]
      %v1049 = vld [vmem:[%s1 + $0x1830] sm:$0xff]
      %v1050 = vld [vmem:[%s1 + $0x1838] sm:$0xff]
      %v1051 = vld [vmem:[%s1 + $0x1840] sm:$0xff]
      %v1052 = vld [vmem:[%s1 + $0x1848] sm:$0xff]
      %v1053 = vld [vmem:[%s1 + $0x1850] sm:$0xff]
      %v1054 = vld [vmem:[%s1 + $0x1858] sm:$0xff]
      %v1055 = vld [vmem:[%s1 + $0x1860] sm:$0xff]
      %v1056 = vld [vmem:[%s1 + $0x1868] sm:$0xff]
      %v1057 = vld [vmem:[%s1 + $0x1870] sm:$0xff]
      %v1058 = vld [vmem:[%s1 + $0x1878] sm:$0xff]
      %v1059 = vld [vmem:[%s1 + $0x1880] sm:$0xff]
      %v1060 = vld [vmem:[%s1 + $0x1888] sm:$0xff]
      %v1061 = vld [vmem:[%s1 + $0x1890] sm:$0xff]
      %v1062 = vld [vmem:[%s1 + $0x1898] sm:$0xff]
      %v1063 = vld [vmem:[%s1 + $0x18a0] sm:$0xff]
      %v1064 = vld [vmem:[%s1 + $0x18a8] sm:$0xff]
      %v1065 = vld [vmem:[%s1 + $0x18b0] sm:$0xff]
      %v1066 = vld [vmem:[%s1 + $0x18b8] sm:$0xff]
      %v1067 = vld [vmem:[%s1 + $0x18c0] sm:$0xff]
      %v1068 = vld [vmem:[%s1 + $0x18c8] sm:$0xff]
      %v1069 = vld [vmem:[%s1 + $0x18d0] sm:$0xff]
      %v1070 = vld [vmem:[%s1 + $0x18d8] sm:$0xff]
      %v1071 = vld [vmem:[%s1 + $0x18e0] sm:$0xff]
      %v1072 = vld [vmem:[%s1 + $0x18e8] sm:$0xff]
      %v1073 = vld [vmem:[%s1 + $0x18f0] sm:$0xff]
      %v1074 = vld [vmem:[%s1 + $0x18f8] sm:$0xff]
      %v1075 = vld [vmem:[%s1 + $0x1900] sm:$0xff]
      %v1076 = vld [vmem:[%s1 + $0x1908] sm:$0xff]
      %v1077 = vld [vmem:[%s1 + $0x1910] sm:$0xff]
      %v1078 = vld [vmem:[%s1 + $0x1918] sm:$0xff]
      %v1079 = vld [vmem:[%s1 + $0x1920] sm:$0xff]
      %v1080 = vld [vmem:[%s1 + $0x1928] sm:$0xff]
      %v1081 = vld [vmem:[%s1 + $0x1930] sm:$0xff]
      %v1082 = vld [vmem:[%s1 + $0x1938] sm:$0xff]
      %v1083 = vld [vmem:[%s1 + $0x1940] sm:$0xff]
      %v1084 = vld [vmem:[%s1 + $0x1948] sm:$0xff]
      %v1085 = vld [vmem:[%s1 + $0x1950] sm:$0xff]
      %v1086 = vld [vmem:[%s1 + $0x1958] sm:$0xff]
      %v1087 = vld [vmem:[%s1 + $0x1960] sm:$0xff]
      %v1088 = vld [vmem:[%s1 + $0x1968] sm:$0xff]
      %v1089 = vld [vmem:[%s1 + $0x1970] sm:$0xff]
      %v1090 = vld [vmem:[%s1 + $0x1978] sm:$0xff]
      %v1091 = vld [vmem:[%s1 + $0x1980] sm:$0xff]
      %v1092 = vld [vmem:[%s1 + $0x1988] sm:$0xff]
      %v1093 = vld [vmem:[%s1 + $0x1990] sm:$0xff]
      %v1094 = vld [vmem:[%s1 + $0x1998] sm:$0xff]
      %v1095 = vld [vmem:[%s1 + $0x19a0] sm:$0xff]
      %v1096 = vld [vmem:[%s1 + $0x19a8] sm:$0xff]
      %v1097 = vld [vmem:[%s1 + $0x19b0] sm:$0xff]
      %v1098 = vld [vmem:[%s1 + $0x19b8] sm:$0xff]
      %v1099 = vld [vmem:[%s1 + $0x19c0] sm:$0xff]
      %v1100 = vld [vmem:[%s1 + $0x19c8] sm:$0xff]
      %v1101 = vld [vmem:[%s1 + $0x19d0] sm:$0xff]
      %v1102 = vld [vmem:[%s1 + $0x19d8] sm:$0xff]
      %v1103 = vld [vmem:[%s1 + $0x19e0] sm:$0xff]
      %v1104 = vld [vmem:[%s1 + $0x19e8] sm:$0xff]
      %v1105 = vld [vmem:[%s1 + $0x19f0] sm:$0xff]
      %v1106 = vld [vmem:[%s1 + $0x19f8] sm:$0xff]
      %v1107 = vld [vmem:[%s1 + $0x1a00] sm:$0xff]
      %v1108 = vld [vmem:[%s1 + $0x1a08] sm:$0xff]
      %v1109 = vld [vmem:[%s1 + $0x1a10] sm:$0xff]
      %v1110 = vld [vmem:[%s1 + $0x1a18] sm:$0xff]
      %v1111 = vld [vmem:[%s1 + $0x1a20] sm:$0xff]
      %v1112 = vld [vmem:[%s1 + $0x1a28] sm:$0xff]
      %v1113 = vld [vmem:[%s1 + $0x1a30] sm:$0xff]
      %v1114 = vld [vmem:[%s1 + $0x1a38] sm:$0xff]
      %v1115 = vld [vmem:[%s1 + $0x1a40] sm:$0xff]
      %v1116 = vld [vmem:[%s1 + $0x1a48] sm:$0xff]
      %v1117 = vld [vmem:[%s1 + $0x1a50] sm:$0xff]
      %v1118 = vld [vmem:[%s1 + $0x1a58] sm:$0xff]
      %v1119 = vld [vmem:[%s1 + $0x1a60] sm:$0xff]
      %v1120 = vld [vmem:[%s1 + $0x1a68] sm:$0xff]
      %v1121 = vld [vmem:[%s1 + $0x1a70] sm:$0xff]
      %v1122 = vld [vmem:[%s1 + $0x1a78] sm:$0xff]
      %v1123 = vld [vmem:[%s1 + $0x1a80] sm:$0xff]
      %v1124 = vld [vmem:[%s1 + $0x1a88] sm:$0xff]
      %v1125 = vld [vmem:[%s1 + $0x1a90] sm:$0xff]
      %v1126 = vld [vmem:[%s1 + $0x1a98] sm:$0xff]
      %v1127 = vld [vmem:[%s1 + $0x1aa0] sm:$0xff]
      %v1128 = vld [vmem:[%s1 + $0x1aa8] sm:$0xff]
      %v1129 = vld [vmem:[%s1 + $0x1ab0] sm:$0xff]
      %v1130 = vld [vmem:[%s1 + $0x1ab8] sm:$0xff]
      %v1131 = vld [vmem:[%s1 + $0x1ac0] sm:$0xff]
      %v1132 = vld [vmem:[%s1 + $0x1ac8] sm:$0xff]
      %v1133 = vld [vmem:[%s1 + $0x1ad0] sm:$0xff]
      %v1134 = vld [vmem:[%s1 + $0x1ad8] sm:$0xff]
      %v1135 = vld [vmem:[%s1 + $0x1ae0] sm:$0xff]
      %v1136 = vld [vmem:[%s1 + $0x1ae8] sm:$0xff]
      %v1137 = vld [vmem:[%s1 + $0x1af0] sm:$0xff]
      %v1138 = vld [vmem:[%s1 + $0x1af8] sm:$0xff]
      %v1139 = vld [vmem:[%s1 + $0x1b00] sm:$0xff]
      %v1140 = vld [vmem:[%s1 + $0x1b08] sm:$0xff]
      %v1141 = vld [vmem:[%s1 + $0x1b10] sm:$0xff]
      %v1142 = vld [vmem:[%s1 + $0x1b18] sm:$0xff]
      %v1143 = vld [vmem:[%s1 + $0x1b20] sm:$0xff]
      %v1144 = vld [vmem:[%s1 + $0x1b28] sm:$0xff]
      %v1145 = vld [vmem:[%s1 + $0x1b30] sm:$0xff]
      %v1146 = vld [vmem:[%s1 + $0x1b38] sm:$0xff]
      %v1147 = vld [vmem:[%s1 + $0x1b40] sm:$0xff]
      %v1148 = vld [vmem:[%s1 + $0x1b48] sm:$0xff]
      %v1149 = vld [vmem:[%s1 + $0x1b50] sm:$0xff]
      %v1150 = vld [vmem:[%s1 + $0x1b58] sm:$0xff]
      %v1151 = vld [vmem:[%s1 + $0x1b60] sm:$0xff]
      %v1152 = vld [vmem:[%s1 + $0x1b68] sm:$0xff]
      %v1153 = vld [vmem:[%s1 + $0x1b70] sm:$0xff]
      %v1154 = vld [vmem:[%s1 + $0x1b78] sm:$0xff]
      %v1155 = vld [vmem:[%s1 + $0x1b80] sm:$0xff]
      %v1156 = vld [vmem:[%s1 + $0x1b88] sm:$0xff]
      %v1157 = vld [vmem:[%s1 + $0x1b90] sm:$0xff]
      %v1158 = vld [vmem:[%s1 + $0x1b98] sm:$0xff]
      %v1159 = vld [vmem:[%s1 + $0x1ba0] sm:$0xff]
      %v1160 = vld [vmem:[%s1 + $0x1ba8] sm:$0xff]
      %v1161 = vld [vmem:[%s1 + $0x1bb0] sm:$0xff]
      %v1162 = vld [vmem:[%s1 + $0x1bb8] sm:$0xff]
      %v1163 = vld [vmem:[%s1 + $0x1bc0] sm:$0xff]
      %v1164 = vld [vmem:[%s1 + $0x1bc8] sm:$0xff]
      %v1165 = vld [vmem:[%s1 + $0x1bd0] sm:$0xff]
      %v1166 = vld [vmem:[%s1 + $0x1bd8] sm:$0xff]
      %v1167 = vld [vmem:[%s1 + $0x1be0] sm:$0xff]
      %v1168 = vld [vmem:[%s1 + $0x1be8] sm:$0xff]
      %v1169 = vld [vmem:[%s1 + $0x1bf0] sm:$0xff]
      %v1170 = vld [vmem:[%s1 + $0x1bf8] sm:$0xff]
      %v1171 = vld [vmem:[%s1 + $0x1c00] sm:$0xff]
      %v1172 = vld [vmem:[%s1 + $0x1c08] sm:$0xff]
      %v1173 = vld [vmem:[%s1 + $0x1c10] sm:$0xff]
      %v1174 = vld [vmem:[%s1 + $0x1c18] sm:$0xff]
      %v1175 = vld [vmem:[%s1 + $0x1c20] sm:$0xff]
      %v1176 = vld [vmem:[%s1 + $0x1c28] sm:$0xff]
      %v1177 = vld [vmem:[%s1 + $0x1c30] sm:$0xff]
      %v1178 = vld [vmem:[%s1 + $0x1c38] sm:$0xff]
      %v1179 = vld [vmem:[%s1 + $0x1c40] sm:$0xff]
      %v1180 = vld [vmem:[%s1 + $0x1c48] sm:$0xff]
      %v1181 = vld [vmem:[%s1 + $0x1c50] sm:$0xff]
      %v1182 = vld [vmem:[%s1 + $0x1c58] sm:$0xff]
      %v1183 = vld [vmem:[%s1 + $0x1c60] sm:$0xff]
      %v1184 = vld [vmem:[%s1 + $0x1c68] sm:$0xff]
      %v1185 = vld [vmem:[%s1 + $0x1c70] sm:$0xff]
      %v1186 = vld [vmem:[%s1 + $0x1c78] sm:$0xff]
      %v1187 = vld [vmem:[%s1 + $0x1c80] sm:$0xff]
      %v1188 = vld [vmem:[%s1 + $0x1c88] sm:$0xff]
      %v1189 = vld [vmem:[%s1 + $0x1c90] sm:$0xff]
      %v1190 = vld [vmem:[%s1 + $0x1c98] sm:$0xff]
      %v1191 = vld [vmem:[%s1 + $0x1ca0] sm:$0xff]
      %v1192 = vld [vmem:[%s1 + $0x1ca8] sm:$0xff]
      %v1193 = vld [vmem:[%s1 + $0x1cb0] sm:$0xff]
      %v1194 = vld [vmem:[%s1 + $0x1cb8] sm:$0xff]
      %v1195 = vld [vmem:[%s1 + $0x1cc0] sm:$0xff]
      %v1196 = vld [vmem:[%s1 + $0x1cc8] sm:$0xff]
      %v1197 = vld [vmem:[%s1 + $0x1cd0] sm:$0xff]
      %v1198 = vld [vmem:[%s1 + $0x1cd8] sm:$0xff]
      %v1199 = vld [vmem:[%s1 + $0x1ce0] sm:$0xff]
      %v1200 = vld [vmem:[%s1 + $0x1ce8] sm:$0xff]
      %v1201 = vld [vmem:[%s1 + $0x1cf0] sm:$0xff]
      %v1202 = vld [vmem:[%s1 + $0x1cf8] sm:$0xff]
      %v1203 = vld [vmem:[%s1 + $0x1d00] sm:$0xff]
      %v1204 = vld [vmem:[%s1 + $0x1d08] sm:$0xff]
      %v1205 = vld [vmem:[%s1 + $0x1d10] sm:$0xff]
      %v1206 = vld [vmem:[%s1 + $0x1d18] sm:$0xff]
      %v1207 = vld [vmem:[%s1 + $0x1d20] sm:$0xff]
      %v1208 = vld [vmem:[%s1 + $0x1d28] sm:$0xff]
      %v1209 = vld [vmem:[%s1 + $0x1d30] sm:$0xff]
      %v1210 = vld [vmem:[%s1 + $0x1d38] sm:$0xff]
      %v1211 = vld [vmem:[%s1 + $0x1d40] sm:$0xff]
      %v1212 = vld [vmem:[%s1 + $0x1d48] sm:$0xff]
      %v1213 = vld [vmem:[%s1 + $0x1d50] sm:$0xff]
      %v1214 = vld [vmem:[%s1 + $0x1d58] sm:$0xff]
      %v1215 = vld [vmem:[%s1 + $0x1d60] sm:$0xff]
      %v1216 = vld [vmem:[%s1 + $0x1d68] sm:$0xff]
      %v1217 = vld [vmem:[%s1 + $0x1d70] sm:$0xff]
      %v1218 = vld [vmem:[%s1 + $0x1d78] sm:$0xff]
      %v1219 = vld [vmem:[%s1 + $0x1d80] sm:$0xff]
      %v1220 = vld [vmem:[%s1 + $0x1d88] sm:$0xff]
      %v1221 = vld [vmem:[%s1 + $0x1d90] sm:$0xff]
      %v1222 = vld [vmem:[%s1 + $0x1d98] sm:$0xff]
      %v1223 = vld [vmem:[%s1 + $0x1da0] sm:$0xff]
      %v1224 = vld [vmem:[%s1 + $0x1da8] sm:$0xff]
      %v1225 = vld [vmem:[%s1 + $0x1db0] sm:$0xff]
      %v1226 = vld [vmem:[%s1 + $0x1db8] sm:$0xff]
      %v1227 = vld [vmem:[%s1 + $0x1dc0] sm:$0xff]
      %v1228 = vld [vmem:[%s1 + $0x1dc8] sm:$0xff]
      %v1229 = vld [vmem:[%s1 + $0x1dd0] sm:$0xff]
      %v1230 = vld [vmem:[%s1 + $0x1dd8] sm:$0xff]
      %v1231 = vld [vmem:[%s1 + $0x1de0] sm:$0xff]
      %v1232 = vld [vmem:[%s1 + $0x1de8] sm:$0xff]
      %v1233 = vld [vmem:[%s1 + $0x1df0] sm:$0xff]
      %v1234 = vld [vmem:[%s1 + $0x1df8] sm:$0xff]
      %v1235 = vld [vmem:[%s2] sm:$0x1f]
      %v1237 = vlaneseq
      %v1238 = vshrl.u32 %v1237, 7
      %v1239 = vsub.s32 0, %v1238
      %v1240 = vrot.slane %v1235, %v1239
      %v1241 = vlaneseq
      %v1242 = vshrl.u32 %v1241, 7
      %v1243 = vsub.s32 1, %v1242
      %v1244 = vrot.slane %v1235, %v1243
      %v1245 = vlaneseq
      %v1246 = vshrl.u32 %v1245, 7
      %v1247 = vsub.s32 2, %v1246
      %v1248 = vrot.slane %v1235, %v1247
      %v1249 = vlaneseq
      %v1250 = vshrl.u32 %v1249, 7
      %v1251 = vsub.s32 3, %v1250
      %v1252 = vrot.slane %v1235, %v1251
      %v1253 = vlaneseq
      %v1254 = vshrl.u32 %v1253, 7
      %v1255 = vsub.s32 4, %v1254
      %v1256 = vrot.slane %v1235, %v1255
      %1262 = vmatprep.subr.mxu0 %v276
      %1263 = vmatpush1.msra.mxu0 %v275
      %1264 = vmatprep.subr.mxu0 %v281
      %1265 = vmatpush1.msra.mxu0 %v280
      %1266 = vmatprep.subr.mxu0 %v286
      %1267 = vmatpush1.msra.mxu0 %v285
      %1268 = vmatprep.subr.mxu0 %v291
      %1269 = vmatpush1.msra.mxu0 %v290
      %1270 = vmatprep.subr.mxu0 %v296
      %1271 = vmatpush1.msra.mxu0 %v295
      %1272 = vmatprep.subr.mxu0 %v301
      %1273 = vmatpush1.msra.mxu0 %v300
      %1274 = vmatprep.subr.mxu0 %v306
      %1275 = vmatpush1.msra.mxu0 %v305
      %1276 = vmatprep.subr.mxu0 %v311
      %1277 = vmatpush1.msra.mxu0 %v310
      %1278 = vmatprep.subr.mxu0 %v316
      %1279 = vmatpush1.msra.mxu0 %v315
      %1280 = vmatprep.subr.mxu0 %v321
      %1281 = vmatpush1.msra.mxu0 %v320
      %1282 = vmatprep.subr.mxu0 %v326
      %1283 = vmatpush1.msra.mxu0 %v325
      %1284 = vmatprep.subr.mxu0 %v331
      %1285 = vmatpush1.msra.mxu0 %v330
      %1286 = vmatprep.subr.mxu0 %v336
      %1287 = vmatpush1.msra.mxu0 %v335
      %1288 = vmatprep.subr.mxu0 %v341
      %1289 = vmatpush1.msra.mxu0 %v340
      %1290 = vmatprep.subr.mxu0 %v346
      %1291 = vmatpush1.msra.mxu0 %v345
      %1292 = vmatprep.subr.mxu0 %v351
      %1293 = vmatpush1.msra.mxu0 %v350
      %1294 = vmatprep.subr.mxu0 %v356
      %1295 = vmatpush1.msra.mxu0 %v355
      %1296 = vmatprep.subr.mxu0 %v361
      %1297 = vmatpush1.msra.mxu0 %v360
      %1298 = vmatprep.subr.mxu0 %v366
      %1299 = vmatpush1.msra.mxu0 %v365
      %1300 = vmatprep.subr.mxu0 %v371
      %1301 = vmatpush1.msra.mxu0 %v370
      %1302 = vmatprep.subr.mxu0 %v376
      %1303 = vmatpush1.msra.mxu0 %v375
      %1304 = vmatprep.subr.mxu0 %v381
      %1305 = vmatpush1.msra.mxu0 %v380
      %1306 = vmatprep.subr.mxu0 %v386
      %1307 = vmatpush1.msra.mxu0 %v385
      %1308 = vmatprep.subr.mxu0 %v391
      %1309 = vmatpush1.msra.mxu0 %v390
      %1310 = vmatprep.subr.mxu0 %v396
      %1311 = vmatpush1.msra.mxu0 %v395
      %1312 = vmatprep.subr.mxu0 %v401
      %1313 = vmatpush1.msra.mxu0 %v400
      %1314 = vmatprep.subr.mxu0 %v406
      %1315 = vmatpush1.msra.mxu0 %v405
      %1316 = vmatprep.subr.mxu0 %v411
      %1317 = vmatpush1.msra.mxu0 %v410
      %1318 = vmatprep.subr.mxu0 %v416
      %1319 = vmatpush1.msra.mxu0 %v415
      %1320 = vmatprep.subr.mxu0 %v421
      %1321 = vmatpush1.msra.mxu0 %v420
      %1322 = vmatprep.subr.mxu0 %v426
      %1323 = vmatpush1.msra.mxu0 %v425
      %1324 = vmatprep.subr.mxu0 %v431
      %1325 = vmatpush1.msra.mxu0 %v430
      %1326 = vmatprep.mubr.f32.mxu0 %v264
      %1327 = vmatmul.mubr.f32.gmra.mrb[0].mxu0 %v263
      %v1328 = vpop.f32.mrb[0].mxu0
      %v1329 = vadd.f32 %v1240, %v1328
      %v1330 = vpop.f32.mrb[0].mxu0
      %v1331 = vadd.f32 %v1244, %v1330
      %1332 = vdwg.mxu0
      %1333 = vmatprep.subr.mxu0 %v436
      %1334 = vmatpush1.msra.mxu0 %v435
      %1335 = vmatprep.subr.mxu0 %v441
      %1336 = vmatpush1.msra.mxu0 %v440
      %1337 = vmatprep.subr.mxu0 %v446
      %1338 = vmatpush1.msra.mxu0 %v445
      %1339 = vmatprep.subr.mxu0 %v451
      %1340 = vmatpush1.msra.mxu0 %v450
      %1341 = vmatprep.subr.mxu0 %v456
      %1342 = vmatpush1.msra.mxu0 %v455
      %1343 = vmatprep.subr.mxu0 %v461
      %1344 = vmatpush1.msra.mxu0 %v460
      %1345 = vmatprep.subr.mxu0 %v466
      %1346 = vmatpush1.msra.mxu0 %v465
      %1347 = vmatprep.subr.mxu0 %v471
      %1348 = vmatpush1.msra.mxu0 %v470
      %1349 = vmatprep.subr.mxu0 %v476
      %1350 = vmatpush1.msra.mxu0 %v475
      %1351 = vmatprep.subr.mxu0 %v481
      %1352 = vmatpush1.msra.mxu0 %v480
      %1353 = vmatprep.subr.mxu0 %v486
      %1354 = vmatpush1.msra.mxu0 %v485
      %1355 = vmatprep.subr.mxu0 %v491
      %1356 = vmatpush1.msra.mxu0 %v490
      %1357 = vmatprep.subr.mxu0 %v496
      %1358 = vmatpush1.msra.mxu0 %v495
      %1359 = vmatprep.subr.mxu0 %v501
      %1360 = vmatpush1.msra.mxu0 %v500
      %1361 = vmatprep.subr.mxu0 %v506
      %1362 = vmatpush1.msra.mxu0 %v505
      %1363 = vmatprep.subr.mxu0 %v511
      %1364 = vmatpush1.msra.mxu0 %v510
      %1365 = vmatprep.subr.mxu0 %v516
      %1366 = vmatpush1.msra.mxu0 %v515
      %1367 = vmatprep.subr.mxu0 %v521
      %1368 = vmatpush1.msra.mxu0 %v520
      %1369 = vmatprep.subr.mxu0 %v526
      %1370 = vmatpush1.msra.mxu0 %v525
      %1371 = vmatprep.subr.mxu0 %v531
      %1372 = vmatpush1.msra.mxu0 %v530
      %1373 = vmatprep.subr.mxu0 %v536
      %1374 = vmatpush1.msra.mxu0 %v535
      %1375 = vmatprep.subr.mxu0 %v541
      %1376 = vmatpush1.msra.mxu0 %v540
      %1377 = vmatprep.subr.mxu0 %v546
      %1378 = vmatpush1.msra.mxu0 %v545
      %1379 = vmatprep.subr.mxu0 %v551
      %1380 = vmatpush1.msra.mxu0 %v550
      %1381 = vmatprep.subr.mxu0 %v556
      %1382 = vmatpush1.msra.mxu0 %v555
      %1383 = vmatprep.subr.mxu0 %v561
      %1384 = vmatpush1.msra.mxu0 %v560
      %1385 = vmatprep.subr.mxu0 %v566
      %1386 = vmatpush1.msra.mxu0 %v565
      %1387 = vmatprep.subr.mxu0 %v571
      %1388 = vmatpush1.msra.mxu0 %v570
      %1389 = vmatprep.subr.mxu0 %v576
      %1390 = vmatpush1.msra.mxu0 %v575
      %1391 = vmatprep.subr.mxu0 %v581
      %1392 = vmatpush1.msra.mxu0 %v580
      %1393 = vmatprep.subr.mxu0 %v586
      %1394 = vmatpush1.msra.mxu0 %v585
      %1395 = vmatprep.subr.mxu0 %v591
      %1396 = vmatpush1.msra.mxu0 %v590
      %1397 = vmatprep.mubr.f32.mxu0 %v266
      %1398 = vmatmul.mubr.f32.gmra.mrb[0].mxu0 %v265
      %v1399 = vpop.f32.mrb[0].mxu0
      %v1400 = vadd.f32 %v1329, %v1399
      %v1401 = vpop.f32.mrb[0].mxu0
      %v1402 = vadd.f32 %v1331, %v1401
      %1403 = vdwg.mxu0
      %1404 = vmatprep.subr.mxu0 %v596
      %1405 = vmatpush1.msra.mxu0 %v595
      %1406 = vmatprep.subr.mxu0 %v601
      %1407 = vmatpush1.msra.mxu0 %v600
      %1408 = vmatprep.subr.mxu0 %v606
      %1409 = vmatpush1.msra.mxu0 %v605
      %1410 = vmatprep.subr.mxu0 %v611
      %1411 = vmatpush1.msra.mxu0 %v610
      %1412 = vmatprep.subr.mxu0 %v616
      %1413 = vmatpush1.msra.mxu0 %v615
      %1414 = vmatprep.subr.mxu0 %v621
      %1415 = vmatpush1.msra.mxu0 %v620
      %1416 = vmatprep.subr.mxu0 %v626
      %1417 = vmatpush1.msra.mxu0 %v625
      %1418 = vmatprep.subr.mxu0 %v631
      %1419 = vmatpush1.msra.mxu0 %v630
      %1420 = vmatprep.subr.mxu0 %v636
      %1421 = vmatpush1.msra.mxu0 %v635
      %1422 = vmatprep.subr.mxu0 %v641
      %1423 = vmatpush1.msra.mxu0 %v640
      %1424 = vmatprep.subr.mxu0 %v646
      %1425 = vmatpush1.msra.mxu0 %v645
      %1426 = vmatprep.subr.mxu0 %v651
      %1427 = vmatpush1.msra.mxu0 %v650
      %1428 = vmatprep.subr.mxu0 %v656
      %1429 = vmatpush1.msra.mxu0 %v655
      %1430 = vmatprep.subr.mxu0 %v661
      %1431 = vmatpush1.msra.mxu0 %v660
      %1432 = vmatprep.subr.mxu0 %v666
      %1433 = vmatpush1.msra.mxu0 %v665
      %1434 = vmatprep.subr.mxu0 %v671
      %1435 = vmatpush1.msra.mxu0 %v670
      %1436 = vmatprep.subr.mxu0 %v676
      %1437 = vmatpush1.msra.mxu0 %v675
      %1438 = vmatprep.subr.mxu0 %v681
      %1439 = vmatpush1.msra.mxu0 %v680
      %1440 = vmatprep.subr.mxu0 %v686
      %1441 = vmatpush1.msra.mxu0 %v685
      %1442 = vmatprep.subr.mxu0 %v691
      %1443 = vmatpush1.msra.mxu0 %v690
      %1444 = vmatprep.subr.mxu0 %v696
      %1445 = vmatpush1.msra.mxu0 %v695
      %1446 = vmatprep.subr.mxu0 %v701
      %1447 = vmatpush1.msra.mxu0 %v700
      %1448 = vmatprep.subr.mxu0 %v706
      %1449 = vmatpush1.msra.mxu0 %v705
      %1450 = vmatprep.subr.mxu0 %v711
      %1451 = vmatpush1.msra.mxu0 %v710
      %1452 = vmatprep.subr.mxu0 %v716
      %1453 = vmatpush1.msra.mxu0 %v715
      %1454 = vmatprep.subr.mxu0 %v721
      %1455 = vmatpush1.msra.mxu0 %v720
      %1456 = vmatprep.subr.mxu0 %v726
      %1457 = vmatpush1.msra.mxu0 %v725
      %1458 = vmatprep.subr.mxu0 %v731
      %1459 = vmatpush1.msra.mxu0 %v730
      %1460 = vmatprep.subr.mxu0 %v736
      %1461 = vmatpush1.msra.mxu0 %v735
      %1462 = vmatprep.subr.mxu0 %v741
      %1463 = vmatpush1.msra.mxu0 %v740
      %1464 = vmatprep.subr.mxu0 %v746
      %1465 = vmatpush1.msra.mxu0 %v745
      %1466 = vmatprep.subr.mxu0 %v751
      %1467 = vmatpush1.msra.mxu0 %v750
      %1468 = vmatprep.mubr.f32.mxu0 %v268
      %1469 = vmatmul.mubr.f32.gmra.mrb[0].mxu0 %v267
      %v1470 = vpop.f32.mrb[0].mxu0
      %v1471 = vadd.f32 %v1400, %v1470
      %v1472 = vpop.f32.mrb[0].mxu0
      %v1473 = vadd.f32 %v1402, %v1472
      %1474 = vdwg.mxu0
      %1475 = vmatprep.subr.mxu0 %v756
      %1476 = vmatpush1.msra.mxu0 %v755
      %1477 = vmatprep.subr.mxu0 %v761
      %1478 = vmatpush1.msra.mxu0 %v760
      %1479 = vmatprep.subr.mxu0 %v766
      %1480 = vmatpush1.msra.mxu0 %v765
      %1481 = vmatprep.subr.mxu0 %v771
      %1482 = vmatpush1.msra.mxu0 %v770
      %1483 = vmatprep.subr.mxu0 %v776
      %1484 = vmatpush1.msra.mxu0 %v775
      %1485 = vmatprep.subr.mxu0 %v781
      %1486 = vmatpush1.msra.mxu0 %v780
      %1487 = vmatprep.subr.mxu0 %v786
      %1488 = vmatpush1.msra.mxu0 %v785
      %1489 = vmatprep.subr.mxu0 %v791
      %1490 = vmatpush1.msra.mxu0 %v790
      %1491 = vmatprep.subr.mxu0 %v796
      %1492 = vmatpush1.msra.mxu0 %v795
      %1493 = vmatprep.subr.mxu0 %v801
      %1494 = vmatpush1.msra.mxu0 %v800
      %1495 = vmatprep.subr.mxu0 %v806
      %1496 = vmatpush1.msra.mxu0 %v805
      %1497 = vmatprep.subr.mxu0 %v811
      %1498 = vmatpush1.msra.mxu0 %v810
      %1499 = vmatprep.subr.mxu0 %v816
      %1500 = vmatpush1.msra.mxu0 %v815
      %1501 = vmatprep.subr.mxu0 %v821
      %1502 = vmatpush1.msra.mxu0 %v820
      %1503 = vmatprep.subr.mxu0 %v826
      %1504 = vmatpush1.msra.mxu0 %v825
      %1505 = vmatprep.subr.mxu0 %v831
      %1506 = vmatpush1.msra.mxu0 %v830
      %1507 = vmatprep.subr.mxu0 %v836
      %1508 = vmatpush1.msra.mxu0 %v835
      %1509 = vmatprep.subr.mxu0 %v841
      %1510 = vmatpush1.msra.mxu0 %v840
      %1511 = vmatprep.subr.mxu0 %v846
      %1512 = vmatpush1.msra.mxu0 %v845
      %1513 = vmatprep.subr.mxu0 %v851
      %1514 = vmatpush1.msra.mxu0 %v850
      %1515 = vmatprep.subr.mxu0 %v856
      %1516 = vmatpush1.msra.mxu0 %v855
      %1517 = vmatprep.subr.mxu0 %v861
      %1518 = vmatpush1.msra.mxu0 %v860
      %1519 = vmatprep.subr.mxu0 %v866
      %1520 = vmatpush1.msra.mxu0 %v865
      %1521 = vmatprep.subr.mxu0 %v871
      %1522 = vmatpush1.msra.mxu0 %v870
      %1523 = vmatprep.subr.mxu0 %v876
      %1524 = vmatpush1.msra.mxu0 %v875
      %1525 = vmatprep.subr.mxu0 %v881
      %1526 = vmatpush1.msra.mxu0 %v880
      %1527 = vmatprep.subr.mxu0 %v886
      %1528 = vmatpush1.msra.mxu0 %v885
      %1529 = vmatprep.subr.mxu0 %v891
      %1530 = vmatpush1.msra.mxu0 %v890
      %1531 = vmatprep.subr.mxu0 %v896
      %1532 = vmatpush1.msra.mxu0 %v895
      %1533 = vmatprep.subr.mxu0 %v901
      %1534 = vmatpush1.msra.mxu0 %v900
      %1535 = vmatprep.subr.mxu0 %v906
      %1536 = vmatpush1.msra.mxu0 %v905
      %1537 = vmatprep.subr.mxu0 %v911
      %1538 = vmatpush1.msra.mxu0 %v910
      %1539 = vmatprep.mubr.f32.mxu0 %v270
      %1540 = vmatmul.mubr.f32.gmra.mrb[0].mxu0 %v269
      %v1541 = vpop.f32.mrb[0].mxu0
      %v1542 = vadd.f32 %v1471, %v1541
      %v1543 = vpop.f32.mrb[0].mxu0
      %v1544 = vadd.f32 %v1473, %v1543
      %1545 = vdwg.mxu0
      %1546 = vmatprep.subr.mxu0 %v916
      %1547 = vmatpush1.msra.mxu0 %v915
      %1548 = vmatprep.subr.mxu0 %v921
      %1549 = vmatpush1.msra.mxu0 %v920
      %1550 = vmatprep.subr.mxu0 %v926
      %1551 = vmatpush1.msra.mxu0 %v925
      %1552 = vmatprep.subr.mxu0 %v931
      %1553 = vmatpush1.msra.mxu0 %v930
      %1554 = vmatprep.subr.mxu0 %v936
      %1555 = vmatpush1.msra.mxu0 %v935
      %1556 = vmatprep.subr.mxu0 %v941
      %1557 = vmatpush1.msra.mxu0 %v940
      %1558 = vmatprep.subr.mxu0 %v946
      %1559 = vmatpush1.msra.mxu0 %v945
      %1560 = vmatprep.subr.mxu0 %v951
      %1561 = vmatpush1.msra.mxu0 %v950
      %1562 = vmatprep.subr.mxu0 %v956
      %1563 = vmatpush1.msra.mxu0 %v955
      %1564 = vmatprep.subr.mxu0 %v961
      %1565 = vmatpush1.msra.mxu0 %v960
      %1566 = vmatprep.subr.mxu0 %v966
      %1567 = vmatpush1.msra.mxu0 %v965
      %1568 = vmatprep.subr.mxu0 %v971
      %1569 = vmatpush1.msra.mxu0 %v970
      %1570 = vmatprep.subr.mxu0 %v976
      %1571 = vmatpush1.msra.mxu0 %v975
      %1572 = vmatprep.subr.mxu0 %v981
      %1573 = vmatpush1.msra.mxu0 %v980
      %1574 = vmatprep.subr.mxu0 %v986
      %1575 = vmatpush1.msra.mxu0 %v985
      %1576 = vmatprep.subr.mxu0 %v991
      %1577 = vmatpush1.msra.mxu0 %v990
      %1578 = vmatprep.subr.mxu0 %v996
      %1579 = vmatpush1.msra.mxu0 %v995
      %1580 = vmatprep.subr.mxu0 %v1001
      %1581 = vmatpush1.msra.mxu0 %v1000
      %1582 = vmatprep.subr.mxu0 %v1006
      %1583 = vmatpush1.msra.mxu0 %v1005
      %1584 = vmatprep.subr.mxu0 %v1011
      %1585 = vmatpush1.msra.mxu0 %v1010
      %1586 = vmatprep.subr.mxu0 %v1016
      %1587 = vmatpush1.msra.mxu0 %v1015
      %1588 = vmatprep.subr.mxu0 %v1021
      %1589 = vmatpush1.msra.mxu0 %v1020
      %1590 = vmatprep.subr.mxu0 %v1026
      %1591 = vmatpush1.msra.mxu0 %v1025
      %1592 = vmatprep.subr.mxu0 %v1031
      %1593 = vmatpush1.msra.mxu0 %v1030
      %1594 = vmatprep.subr.mxu0 %v1036
      %1595 = vmatpush1.msra.mxu0 %v1035
      %1596 = vmatprep.subr.mxu0 %v1041
      %1597 = vmatpush1.msra.mxu0 %v1040
      %1598 = vmatprep.subr.mxu0 %v1046
      %1599 = vmatpush1.msra.mxu0 %v1045
      %1600 = vmatprep.subr.mxu0 %v1051
      %1601 = vmatpush1.msra.mxu0 %v1050
      %1602 = vmatprep.subr.mxu0 %v1056
      %1603 = vmatpush1.msra.mxu0 %v1055
      %1604 = vmatprep.subr.mxu0 %v1061
      %1605 = vmatpush1.msra.mxu0 %v1060
      %1606 = vmatprep.subr.mxu0 %v1066
      %1607 = vmatpush1.msra.mxu0 %v1065
      %1608 = vmatprep.subr.mxu0 %v1071
      %1609 = vmatpush1.msra.mxu0 %v1070
      %1610 = vmatprep.mubr.f32.mxu0 %v272
      %1611 = vmatmul.mubr.f32.gmra.mrb[0].mxu0 %v271
      %v1612 = vpop.f32.mrb[0].mxu0
      %v1613 = vadd.f32 %v1542, %v1612
      %v1614 = vpop.f32.mrb[0].mxu0
      %v1615 = vadd.f32 %v1544, %v1614
      %1616 = vdwg.mxu0
      %1617 = vmatprep.subr.mxu0 %v1076
      %1618 = vmatpush1.msra.mxu0 %v1075
      %1619 = vmatprep.subr.mxu0 %v1081
      %1620 = vmatpush1.msra.mxu0 %v1080
      %1621 = vmatprep.subr.mxu0 %v1086
      %1622 = vmatpush1.msra.mxu0 %v1085
      %1623 = vmatprep.subr.mxu0 %v1091
      %1624 = vmatpush1.msra.mxu0 %v1090
      %1625 = vmatprep.subr.mxu0 %v1096
      %1626 = vmatpush1.msra.mxu0 %v1095
      %1627 = vmatprep.subr.mxu0 %v1101
      %1628 = vmatpush1.msra.mxu0 %v1100
      %1629 = vmatprep.subr.mxu0 %v1106
      %1630 = vmatpush1.msra.mxu0 %v1105
      %1631 = vmatprep.subr.mxu0 %v1111
      %1632 = vmatpush1.msra.mxu0 %v1110
      %1633 = vmatprep.subr.mxu0 %v1116
      %1634 = vmatpush1.msra.mxu0 %v1115
      %1635 = vmatprep.subr.mxu0 %v1121
      %1636 = vmatpush1.msra.mxu0 %v1120
      %1637 = vmatprep.subr.mxu0 %v1126
      %1638 = vmatpush1.msra.mxu0 %v1125
      %1639 = vmatprep.subr.mxu0 %v1131
      %1640 = vmatpush1.msra.mxu0 %v1130
      %1641 = vmatprep.subr.mxu0 %v1136
      %1642 = vmatpush1.msra.mxu0 %v1135
      %1643 = vmatprep.subr.mxu0 %v1141
      %1644 = vmatpush1.msra.mxu0 %v1140
      %1645 = vmatprep.subr.mxu0 %v1146
      %1646 = vmatpush1.msra.mxu0 %v1145
      %1647 = vmatprep.subr.mxu0 %v1151
      %1648 = vmatpush1.msra.mxu0 %v1150
      %1649 = vmatprep.subr.mxu0 %v1156
      %1650 = vmatpush1.msra.mxu0 %v1155
      %1651 = vmatprep.subr.mxu0 %v1161
      %1652 = vmatpush1.msra.mxu0 %v1160
      %1653 = vmatprep.subr.mxu0 %v1166
      %1654 = vmatpush1.msra.mxu0 %v1165
      %1655 = vmatprep.subr.mxu0 %v1171
      %1656 = vmatpush1.msra.mxu0 %v1170
      %1657 = vmatprep.subr.mxu0 %v1176
      %1658 = vmatpush1.msra.mxu0 %v1175
      %1659 = vmatprep.subr.mxu0 %v1181
      %1660 = vmatpush1.msra.mxu0 %v1180
      %1661 = vmatprep.subr.mxu0 %v1186
      %1662 = vmatpush1.msra.mxu0 %v1185
      %1663 = vmatprep.subr.mxu0 %v1191
      %1664 = vmatpush1.msra.mxu0 %v1190
      %1665 = vmatprep.subr.mxu0 %v1196
      %1666 = vmatpush1.msra.mxu0 %v1195
      %1667 = vmatprep.subr.mxu0 %v1201
      %1668 = vmatpush1.msra.mxu0 %v1200
      %1669 = vmatprep.subr.mxu0 %v1206
      %1670 = vmatpush1.msra.mxu0 %v1205
      %1671 = vmatprep.subr.mxu0 %v1211
      %1672 = vmatpush1.msra.mxu0 %v1210
      %1673 = vmatprep.subr.mxu0 %v1216
      %1674 = vmatpush1.msra.mxu0 %v1215
      %1675 = vmatprep.subr.mxu0 %v1221
      %1676 = vmatpush1.msra.mxu0 %v1220
      %1677 = vmatprep.subr.mxu0 %v1226
      %1678 = vmatpush1.msra.mxu0 %v1225
      %1679 = vmatprep.subr.mxu0 %v1231
      %1680 = vmatpush1.msra.mxu0 %v1230
      %1681 = vmatprep.mubr.f32.mxu0 %v274
      %1682 = vmatmul.mubr.f32.gmra.mrb[0].mxu0 %v273
      %v1683 = vpop.f32.mrb[0].mxu0
      %v1684 = vadd.f32 %v1613, %v1683
      %v1685 = vpop.f32.mrb[0].mxu0
      %v1686 = vadd.f32 %v1615, %v1685
      %1687 = vdwg.mxu0
      %1688 = vmatprep.subr.mxu0 %v278
      %1689 = vmatpush1.msra.mxu0 %v277
      %1690 = vmatprep.subr.mxu0 %v283
      %1691 = vmatpush1.msra.mxu0 %v282
      %1692 = vmatprep.subr.mxu0 %v288
      %1693 = vmatpush1.msra.mxu0 %v287
      %1694 = vmatprep.subr.mxu0 %v293
      %1695 = vmatpush1.msra.mxu0 %v292
      %1696 = vmatprep.subr.mxu0 %v298
      %1697 = vmatpush1.msra.mxu0 %v297
      %1698 = vmatprep.subr.mxu0 %v303
      %1699 = vmatpush1.msra.mxu0 %v302
      %1700 = vmatprep.subr.mxu0 %v308
      %1701 = vmatpush1.msra.mxu0 %v307
      %1702 = vmatprep.subr.mxu0 %v313
      %1703 = vmatpush1.msra.mxu0 %v312
      %1704 = vmatprep.subr.mxu0 %v318
      %1705 = vmatpush1.msra.mxu0 %v317
      %1706 = vmatprep.subr.mxu0 %v323
      %1707 = vmatpush1.msra.mxu0 %v322
      %1708 = vmatprep.subr.mxu0 %v328
      %1709 = vmatpush1.msra.mxu0 %v327
      %1710 = vmatprep.subr.mxu0 %v333
      %1711 = vmatpush1.msra.mxu0 %v332
      %1712 = vmatprep.subr.mxu0 %v338
      %1713 = vmatpush1.msra.mxu0 %v337
      %1714 = vmatprep.subr.mxu0 %v343
      %1715 = vmatpush1.msra.mxu0 %v342
      %1716 = vmatprep.subr.mxu0 %v348
      %1717 = vmatpush1.msra.mxu0 %v347
      %1718 = vmatprep.subr.mxu0 %v353
      %1719 = vmatpush1.msra.mxu0 %v352
      %1720 = vmatprep.subr.mxu0 %v358
      %1721 = vmatpush1.msra.mxu0 %v357
      %1722 = vmatprep.subr.mxu0 %v363
      %1723 = vmatpush1.msra.mxu0 %v362
      %1724 = vmatprep.subr.mxu0 %v368
      %1725 = vmatpush1.msra.mxu0 %v367
      %1726 = vmatprep.subr.mxu0 %v373
      %1727 = vmatpush1.msra.mxu0 %v372
      %1728 = vmatprep.subr.mxu0 %v378
      %1729 = vmatpush1.msra.mxu0 %v377
      %1730 = vmatprep.subr.mxu0 %v383
      %1731 = vmatpush1.msra.mxu0 %v382
      %1732 = vmatprep.subr.mxu0 %v388
      %1733 = vmatpush1.msra.mxu0 %v387
      %1734 = vmatprep.subr.mxu0 %v393
      %1735 = vmatpush1.msra.mxu0 %v392
      %1736 = vmatprep.subr.mxu0 %v398
      %1737 = vmatpush1.msra.mxu0 %v397
      %1738 = vmatprep.subr.mxu0 %v403
      %1739 = vmatpush1.msra.mxu0 %v402
      %1740 = vmatprep.subr.mxu0 %v408
      %1741 = vmatpush1.msra.mxu0 %v407
      %1742 = vmatprep.subr.mxu0 %v413
      %1743 = vmatpush1.msra.mxu0 %v412
      %1744 = vmatprep.subr.mxu0 %v418
      %1745 = vmatpush1.msra.mxu0 %v417
      %1746 = vmatprep.subr.mxu0 %v423
      %1747 = vmatpush1.msra.mxu0 %v422
      %1748 = vmatprep.subr.mxu0 %v428
      %1749 = vmatpush1.msra.mxu0 %v427
      %1750 = vmatprep.subr.mxu0 %v433
      %1751 = vmatpush1.msra.mxu0 %v432
      %1752 = vmatprep.mubr.f32.mxu0 %v264
      %1753 = vmatmul.mubr.f32.gmra.mrb[0].mxu0 %v263
      %v1754 = vpop.f32.mrb[0].mxu0
      %v1755 = vadd.f32 %v1248, %v1754
      %v1756 = vpop.f32.mrb[0].mxu0
      %v1757 = vadd.f32 %v1252, %v1756
      %1758 = vdwg.mxu0
      %1759 = vmatprep.subr.mxu0 %v438
      %1760 = vmatpush1.msra.mxu0 %v437
      %1761 = vmatprep.subr.mxu0 %v443
      %1762 = vmatpush1.msra.mxu0 %v442
      %1763 = vmatprep.subr.mxu0 %v448
      %1764 = vmatpush1.msra.mxu0 %v447
      %1765 = vmatprep.subr.mxu0 %v453
      %1766 = vmatpush1.msra.mxu0 %v452
      %1767 = vmatprep.subr.mxu0 %v458
      %1768 = vmatpush1.msra.mxu0 %v457
      %1769 = vmatprep.subr.mxu0 %v463
      %1770 = vmatpush1.msra.mxu0 %v462
      %1771 = vmatprep.subr.mxu0 %v468
      %1772 = vmatpush1.msra.mxu0 %v467
      %1773 = vmatprep.subr.mxu0 %v473
      %1774 = vmatpush1.msra.mxu0 %v472
      %1775 = vmatprep.subr.mxu0 %v478
      %1776 = vmatpush1.msra.mxu0 %v477
      %1777 = vmatprep.subr.mxu0 %v483
      %1778 = vmatpush1.msra.mxu0 %v482
      %1779 = vmatprep.subr.mxu0 %v488
      %1780 = vmatpush1.msra.mxu0 %v487
      %1781 = vmatprep.subr.mxu0 %v493
      %1782 = vmatpush1.msra.mxu0 %v492
      %1783 = vmatprep.subr.mxu0 %v498
      %1784 = vmatpush1.msra.mxu0 %v497
      %1785 = vmatprep.subr.mxu0 %v503
      %1786 = vmatpush1.msra.mxu0 %v502
      %1787 = vmatprep.subr.mxu0 %v508
      %1788 = vmatpush1.msra.mxu0 %v507
      %1789 = vmatprep.subr.mxu0 %v513
      %1790 = vmatpush1.msra.mxu0 %v512
      %1791 = vmatprep.subr.mxu0 %v518
      %1792 = vmatpush1.msra.mxu0 %v517
      %1793 = vmatprep.subr.mxu0 %v523
      %1794 = vmatpush1.msra.mxu0 %v522
      %1795 = vmatprep.subr.mxu0 %v528
      %1796 = vmatpush1.msra.mxu0 %v527
      %1797 = vmatprep.subr.mxu0 %v533
      %1798 = vmatpush1.msra.mxu0 %v532
      %1799 = vmatprep.subr.mxu0 %v538
      %1800 = vmatpush1.msra.mxu0 %v537
      %1801 = vmatprep.subr.mxu0 %v543
      %1802 = vmatpush1.msra.mxu0 %v542
      %1803 = vmatprep.subr.mxu0 %v548
      %1804 = vmatpush1.msra.mxu0 %v547
      %1805 = vmatprep.subr.mxu0 %v553
      %1806 = vmatpush1.msra.mxu0 %v552
      %1807 = vmatprep.subr.mxu0 %v558
      %1808 = vmatpush1.msra.mxu0 %v557
      %1809 = vmatprep.subr.mxu0 %v563
      %1810 = vmatpush1.msra.mxu0 %v562
      %1811 = vmatprep.subr.mxu0 %v568
      %1812 = vmatpush1.msra.mxu0 %v567
      %1813 = vmatprep.subr.mxu0 %v573
      %1814 = vmatpush1.msra.mxu0 %v572
      %1815 = vmatprep.subr.mxu0 %v578
      %1816 = vmatpush1.msra.mxu0 %v577
      %1817 = vmatprep.subr.mxu0 %v583
      %1818 = vmatpush1.msra.mxu0 %v582
      %1819 = vmatprep.subr.mxu0 %v588
      %1820 = vmatpush1.msra.mxu0 %v587
      %1821 = vmatprep.subr.mxu0 %v593
      %1822 = vmatpush1.msra.mxu0 %v592
      %1823 = vmatprep.mubr.f32.mxu0 %v266
      %1824 = vmatmul.mubr.f32.gmra.mrb[0].mxu0 %v265
      %v1825 = vpop.f32.mrb[0].mxu0
      %v1826 = vadd.f32 %v1755, %v1825
      %v1827 = vpop.f32.mrb[0].mxu0
      %v1828 = vadd.f32 %v1757, %v1827
      %1829 = vdwg.mxu0
      %1830 = vmatprep.subr.mxu0 %v598
      %1831 = vmatpush1.msra.mxu0 %v597
      %1832 = vmatprep.subr.mxu0 %v603
      %1833 = vmatpush1.msra.mxu0 %v602
      %1834 = vmatprep.subr.mxu0 %v608
      %1835 = vmatpush1.msra.mxu0 %v607
      %1836 = vmatprep.subr.mxu0 %v613
      %1837 = vmatpush1.msra.mxu0 %v612
      %1838 = vmatprep.subr.mxu0 %v618
      %1839 = vmatpush1.msra.mxu0 %v617
      %1840 = vmatprep.subr.mxu0 %v623
      %1841 = vmatpush1.msra.mxu0 %v622
      %1842 = vmatprep.subr.mxu0 %v628
      %1843 = vmatpush1.msra.mxu0 %v627
      %1844 = vmatprep.subr.mxu0 %v633
      %1845 = vmatpush1.msra.mxu0 %v632
      %1846 = vmatprep.subr.mxu0 %v638
      %1847 = vmatpush1.msra.mxu0 %v637
      %1848 = vmatprep.subr.mxu0 %v643
      %1849 = vmatpush1.msra.mxu0 %v642
      %1850 = vmatprep.subr.mxu0 %v648
      %1851 = vmatpush1.msra.mxu0 %v647
      %1852 = vmatprep.subr.mxu0 %v653
      %1853 = vmatpush1.msra.mxu0 %v652
      %1854 = vmatprep.subr.mxu0 %v658
      %1855 = vmatpush1.msra.mxu0 %v657
      %1856 = vmatprep.subr.mxu0 %v663
      %1857 = vmatpush1.msra.mxu0 %v662
      %1858 = vmatprep.subr.mxu0 %v668
      %1859 = vmatpush1.msra.mxu0 %v667
      %1860 = vmatprep.subr.mxu0 %v673
      %1861 = vmatpush1.msra.mxu0 %v672
      %1862 = vmatprep.subr.mxu0 %v678
      %1863 = vmatpush1.msra.mxu0 %v677
      %1864 = vmatprep.subr.mxu0 %v683
      %1865 = vmatpush1.msra.mxu0 %v682
      %1866 = vmatprep.subr.mxu0 %v688
      %1867 = vmatpush1.msra.mxu0 %v687
      %1868 = vmatprep.subr.mxu0 %v693
      %1869 = vmatpush1.msra.mxu0 %v692
      %1870 = vmatprep.subr.mxu0 %v698
      %1871 = vmatpush1.msra.mxu0 %v697
      %1872 = vmatprep.subr.mxu0 %v703
      %1873 = vmatpush1.msra.mxu0 %v702
      %1874 = vmatprep.subr.mxu0 %v708
      %1875 = vmatpush1.msra.mxu0 %v707
      %1876 = vmatprep.subr.mxu0 %v713
      %1877 = vmatpush1.msra.mxu0 %v712
      %1878 = vmatprep.subr.mxu0 %v718
      %1879 = vmatpush1.msra.mxu0 %v717
      %1880 = vmatprep.subr.mxu0 %v723
      %1881 = vmatpush1.msra.mxu0 %v722
      %1882 = vmatprep.subr.mxu0 %v728
      %1883 = vmatpush1.msra.mxu0 %v727
      %1884 = vmatprep.subr.mxu0 %v733
      %1885 = vmatpush1.msra.mxu0 %v732
      %1886 = vmatprep.subr.mxu0 %v738
      %1887 = vmatpush1.msra.mxu0 %v737
      %1888 = vmatprep.subr.mxu0 %v743
      %1889 = vmatpush1.msra.mxu0 %v742
      %1890 = vmatprep.subr.mxu0 %v748
      %1891 = vmatpush1.msra.mxu0 %v747
      %1892 = vmatprep.subr.mxu0 %v753
      %1893 = vmatpush1.msra.mxu0 %v752
      %1894 = vmatprep.mubr.f32.mxu0 %v268
      %1895 = vmatmul.mubr.f32.gmra.mrb[0].mxu0 %v267
      %v1896 = vpop.f32.mrb[0].mxu0
      %v1897 = vadd.f32 %v1826, %v1896
      %v1898 = vpop.f32.mrb[0].mxu0
      %v1899 = vadd.f32 %v1828, %v1898
      %1900 = vdwg.mxu0
      %1901 = vmatprep.subr.mxu0 %v758
      %1902 = vmatpush1.msra.mxu0 %v757
      %1903 = vmatprep.subr.mxu0 %v763
      %1904 = vmatpush1.msra.mxu0 %v762
      %1905 = vmatprep.subr.mxu0 %v768
      %1906 = vmatpush1.msra.mxu0 %v767
      %1907 = vmatprep.subr.mxu0 %v773
      %1908 = vmatpush1.msra.mxu0 %v772
      %1909 = vmatprep.subr.mxu0 %v778
      %1910 = vmatpush1.msra.mxu0 %v777
      %1911 = vmatprep.subr.mxu0 %v783
      %1912 = vmatpush1.msra.mxu0 %v782
      %1913 = vmatprep.subr.mxu0 %v788
      %1914 = vmatpush1.msra.mxu0 %v787
      %1915 = vmatprep.subr.mxu0 %v793
      %1916 = vmatpush1.msra.mxu0 %v792
      %1917 = vmatprep.subr.mxu0 %v798
      %1918 = vmatpush1.msra.mxu0 %v797
      %1919 = vmatprep.subr.mxu0 %v803
      %1920 = vmatpush1.msra.mxu0 %v802
      %1921 = vmatprep.subr.mxu0 %v808
      %1922 = vmatpush1.msra.mxu0 %v807
      %1923 = vmatprep.subr.mxu0 %v813
      %1924 = vmatpush1.msra.mxu0 %v812
      %1925 = vmatprep.subr.mxu0 %v818
      %1926 = vmatpush1.msra.mxu0 %v817
      %1927 = vmatprep.subr.mxu0 %v823
      %1928 = vmatpush1.msra.mxu0 %v822
      %1929 = vmatprep.subr.mxu0 %v828
      %1930 = vmatpush1.msra.mxu0 %v827
      %1931 = vmatprep.subr.mxu0 %v833
      %1932 = vmatpush1.msra.mxu0 %v832
      %1933 = vmatprep.subr.mxu0 %v838
      %1934 = vmatpush1.msra.mxu0 %v837
      %1935 = vmatprep.subr.mxu0 %v843
      %1936 = vmatpush1.msra.mxu0 %v842
      %1937 = vmatprep.subr.mxu0 %v848
      %1938 = vmatpush1.msra.mxu0 %v847
      %1939 = vmatprep.subr.mxu0 %v853
      %1940 = vmatpush1.msra.mxu0 %v852
      %1941 = vmatprep.subr.mxu0 %v858
      %1942 = vmatpush1.msra.mxu0 %v857
      %1943 = vmatprep.subr.mxu0 %v863
      %1944 = vmatpush1.msra.mxu0 %v862
      %1945 = vmatprep.subr.mxu0 %v868
      %1946 = vmatpush1.msra.mxu0 %v867
      %1947 = vmatprep.subr.mxu0 %v873
      %1948 = vmatpush1.msra.mxu0 %v872
      %1949 = vmatprep.subr.mxu0 %v878
      %1950 = vmatpush1.msra.mxu0 %v877
      %1951 = vmatprep.subr.mxu0 %v883
      %1952 = vmatpush1.msra.mxu0 %v882
      %1953 = vmatprep.subr.mxu0 %v888
      %1954 = vmatpush1.msra.mxu0 %v887
      %1955 = vmatprep.subr.mxu0 %v893
      %1956 = vmatpush1.msra.mxu0 %v892
      %1957 = vmatprep.subr.mxu0 %v898
      %1958 = vmatpush1.msra.mxu0 %v897
      %1959 = vmatprep.subr.mxu0 %v903
      %1960 = vmatpush1.msra.mxu0 %v902
      %1961 = vmatprep.subr.mxu0 %v908
      %1962 = vmatpush1.msra.mxu0 %v907
      %1963 = vmatprep.subr.mxu0 %v913
      %1964 = vmatpush1.msra.mxu0 %v912
      %1965 = vmatprep.mubr.f32.mxu0 %v270
      %1966 = vmatmul.mubr.f32.gmra.mrb[0].mxu0 %v269
      %v1967 = vpop.f32.mrb[0].mxu0
      %v1968 = vadd.f32 %v1897, %v1967
      %v1969 = vpop.f32.mrb[0].mxu0
      %v1970 = vadd.f32 %v1899, %v1969
      %1971 = vdwg.mxu0
      %1972 = vmatprep.subr.mxu0 %v918
      %1973 = vmatpush1.msra.mxu0 %v917
      %1974 = vmatprep.subr.mxu0 %v923
      %1975 = vmatpush1.msra.mxu0 %v922
      %1976 = vmatprep.subr.mxu0 %v928
      %1977 = vmatpush1.msra.mxu0 %v927
      %1978 = vmatprep.subr.mxu0 %v933
      %1979 = vmatpush1.msra.mxu0 %v932
      %1980 = vmatprep.subr.mxu0 %v938
      %1981 = vmatpush1.msra.mxu0 %v937
      %1982 = vmatprep.subr.mxu0 %v943
      %1983 = vmatpush1.msra.mxu0 %v942
      %1984 = vmatprep.subr.mxu0 %v948
      %1985 = vmatpush1.msra.mxu0 %v947
      %1986 = vmatprep.subr.mxu0 %v953
      %1987 = vmatpush1.msra.mxu0 %v952
      %1988 = vmatprep.subr.mxu0 %v958
      %1989 = vmatpush1.msra.mxu0 %v957
      %1990 = vmatprep.subr.mxu0 %v963
      %1991 = vmatpush1.msra.mxu0 %v962
      %1992 = vmatprep.subr.mxu0 %v968
      %1993 = vmatpush1.msra.mxu0 %v967
      %1994 = vmatprep.subr.mxu0 %v973
      %1995 = vmatpush1.msra.mxu0 %v972
      %1996 = vmatprep.subr.mxu0 %v978
      %1997 = vmatpush1.msra.mxu0 %v977
      %1998 = vmatprep.subr.mxu0 %v983
      %1999 = vmatpush1.msra.mxu0 %v982
      %2000 = vmatprep.subr.mxu0 %v988
      %2001 = vmatpush1.msra.mxu0 %v987
      %2002 = vmatprep.subr.mxu0 %v993
      %2003 = vmatpush1.msra.mxu0 %v992
      %2004 = vmatprep.subr.mxu0 %v998
      %2005 = vmatpush1.msra.mxu0 %v997
      %2006 = vmatprep.subr.mxu0 %v1003
      %2007 = vmatpush1.msra.mxu0 %v1002
      %2008 = vmatprep.subr.mxu0 %v1008
      %2009 = vmatpush1.msra.mxu0 %v1007
      %2010 = vmatprep.subr.mxu0 %v1013
      %2011 = vmatpush1.msra.mxu0 %v1012
      %2012 = vmatprep.subr.mxu0 %v1018
      %2013 = vmatpush1.msra.mxu0 %v1017
      %2014 = vmatprep.subr.mxu0 %v1023
      %2015 = vmatpush1.msra.mxu0 %v1022
      %2016 = vmatprep.subr.mxu0 %v1028
      %2017 = vmatpush1.msra.mxu0 %v1027
      %2018 = vmatprep.subr.mxu0 %v1033
      %2019 = vmatpush1.msra.mxu0 %v1032
      %2020 = vmatprep.subr.mxu0 %v1038
      %2021 = vmatpush1.msra.mxu0 %v1037
      %2022 = vmatprep.subr.mxu0 %v1043
      %2023 = vmatpush1.msra.mxu0 %v1042
      %2024 = vmatprep.subr.mxu0 %v1048
      %2025 = vmatpush1.msra.mxu0 %v1047
      %2026 = vmatprep.subr.mxu0 %v1053
      %2027 = vmatpush1.msra.mxu0 %v1052
      %2028 = vmatprep.subr.mxu0 %v1058
      %2029 = vmatpush1.msra.mxu0 %v1057
      %2030 = vmatprep.subr.mxu0 %v1063
      %2031 = vmatpush1.msra.mxu0 %v1062
      %2032 = vmatprep.subr.mxu0 %v1068
      %2033 = vmatpush1.msra.mxu0 %v1067
      %2034 = vmatprep.subr.mxu0 %v1073
      %2035 = vmatpush1.msra.mxu0 %v1072
      %2036 = vmatprep.mubr.f32.mxu0 %v272
      %2037 = vmatmul.mubr.f32.gmra.mrb[0].mxu0 %v271
      %v2038 = vpop.f32.mrb[0].mxu0
      %v2039 = vadd.f32 %v1968, %v2038
      %v2040 = vpop.f32.mrb[0].mxu0
      %v2041 = vadd.f32 %v1970, %v2040
      %2042 = vdwg.mxu0
      %2043 = vmatprep.subr.mxu0 %v1078
      %2044 = vmatpush1.msra.mxu0 %v1077
      %2045 = vmatprep.subr.mxu0 %v1083
      %2046 = vmatpush1.msra.mxu0 %v1082
      %2047 = vmatprep.subr.mxu0 %v1088
      %2048 = vmatpush1.msra.mxu0 %v1087
      %2049 = vmatprep.subr.mxu0 %v1093
      %2050 = vmatpush1.msra.mxu0 %v1092
      %2051 = vmatprep.subr.mxu0 %v1098
      %2052 = vmatpush1.msra.mxu0 %v1097
      %2053 = vmatprep.subr.mxu0 %v1103
      %2054 = vmatpush1.msra.mxu0 %v1102
      %2055 = vmatprep.subr.mxu0 %v1108
      %2056 = vmatpush1.msra.mxu0 %v1107
      %2057 = vmatprep.subr.mxu0 %v1113
      %2058 = vmatpush1.msra.mxu0 %v1112
      %2059 = vmatprep.subr.mxu0 %v1118
      %2060 = vmatpush1.msra.mxu0 %v1117
      %2061 = vmatprep.subr.mxu0 %v1123
      %2062 = vmatpush1.msra.mxu0 %v1122
      %2063 = vmatprep.subr.mxu0 %v1128
      %2064 = vmatpush1.msra.mxu0 %v1127
      %2065 = vmatprep.subr.mxu0 %v1133
      %2066 = vmatpush1.msra.mxu0 %v1132
      %2067 = vmatprep.subr.mxu0 %v1138
      %2068 = vmatpush1.msra.mxu0 %v1137
      %2069 = vmatprep.subr.mxu0 %v1143
      %2070 = vmatpush1.msra.mxu0 %v1142
      %2071 = vmatprep.subr.mxu0 %v1148
      %2072 = vmatpush1.msra.mxu0 %v1147
      %2073 = vmatprep.subr.mxu0 %v1153
      %2074 = vmatpush1.msra.mxu0 %v1152
      %2075 = vmatprep.subr.mxu0 %v1158
      %2076 = vmatpush1.msra.mxu0 %v1157
      %2077 = vmatprep.subr.mxu0 %v1163
      %2078 = vmatpush1.msra.mxu0 %v1162
      %2079 = vmatprep.subr.mxu0 %v1168
      %2080 = vmatpush1.msra.mxu0 %v1167
      %2081 = vmatprep.subr.mxu0 %v1173
      %2082 = vmatpush1.msra.mxu0 %v1172
      %2083 = vmatprep.subr.mxu0 %v1178
      %2084 = vmatpush1.msra.mxu0 %v1177
      %2085 = vmatprep.subr.mxu0 %v1183
      %2086 = vmatpush1.msra.mxu0 %v1182
      %2087 = vmatprep.subr.mxu0 %v1188
      %2088 = vmatpush1.msra.mxu0 %v1187
      %2089 = vmatprep.subr.mxu0 %v1193
      %2090 = vmatpush1.msra.mxu0 %v1192
      %2091 = vmatprep.subr.mxu0 %v1198
      %2092 = vmatpush1.msra.mxu0 %v1197
      %2093 = vmatprep.subr.mxu0 %v1203
      %2094 = vmatpush1.msra.mxu0 %v1202
      %2095 = vmatprep.subr.mxu0 %v1208
      %2096 = vmatpush1.msra.mxu0 %v1207
      %2097 = vmatprep.subr.mxu0 %v1213
      %2098 = vmatpush1.msra.mxu0 %v1212
      %2099 = vmatprep.subr.mxu0 %v1218
      %2100 = vmatpush1.msra.mxu0 %v1217
      %2101 = vmatprep.subr.mxu0 %v1223
      %2102 = vmatpush1.msra.mxu0 %v1222
      %2103 = vmatprep.subr.mxu0 %v1228
      %2104 = vmatpush1.msra.mxu0 %v1227
      %2105 = vmatprep.subr.mxu0 %v1233
      %2106 = vmatpush1.msra.mxu0 %v1232
      %2107 = vmatprep.mubr.f32.mxu0 %v274
      %2108 = vmatmul.mubr.f32.gmra.mrb[0].mxu0 %v273
      %v2109 = vpop.f32.mrb[0].mxu0
      %v2110 = vadd.f32 %v2039, %v2109
      %v2111 = vpop.f32.mrb[0].mxu0
      %v2112 = vadd.f32 %v2041, %v2111
      %2113 = vdwg.mxu0
      %2114 = vmatprep.subr.mxu0 0.0
      %2115 = vmatpush1.msra.mxu0 %v279
      %2116 = vmatprep.subr.mxu0 0.0
      %2117 = vmatpush1.msra.mxu0 %v284
      %2118 = vmatprep.subr.mxu0 0.0
      %2119 = vmatpush1.msra.mxu0 %v289
      %2120 = vmatprep.subr.mxu0 0.0
      %2121 = vmatpush1.msra.mxu0 %v294
      %2122 = vmatprep.subr.mxu0 0.0
      %2123 = vmatpush1.msra.mxu0 %v299
      %2124 = vmatprep.subr.mxu0 0.0
      %2125 = vmatpush1.msra.mxu0 %v304
      %2126 = vmatprep.subr.mxu0 0.0
      %2127 = vmatpush1.msra.mxu0 %v309
      %2128 = vmatprep.subr.mxu0 0.0
      %2129 = vmatpush1.msra.mxu0 %v314
      %2130 = vmatprep.subr.mxu0 0.0
      %2131 = vmatpush1.msra.mxu0 %v319
      %2132 = vmatprep.subr.mxu0 0.0
      %2133 = vmatpush1.msra.mxu0 %v324
      %2134 = vmatprep.subr.mxu0 0.0
      %2135 = vmatpush1.msra.mxu0 %v329
      %2136 = vmatprep.subr.mxu0 0.0
      %2137 = vmatpush1.msra.mxu0 %v334
      %2138 = vmatprep.subr.mxu0 0.0
      %2139 = vmatpush1.msra.mxu0 %v339
      %2140 = vmatprep.subr.mxu0 0.0
      %2141 = vmatpush1.msra.mxu0 %v344
      %2142 = vmatprep.subr.mxu0 0.0
      %2143 = vmatpush1.msra.mxu0 %v349
      %2144 = vmatprep.subr.mxu0 0.0
      %2145 = vmatpush1.msra.mxu0 %v354
      %2146 = vmatprep.subr.mxu0 0.0
      %2147 = vmatpush1.msra.mxu0 %v359
      %2148 = vmatprep.subr.mxu0 0.0
      %2149 = vmatpush1.msra.mxu0 %v364
      %2150 = vmatprep.subr.mxu0 0.0
      %2151 = vmatpush1.msra.mxu0 %v369
      %2152 = vmatprep.subr.mxu0 0.0
      %2153 = vmatpush1.msra.mxu0 %v374
      %2154 = vmatprep.subr.mxu0 0.0
      %2155 = vmatpush1.msra.mxu0 %v379
      %2156 = vmatprep.subr.mxu0 0.0
      %2157 = vmatpush1.msra.mxu0 %v384
      %2158 = vmatprep.subr.mxu0 0.0
      %2159 = vmatpush1.msra.mxu0 %v389
      %2160 = vmatprep.subr.mxu0 0.0
      %2161 = vmatpush1.msra.mxu0 %v394
      %2162 = vmatprep.subr.mxu0 0.0
      %2163 = vmatpush1.msra.mxu0 %v399
      %2164 = vmatprep.subr.mxu0 0.0
      %2165 = vmatpush1.msra.mxu0 %v404
      %2166 = vmatprep.subr.mxu0 0.0
      %2167 = vmatpush1.msra.mxu0 %v409
      %2168 = vmatprep.subr.mxu0 0.0
      %2169 = vmatpush1.msra.mxu0 %v414
      %2170 = vmatprep.subr.mxu0 0.0
      %2171 = vmatpush1.msra.mxu0 %v419
      %2172 = vmatprep.subr.mxu0 0.0
      %2173 = vmatpush1.msra.mxu0 %v424
      %2174 = vmatprep.subr.mxu0 0.0
      %2175 = vmatpush1.msra.mxu0 %v429
      %2176 = vmatprep.subr.mxu0 0.0
      %2177 = vmatpush1.msra.mxu0 %v434
      %2178 = vmatprep.mubr.f32.mxu0 %v264
      %2179 = vmatmul.mubr.f32.gmra.mrb[0].mxu0 %v263
      %v2180 = vpop.f32.mrb[0].mxu0
      %v2181 = vadd.f32 %v1256, %v2180
      %v2182 = vpop.f32.mrb[0].mxu0
      %2183 = vdwg.mxu0
      %2184 = vmatprep.subr.mxu0 0.0
      %2185 = vmatpush1.msra.mxu0 %v439
      %2186 = vmatprep.subr.mxu0 0.0
      %2187 = vmatpush1.msra.mxu0 %v444
      %2188 = vmatprep.subr.mxu0 0.0
      %2189 = vmatpush1.msra.mxu0 %v449
      %2190 = vmatprep.subr.mxu0 0.0
      %2191 = vmatpush1.msra.mxu0 %v454
      %2192 = vmatprep.subr.mxu0 0.0
      %2193 = vmatpush1.msra.mxu0 %v459
      %2194 = vmatprep.subr.mxu0 0.0
      %2195 = vmatpush1.msra.mxu0 %v464
      %2196 = vmatprep.subr.mxu0 0.0
      %2197 = vmatpush1.msra.mxu0 %v469
      %2198 = vmatprep.subr.mxu0 0.0
      %2199 = vmatpush1.msra.mxu0 %v474
      %2200 = vmatprep.subr.mxu0 0.0
      %2201 = vmatpush1.msra.mxu0 %v479
      %2202 = vmatprep.subr.mxu0 0.0
      %2203 = vmatpush1.msra.mxu0 %v484
      %2204 = vmatprep.subr.mxu0 0.0
      %2205 = vmatpush1.msra.mxu0 %v489
      %2206 = vmatprep.subr.mxu0 0.0
      %2207 = vmatpush1.msra.mxu0 %v494
      %2208 = vmatprep.subr.mxu0 0.0
      %2209 = vmatpush1.msra.mxu0 %v499
      %2210 = vmatprep.subr.mxu0 0.0
      %2211 = vmatpush1.msra.mxu0 %v504
      %2212 = vmatprep.subr.mxu0 0.0
      %2213 = vmatpush1.msra.mxu0 %v509
      %2214 = vmatprep.subr.mxu0 0.0
      %2215 = vmatpush1.msra.mxu0 %v514
      %2216 = vmatprep.subr.mxu0 0.0
      %2217 = vmatpush1.msra.mxu0 %v519
      %2218 = vmatprep.subr.mxu0 0.0
      %2219 = vmatpush1.msra.mxu0 %v524
      %2220 = vmatprep.subr.mxu0 0.0
      %2221 = vmatpush1.msra.mxu0 %v529
      %2222 = vmatprep.subr.mxu0 0.0
      %2223 = vmatpush1.msra.mxu0 %v534
      %2224 = vmatprep.subr.mxu0 0.0
      %2225 = vmatpush1.msra.mxu0 %v539
      %2226 = vmatprep.subr.mxu0 0.0
      %2227 = vmatpush1.msra.mxu0 %v544
      %2228 = vmatprep.subr.mxu0 0.0
      %2229 = vmatpush1.msra.mxu0 %v549
      %2230 = vmatprep.subr.mxu0 0.0
      %2231 = vmatpush1.msra.mxu0 %v554
      %2232 = vmatprep.subr.mxu0 0.0
      %2233 = vmatpush1.msra.mxu0 %v559
      %2234 = vmatprep.subr.mxu0 0.0
      %2235 = vmatpush1.msra.mxu0 %v564
      %2236 = vmatprep.subr.mxu0 0.0
      %2237 = vmatpush1.msra.mxu0 %v569
      %2238 = vmatprep.subr.mxu0 0.0
      %2239 = vmatpush1.msra.mxu0 %v574
      %2240 = vmatprep.subr.mxu0 0.0
      %2241 = vmatpush1.msra.mxu0 %v579
      %2242 = vmatprep.subr.mxu0 0.0
      %2243 = vmatpush1.msra.mxu0 %v584
      %2244 = vmatprep.subr.mxu0 0.0
      %2245 = vmatpush1.msra.mxu0 %v589
      %2246 = vmatprep.subr.mxu0 0.0
      %2247 = vmatpush1.msra.mxu0 %v594
      %2248 = vmatprep.mubr.f32.mxu0 %v266
      %2249 = vmatmul.mubr.f32.gmra.mrb[0].mxu0 %v265
      %v2250 = vpop.f32.mrb[0].mxu0
      %v2251 = vadd.f32 %v2181, %v2250
      %v2252 = vpop.f32.mrb[0].mxu0
      %2253 = vdwg.mxu0
      %2254 = vmatprep.subr.mxu0 0.0
      %2255 = vmatpush1.msra.mxu0 %v599
      %2256 = vmatprep.subr.mxu0 0.0
      %2257 = vmatpush1.msra.mxu0 %v604
      %2258 = vmatprep.subr.mxu0 0.0
      %2259 = vmatpush1.msra.mxu0 %v609
      %2260 = vmatprep.subr.mxu0 0.0
      %2261 = vmatpush1.msra.mxu0 %v614
      %2262 = vmatprep.subr.mxu0 0.0
      %2263 = vmatpush1.msra.mxu0 %v619
      %2264 = vmatprep.subr.mxu0 0.0
      %2265 = vmatpush1.msra.mxu0 %v624
      %2266 = vmatprep.subr.mxu0 0.0
      %2267 = vmatpush1.msra.mxu0 %v629
      %2268 = vmatprep.subr.mxu0 0.0
      %2269 = vmatpush1.msra.mxu0 %v634
      %2270 = vmatprep.subr.mxu0 0.0
      %2271 = vmatpush1.msra.mxu0 %v639
      %2272 = vmatprep.subr.mxu0 0.0
      %2273 = vmatpush1.msra.mxu0 %v644
      %2274 = vmatprep.subr.mxu0 0.0
      %2275 = vmatpush1.msra.mxu0 %v649
      %2276 = vmatprep.subr.mxu0 0.0
      %2277 = vmatpush1.msra.mxu0 %v654
      %2278 = vmatprep.subr.mxu0 0.0
      %2279 = vmatpush1.msra.mxu0 %v659
      %2280 = vmatprep.subr.mxu0 0.0
      %2281 = vmatpush1.msra.mxu0 %v664
      %2282 = vmatprep.subr.mxu0 0.0
      %2283 = vmatpush1.msra.mxu0 %v669
      %2284 = vmatprep.subr.mxu0 0.0
      %2285 = vmatpush1.msra.mxu0 %v674
      %2286 = vmatprep.subr.mxu0 0.0
      %2287 = vmatpush1.msra.mxu0 %v679
      %2288 = vmatprep.subr.mxu0 0.0
      %2289 = vmatpush1.msra.mxu0 %v684
      %2290 = vmatprep.subr.mxu0 0.0
      %2291 = vmatpush1.msra.mxu0 %v689
      %2292 = vmatprep.subr.mxu0 0.0
      %2293 = vmatpush1.msra.mxu0 %v694
      %2294 = vmatprep.subr.mxu0 0.0
      %2295 = vmatpush1.msra.mxu0 %v699
      %2296 = vmatprep.subr.mxu0 0.0
      %2297 = vmatpush1.msra.mxu0 %v704
      %2298 = vmatprep.subr.mxu0 0.0
      %2299 = vmatpush1.msra.mxu0 %v709
      %2300 = vmatprep.subr.mxu0 0.0
      %2301 = vmatpush1.msra.mxu0 %v714
      %2302 = vmatprep.subr.mxu0 0.0
      %2303 = vmatpush1.msra.mxu0 %v719
      %2304 = vmatprep.subr.mxu0 0.0
      %2305 = vmatpush1.msra.mxu0 %v724
      %2306 = vmatprep.subr.mxu0 0.0
      %2307 = vmatpush1.msra.mxu0 %v729
      %2308 = vmatprep.subr.mxu0 0.0
      %2309 = vmatpush1.msra.mxu0 %v734
      %2310 = vmatprep.subr.mxu0 0.0
      %2311 = vmatpush1.msra.mxu0 %v739
      %2312 = vmatprep.subr.mxu0 0.0
      %2313 = vmatpush1.msra.mxu0 %v744
      %2314 = vmatprep.subr.mxu0 0.0
      %2315 = vmatpush1.msra.mxu0 %v749
      %2316 = vmatprep.subr.mxu0 0.0
      %2317 = vmatpush1.msra.mxu0 %v754
      %2318 = vmatprep.mubr.f32.mxu0 %v268
      %2319 = vmatmul.mubr.f32.gmra.mrb[0].mxu0 %v267
      %v2320 = vpop.f32.mrb[0].mxu0
      %v2321 = vadd.f32 %v2251, %v2320
      %v2322 = vpop.f32.mrb[0].mxu0
      %2323 = vdwg.mxu0
      %2324 = vmatprep.subr.mxu0 0.0
      %2325 = vmatpush1.msra.mxu0 %v759
      %2326 = vmatprep.subr.mxu0 0.0
      %2327 = vmatpush1.msra.mxu0 %v764
      %2328 = vmatprep.subr.mxu0 0.0
      %2329 = vmatpush1.msra.mxu0 %v769
      %2330 = vmatprep.subr.mxu0 0.0
      %2331 = vmatpush1.msra.mxu0 %v774
      %2332 = vmatprep.subr.mxu0 0.0
      %2333 = vmatpush1.msra.mxu0 %v779
      %2334 = vmatprep.subr.mxu0 0.0
      %2335 = vmatpush1.msra.mxu0 %v784
      %2336 = vmatprep.subr.mxu0 0.0
      %2337 = vmatpush1.msra.mxu0 %v789
      %2338 = vmatprep.subr.mxu0 0.0
      %2339 = vmatpush1.msra.mxu0 %v794
      %2340 = vmatprep.subr.mxu0 0.0
      %2341 = vmatpush1.msra.mxu0 %v799
      %2342 = vmatprep.subr.mxu0 0.0
      %2343 = vmatpush1.msra.mxu0 %v804
      %2344 = vmatprep.subr.mxu0 0.0
      %2345 = vmatpush1.msra.mxu0 %v809
      %2346 = vmatprep.subr.mxu0 0.0
      %2347 = vmatpush1.msra.mxu0 %v814
      %2348 = vmatprep.subr.mxu0 0.0
      %2349 = vmatpush1.msra.mxu0 %v819
      %2350 = vmatprep.subr.mxu0 0.0
      %2351 = vmatpush1.msra.mxu0 %v824
      %2352 = vmatprep.subr.mxu0 0.0
      %2353 = vmatpush1.msra.mxu0 %v829
      %2354 = vmatprep.subr.mxu0 0.0
      %2355 = vmatpush1.msra.mxu0 %v834
      %2356 = vmatprep.subr.mxu0 0.0
      %2357 = vmatpush1.msra.mxu0 %v839
      %2358 = vmatprep.subr.mxu0 0.0
      %2359 = vmatpush1.msra.mxu0 %v844
      %2360 = vmatprep.subr.mxu0 0.0
      %2361 = vmatpush1.msra.mxu0 %v849
      %2362 = vmatprep.subr.mxu0 0.0
      %2363 = vmatpush1.msra.mxu0 %v854
      %2364 = vmatprep.subr.mxu0 0.0
      %2365 = vmatpush1.msra.mxu0 %v859
      %2366 = vmatprep.subr.mxu0 0.0
      %2367 = vmatpush1.msra.mxu0 %v864
      %2368 = vmatprep.subr.mxu0 0.0
      %2369 = vmatpush1.msra.mxu0 %v869
      %2370 = vmatprep.subr.mxu0 0.0
      %2371 = vmatpush1.msra.mxu0 %v874
      %2372 = vmatprep.subr.mxu0 0.0
      %2373 = vmatpush1.msra.mxu0 %v879
      %2374 = vmatprep.subr.mxu0 0.0
      %2375 = vmatpush1.msra.mxu0 %v884
      %2376 = vmatprep.subr.mxu0 0.0
      %2377 = vmatpush1.msra.mxu0 %v889
      %2378 = vmatprep.subr.mxu0 0.0
      %2379 = vmatpush1.msra.mxu0 %v894
      %2380 = vmatprep.subr.mxu0 0.0
      %2381 = vmatpush1.msra.mxu0 %v899
      %2382 = vmatprep.subr.mxu0 0.0
      %2383 = vmatpush1.msra.mxu0 %v904
      %2384 = vmatprep.subr.mxu0 0.0
      %2385 = vmatpush1.msra.mxu0 %v909
      %2386 = vmatprep.subr.mxu0 0.0
      %2387 = vmatpush1.msra.mxu0 %v914
      %2388 = vmatprep.mubr.f32.mxu0 %v270
      %2389 = vmatmul.mubr.f32.gmra.mrb[0].mxu0 %v269
      %v2390 = vpop.f32.mrb[0].mxu0
      %v2391 = vadd.f32 %v2321, %v2390
      %v2392 = vpop.f32.mrb[0].mxu0
      %2393 = vdwg.mxu0
      %2394 = vmatprep.subr.mxu0 0.0
      %2395 = vmatpush1.msra.mxu0 %v919
      %2396 = vmatprep.subr.mxu0 0.0
      %2397 = vmatpush1.msra.mxu0 %v924
      %2398 = vmatprep.subr.mxu0 0.0
      %2399 = vmatpush1.msra.mxu0 %v929
      %2400 = vmatprep.subr.mxu0 0.0
      %2401 = vmatpush1.msra.mxu0 %v934
      %2402 = vmatprep.subr.mxu0 0.0
      %2403 = vmatpush1.msra.mxu0 %v939
      %2404 = vmatprep.subr.mxu0 0.0
      %2405 = vmatpush1.msra.mxu0 %v944
      %2406 = vmatprep.subr.mxu0 0.0
      %2407 = vmatpush1.msra.mxu0 %v949
      %2408 = vmatprep.subr.mxu0 0.0
      %2409 = vmatpush1.msra.mxu0 %v954
      %2410 = vmatprep.subr.mxu0 0.0
      %2411 = vmatpush1.msra.mxu0 %v959
      %2412 = vmatprep.subr.mxu0 0.0
      %2413 = vmatpush1.msra.mxu0 %v964
      %2414 = vmatprep.subr.mxu0 0.0
      %2415 = vmatpush1.msra.mxu0 %v969
      %2416 = vmatprep.subr.mxu0 0.0
      %2417 = vmatpush1.msra.mxu0 %v974
      %2418 = vmatprep.subr.mxu0 0.0
      %2419 = vmatpush1.msra.mxu0 %v979
      %2420 = vmatprep.subr.mxu0 0.0
      %2421 = vmatpush1.msra.mxu0 %v984
      %2422 = vmatprep.subr.mxu0 0.0
      %2423 = vmatpush1.msra.mxu0 %v989
      %2424 = vmatprep.subr.mxu0 0.0
      %2425 = vmatpush1.msra.mxu0 %v994
      %2426 = vmatprep.subr.mxu0 0.0
      %2427 = vmatpush1.msra.mxu0 %v999
      %2428 = vmatprep.subr.mxu0 0.0
      %2429 = vmatpush1.msra.mxu0 %v1004
      %2430 = vmatprep.subr.mxu0 0.0
      %2431 = vmatpush1.msra.mxu0 %v1009
      %2432 = vmatprep.subr.mxu0 0.0
      %2433 = vmatpush1.msra.mxu0 %v1014
      %2434 = vmatprep.subr.mxu0 0.0
      %2435 = vmatpush1.msra.mxu0 %v1019
      %2436 = vmatprep.subr.mxu0 0.0
      %2437 = vmatpush1.msra.mxu0 %v1024
      %2438 = vmatprep.subr.mxu0 0.0
      %2439 = vmatpush1.msra.mxu0 %v1029
      %2440 = vmatprep.subr.mxu0 0.0
      %2441 = vmatpush1.msra.mxu0 %v1034
      %2442 = vmatprep.subr.mxu0 0.0
      %2443 = vmatpush1.msra.mxu0 %v1039
      %2444 = vmatprep.subr.mxu0 0.0
      %2445 = vmatpush1.msra.mxu0 %v1044
      %2446 = vmatprep.subr.mxu0 0.0
      %2447 = vmatpush1.msra.mxu0 %v1049
      %2448 = vmatprep.subr.mxu0 0.0
      %2449 = vmatpush1.msra.mxu0 %v1054
      %2450 = vmatprep.subr.mxu0 0.0
      %2451 = vmatpush1.msra.mxu0 %v1059
      %2452 = vmatprep.subr.mxu0 0.0
      %2453 = vmatpush1.msra.mxu0 %v1064
      %2454 = vmatprep.subr.mxu0 0.0
      %2455 = vmatpush1.msra.mxu0 %v1069
      %2456 = vmatprep.subr.mxu0 0.0
      %2457 = vmatpush1.msra.mxu0 %v1074
      %2458 = vmatprep.mubr.f32.mxu0 %v272
      %2459 = vmatmul.mubr.f32.gmra.mrb[0].mxu0 %v271
      %v2460 = vpop.f32.mrb[0].mxu0
      %v2461 = vadd.f32 %v2391, %v2460
      %v2462 = vpop.f32.mrb[0].mxu0
      %2463 = vdwg.mxu0
      %2464 = vmatprep.subr.mxu0 0.0
      %2465 = vmatpush1.msra.mxu0 %v1079
      %2466 = vmatprep.subr.mxu0 0.0
      %2467 = vmatpush1.msra.mxu0 %v1084
      %2468 = vmatprep.subr.mxu0 0.0
      %2469 = vmatpush1.msra.mxu0 %v1089
      %2470 = vmatprep.subr.mxu0 0.0
      %2471 = vmatpush1.msra.mxu0 %v1094
      %2472 = vmatprep.subr.mxu0 0.0
      %2473 = vmatpush1.msra.mxu0 %v1099
      %2474 = vmatprep.subr.mxu0 0.0
      %2475 = vmatpush1.msra.mxu0 %v1104
      %2476 = vmatprep.subr.mxu0 0.0
      %2477 = vmatpush1.msra.mxu0 %v1109
      %2478 = vmatprep.subr.mxu0 0.0
      %2479 = vmatpush1.msra.mxu0 %v1114
      %2480 = vmatprep.subr.mxu0 0.0
      %2481 = vmatpush1.msra.mxu0 %v1119
      %2482 = vmatprep.subr.mxu0 0.0
      %2483 = vmatpush1.msra.mxu0 %v1124
      %2484 = vmatprep.subr.mxu0 0.0
      %2485 = vmatpush1.msra.mxu0 %v1129
      %2486 = vmatprep.subr.mxu0 0.0
      %2487 = vmatpush1.msra.mxu0 %v1134
      %2488 = vmatprep.subr.mxu0 0.0
      %2489 = vmatpush1.msra.mxu0 %v1139
      %2490 = vmatprep.subr.mxu0 0.0
      %2491 = vmatpush1.msra.mxu0 %v1144
      %2492 = vmatprep.subr.mxu0 0.0
      %2493 = vmatpush1.msra.mxu0 %v1149
      %2494 = vmatprep.subr.mxu0 0.0
      %2495 = vmatpush1.msra.mxu0 %v1154
      %2496 = vmatprep.subr.mxu0 0.0
      %2497 = vmatpush1.msra.mxu0 %v1159
      %2498 = vmatprep.subr.mxu0 0.0
      %2499 = vmatpush1.msra.mxu0 %v1164
      %2500 = vmatprep.subr.mxu0 0.0
      %2501 = vmatpush1.msra.mxu0 %v1169
      %2502 = vmatprep.subr.mxu0 0.0
      %2503 = vmatpush1.msra.mxu0 %v1174
      %2504 = vmatprep.subr.mxu0 0.0
      %2505 = vmatpush1.msra.mxu0 %v1179
      %2506 = vmatprep.subr.mxu0 0.0
      %2507 = vmatpush1.msra.mxu0 %v1184
      %2508 = vmatprep.subr.mxu0 0.0
      %2509 = vmatpush1.msra.mxu0 %v1189
      %2510 = vmatprep.subr.mxu0 0.0
      %2511 = vmatpush1.msra.mxu0 %v1194
      %2512 = vmatprep.subr.mxu0 0.0
      %2513 = vmatpush1.msra.mxu0 %v1199
      %2514 = vmatprep.subr.mxu0 0.0
      %2515 = vmatpush1.msra.mxu0 %v1204
      %2516 = vmatprep.subr.mxu0 0.0
      %2517 = vmatpush1.msra.mxu0 %v1209
      %2518 = vmatprep.subr.mxu0 0.0
      %2519 = vmatpush1.msra.mxu0 %v1214
      %2520 = vmatprep.subr.mxu0 0.0
      %2521 = vmatpush1.msra.mxu0 %v1219
      %2522 = vmatprep.subr.mxu0 0.0
      %2523 = vmatpush1.msra.mxu0 %v1224
      %2524 = vmatprep.subr.mxu0 0.0
      %2525 = vmatpush1.msra.mxu0 %v1229
      %2526 = vmatprep.subr.mxu0 0.0
      %2527 = vmatpush1.msra.mxu0 %v1234
      %2528 = vmatprep.mubr.f32.mxu0 %v274
      %2529 = vmatmul.mubr.f32.gmra.mrb[0].mxu0 %v273
      %v2530 = vpop.f32.mrb[0].mxu0
      %v2531 = vadd.f32 %v2461, %v2530
      %v2532 = vpop.f32.mrb[0].mxu0
      %2533 = vdwg.mxu0
      %2534 = vst [vmem:[%s257] sm:$0x3f] %v1684
      %v2535 = vlaneseq
      %v2536 = vshrl.u32 %v2535, 7
      %v2537 = vlaneseq
      %v2538 = vand.u32 %v2537, 127
      %vm2539 = vcmp.eq.s32.totalorder %v2536, %v2538
      %v2540 = vsel %vm2539, 1, 0
      %v2541 = vcvt.s32.f32 %v2540
      %v2542 = vld [vmem:[%s3] sm:$0x3f]
      %v2543 = vld [vmem:[%s4] sm:$0x3f]
      %vm2544 = vcmask 408576
      %v2546 = vsel %vm2544, %v1686, 0
      %2548 = vmatprep.subr.mxu0 0.0
      %2549 = vmatpush1.xpose.msra.mxu0 %v2546
      %2550 = vmatprep.subr.mxu0 0.0
      %2551 = vmatpush1.xpose.msra.mxu0 0.0
      %2552 = vmatprep.subr.mxu0 0.0
      %2553 = vmatpush1.xpose.msra.mxu0 0.0
      %2554 = vmatprep.subr.mxu0 0.0
      %2555 = vmatpush1.xpose.msra.mxu0 0.0
      %2556 = vmatprep.subr.mxu0 0.0
      %2557 = vmatpush1.xpose.msra.mxu0 0.0
      %2558 = vmatprep.subr.mxu0 0.0
      %2559 = vmatpush1.xpose.msra.mxu0 0.0
      %2560 = vmatprep.subr.mxu0 0.0
      %2561 = vmatpush1.xpose.msra.mxu0 0.0
      %2562 = vmatprep.subr.mxu0 0.0
      %2563 = vmatpush1.xpose.msra.mxu0 0.0
      %2564 = vmatprep.subr.mxu0 0.0
      %2565 = vmatpush1.xpose.msra.mxu0 0.0
      %2566 = vmatprep.subr.mxu0 0.0
      %2567 = vmatpush1.xpose.msra.mxu0 0.0
      %2568 = vmatprep.subr.mxu0 0.0
      %2569 = vmatpush1.xpose.msra.mxu0 0.0
      %2570 = vmatprep.subr.mxu0 0.0
      %2571 = vmatpush1.xpose.msra.mxu0 0.0
      %2572 = vmatprep.subr.mxu0 0.0
      %2573 = vmatpush1.xpose.msra.mxu0 0.0
      %2574 = vmatprep.subr.mxu0 0.0
      %2575 = vmatpush1.xpose.msra.mxu0 0.0
      %2576 = vmatprep.subr.mxu0 0.0
      %2577 = vmatpush1.xpose.msra.mxu0 0.0
      %2578 = vmatprep.subr.mxu0 0.0
      %2579 = vmatpush1.xpose.msra.mxu0 0.0
      %2580 = vmatprep.subr.mxu0 0.0
      %2581 = vmatpush1.xpose.msra.mxu0 0.0
      %2582 = vmatprep.subr.mxu0 0.0
      %2583 = vmatpush1.xpose.msra.mxu0 0.0
      %2584 = vmatprep.subr.mxu0 0.0
      %2585 = vmatpush1.xpose.msra.mxu0 0.0
      %2586 = vmatprep.subr.mxu0 0.0
      %2587 = vmatpush1.xpose.msra.mxu0 0.0
      %2588 = vmatprep.subr.mxu0 0.0
      %2589 = vmatpush1.xpose.msra.mxu0 0.0
      %2590 = vmatprep.subr.mxu0 0.0
      %2591 = vmatpush1.xpose.msra.mxu0 0.0
      %2592 = vmatprep.subr.mxu0 0.0
      %2593 = vmatpush1.xpose.msra.mxu0 0.0
      %2594 = vmatprep.subr.mxu0 0.0
      %2595 = vmatpush1.xpose.msra.mxu0 0.0
      %2596 = vmatprep.subr.mxu0 0.0
      %2597 = vmatpush1.xpose.msra.mxu0 0.0
      %2598 = vmatprep.subr.mxu0 0.0
      %2599 = vmatpush1.xpose.msra.mxu0 0.0
      %2600 = vmatprep.subr.mxu0 0.0
      %2601 = vmatpush1.xpose.msra.mxu0 0.0
      %2602 = vmatprep.subr.mxu0 0.0
      %2603 = vmatpush1.xpose.msra.mxu0 0.0
      %2604 = vmatprep.subr.mxu0 0.0
      %2605 = vmatpush1.xpose.msra.mxu0 0.0
      %2606 = vmatprep.subr.mxu0 0.0
      %2607 = vmatpush1.xpose.msra.mxu0 0.0
      %2608 = vmatprep.subr.mxu0 0.0
      %2609 = vmatpush1.xpose.msra.mxu0 0.0
      %2610 = vmatprep.subr.mxu0 0.0
      %2611 = vmatpush1.xpose.msra.mxu0 0.0
      %2612 = vmatprep.mubr.f32.mxu0 0.0
      %2613 = vmatmul.mubr.f32.gmra.mrb[0].mxu0 %v2546
      %v2614 = vpop.f32.mrb[0].mxu0
      %v2615 = vadd.f32 0.0, %v2614
      %v2616 = vpop.f32.mrb[0].mxu0
      %2617 = vdwg.mxu0
      %v2618 = vmul.f32 %v2615, %v2541
      %vm2619 = vcmask 46080
      %v2620 = vsel %vm2619, %v2618, 0.0
      %2621 = vadd.xlane.f32.xlu0 %v2620
      %v2622 = vpop.xlane.xlu0 %2621
      %v2623 = vrot.slane %v2620, 4
      %v2624 = vadd.f32 %v2620, %v2623
      %v2625 = vrot.slane %v2624, 2
      %v2626 = vadd.f32 %v2624, %v2625
      %v2627 = vrot.slane %v2626, 1
      %v2628 = vadd.f32 %v2626, %v2627
      %v2629 = vadd.f32 %v2622, %v2628
      %v2630 = vmul.f32 %v2615, 2.0
      %v2631 = vsub.f32 %v2629, %v2630
      %v2632 = vadd.f32 %v2631, 0.05
      %v2633 = vmax.f32 %v2632, 0.0
      %v2634 = vrsqrt.pop %v2633
      %v2635 = vmul.f32 %v2633, %v2634
      %vm2636 = vcmp.eq.f32.partialorder %v2633, inf
      %v2637 = vsel %vm2636, %v2633, %v2635
      %vm2638 = vcmp.eq.f32.partialorder %v2633, 0.0
      %v2639 = vand.u32 %v2633, 2147483648
      %v2640 = vsel %vm2638, %v2639, %v2637
      %v2641 = vsub.f32 0.0, %v2640
      %v2642 = vsel %vm2619, %v2641, 0.0
      %2643 = vadd.xlane.f32.xlu0 %v2642
      %v2644 = vpop.xlane.xlu0 %2643
      %v2645 = vrcp.pop 6.0
      %v2646 = vmul.f32 %v2644, %v2645
      %vm2647 = vcmask 1045504
      %v2648 = vsel %vm2647, %v2646, 0.0
      %v2649 = vrot.slane %v2648, 4
      %v2650 = vadd.f32 %v2648, %v2649
      %v2651 = vrot.slane %v2650, 2
      %v2652 = vadd.f32 %v2650, %v2651
      %v2653 = vrot.slane %v2652, 1
      %v2654 = vadd.f32 %v2652, %v2653
      %v2655 = vmul.f32 %v2654, %v2645
      %v2656 = vsub.f32 %v2641, %v2655
      %v2657 = vmul.f32 %v2656, %v2656
      %v2658 = vsel %vm2619, %v2657, 0.0
      %2659 = vadd.xlane.f32.xlu0 %v2658
      %v2660 = vpop.xlane.xlu0 %2659
      %v2661 = vmul.f32 %v2660, %v2645
      %v2662 = vsel %vm2647, %v2661, 0.0
      %v2663 = vrot.slane %v2662, 4
      %v2664 = vadd.f32 %v2662, %v2663
      %v2665 = vrot.slane %v2664, 2
      %v2666 = vadd.f32 %v2664, %v2665
      %v2667 = vrot.slane %v2666, 1
      %v2668 = vadd.f32 %v2666, %v2667
      %v2669 = vmul.f32 %v2668, %v2645
      %v2670 = vadd.f32 %v2669, 1e-05
      %v2671 = vrsqrt.pop %v2670
      %v2672 = vmul.f32 %v2656, %v2671
      %v2673 = vmul.f32 %v2672, %v2542
      %v2674 = vadd.f32 %v2673, %v2543
      %2675 = vst.msk [vmem:[%s262] sm:$0x3f] %vm2619, %v2674
      %2676 = vrot.lane.b32.xlu0 %v1686, 78
      %v2677 = vpop.permute.xlu0 %2676
      %v2678 = vsel %vm2544, %v2677, 0
      %2680 = vmatprep.subr.mxu0 0.0
      %2681 = vmatpush1.xpose.msra.mxu0 %v2678
      %2682 = vmatprep.subr.mxu0 0.0
      %2683 = vmatpush1.xpose.msra.mxu0 0.0
      %2684 = vmatprep.subr.mxu0 0.0
      %2685 = vmatpush1.xpose.msra.mxu0 0.0
      %2686 = vmatprep.subr.mxu0 0.0
      %2687 = vmatpush1.xpose.msra.mxu0 0.0
      %2688 = vmatprep.subr.mxu0 0.0
      %2689 = vmatpush1.xpose.msra.mxu0 0.0
      %2690 = vmatprep.subr.mxu0 0.0
      %2691 = vmatpush1.xpose.msra.mxu0 0.0
      %2692 = vmatprep.subr.mxu0 0.0
      %2693 = vmatpush1.xpose.msra.mxu0 0.0
      %2694 = vmatprep.subr.mxu0 0.0
      %2695 = vmatpush1.xpose.msra.mxu0 0.0
      %2696 = vmatprep.subr.mxu0 0.0
      %2697 = vmatpush1.xpose.msra.mxu0 0.0
      %2698 = vmatprep.subr.mxu0 0.0
      %2699 = vmatpush1.xpose.msra.mxu0 0.0
      %2700 = vmatprep.subr.mxu0 0.0
      %2701 = vmatpush1.xpose.msra.mxu0 0.0
      %2702 = vmatprep.subr.mxu0 0.0
      %2703 = vmatpush1.xpose.msra.mxu0 0.0
      %2704 = vmatprep.subr.mxu0 0.0
      %2705 = vmatpush1.xpose.msra.mxu0 0.0
      %2706 = vmatprep.subr.mxu0 0.0
      %2707 = vmatpush1.xpose.msra.mxu0 0.0
      %2708 = vmatprep.subr.mxu0 0.0
      %2709 = vmatpush1.xpose.msra.mxu0 0.0
      %2710 = vmatprep.subr.mxu0 0.0
      %2711 = vmatpush1.xpose.msra.mxu0 0.0
      %2712 = vmatprep.subr.mxu0 0.0
      %2713 = vmatpush1.xpose.msra.mxu0 0.0
      %2714 = vmatprep.subr.mxu0 0.0
      %2715 = vmatpush1.xpose.msra.mxu0 0.0
      %2716 = vmatprep.subr.mxu0 0.0
      %2717 = vmatpush1.xpose.msra.mxu0 0.0
      %2718 = vmatprep.subr.mxu0 0.0
      %2719 = vmatpush1.xpose.msra.mxu0 0.0
      %2720 = vmatprep.subr.mxu0 0.0
      %2721 = vmatpush1.xpose.msra.mxu0 0.0
      %2722 = vmatprep.subr.mxu0 0.0
      %2723 = vmatpush1.xpose.msra.mxu0 0.0
      %2724 = vmatprep.subr.mxu0 0.0
      %2725 = vmatpush1.xpose.msra.mxu0 0.0
      %2726 = vmatprep.subr.mxu0 0.0
      %2727 = vmatpush1.xpose.msra.mxu0 0.0
      %2728 = vmatprep.subr.mxu0 0.0
      %2729 = vmatpush1.xpose.msra.mxu0 0.0
      %2730 = vmatprep.subr.mxu0 0.0
      %2731 = vmatpush1.xpose.msra.mxu0 0.0
      %2732 = vmatprep.subr.mxu0 0.0
      %2733 = vmatpush1.xpose.msra.mxu0 0.0
      %2734 = vmatprep.subr.mxu0 0.0
      %2735 = vmatpush1.xpose.msra.mxu0 0.0
      %2736 = vmatprep.subr.mxu0 0.0
      %2737 = vmatpush1.xpose.msra.mxu0 0.0
      %2738 = vmatprep.subr.mxu0 0.0
      %2739 = vmatpush1.xpose.msra.mxu0 0.0
      %2740 = vmatprep.subr.mxu0 0.0
      %2741 = vmatpush1.xpose.msra.mxu0 0.0
      %2742 = vmatprep.subr.mxu0 0.0
      %2743 = vmatpush1.xpose.msra.mxu0 0.0
      %2744 = vmatprep.mubr.f32.mxu0 0.0
      %2745 = vmatmul.mubr.f32.gmra.mrb[0].mxu0 %v2678
      %v2746 = vpop.f32.mrb[0].mxu0
      %v2747 = vadd.f32 0.0, %v2746
      %v2748 = vpop.f32.mrb[0].mxu0
      %2749 = vdwg.mxu0
      %v2750 = vmul.f32 %v2747, %v2541
      %v2751 = vsel %vm2619, %v2750, 0.0
      %2752 = vadd.xlane.f32.xlu0 %v2751
      %v2753 = vpop.xlane.xlu0 %2752
      %v2754 = vrot.slane %v2751, 4
      %v2755 = vadd.f32 %v2751, %v2754
      %v2756 = vrot.slane %v2755, 2
      %v2757 = vadd.f32 %v2755, %v2756
      %v2758 = vrot.slane %v2757, 1
      %v2759 = vadd.f32 %v2757, %v2758
      %v2760 = vadd.f32 %v2753, %v2759
      %v2761 = vmul.f32 %v2747, 2.0
      %v2762 = vsub.f32 %v2760, %v2761
      %v2763 = vadd.f32 %v2762, 0.05
      %v2764 = vmax.f32 %v2763, 0.0
      %v2765 = vrsqrt.pop %v2764
      %v2766 = vmul.f32 %v2764, %v2765
      %vm2767 = vcmp.eq.f32.partialorder %v2764, inf
      %v2768 = vsel %vm2767, %v2764, %v2766
      %vm2769 = vcmp.eq.f32.partialorder %v2764, 0.0
      %v2770 = vand.u32 %v2764, 2147483648
      %v2771 = vsel %vm2769, %v2770, %v2768
      %v2772 = vsub.f32 0.0, %v2771
      %v2773 = vsel %vm2619, %v2772, 0.0
      %2774 = vadd.xlane.f32.xlu0 %v2773
      %v2775 = vpop.xlane.xlu0 %2774
      %v2776 = vmul.f32 %v2775, %v2645
      %v2777 = vsel %vm2647, %v2776, 0.0
      %v2778 = vrot.slane %v2777, 4
      %v2779 = vadd.f32 %v2777, %v2778
      %v2780 = vrot.slane %v2779, 2
      %v2781 = vadd.f32 %v2779, %v2780
      %v2782 = vrot.slane %v2781, 1
      %v2783 = vadd.f32 %v2781, %v2782
      %v2784 = vmul.f32 %v2783, %v2645
      %v2785 = vsub.f32 %v2772, %v2784
      %v2786 = vmul.f32 %v2785, %v2785
      %v2787 = vsel %vm2619, %v2786, 0.0
      %2788 = vadd.xlane.f32.xlu0 %v2787
      %v2789 = vpop.xlane.xlu0 %2788
      %v2790 = vmul.f32 %v2789, %v2645
      %v2791 = vsel %vm2647, %v2790, 0.0
      %v2792 = vrot.slane %v2791, 4
      %v2793 = vadd.f32 %v2791, %v2792
      %v2794 = vrot.slane %v2793, 2
      %v2795 = vadd.f32 %v2793, %v2794
      %v2796 = vrot.slane %v2795, 1
      %v2797 = vadd.f32 %v2795, %v2796
      %v2798 = vmul.f32 %v2797, %v2645
      %v2799 = vadd.f32 %v2798, 1e-05
      %v2800 = vrsqrt.pop %v2799
      %v2801 = vmul.f32 %v2785, %v2800
      %v2802 = vmul.f32 %v2801, %v2542
      %v2803 = vadd.f32 %v2802, %v2543
      %s2804 = scalar_lea.vmem %s262, 8
      %2805 = vst.msk [vmem:[%s2804] sm:$0x3f] %vm2619, %v2803
      %2807 = vrot.lane.b32.xlu0 %v1686, 28
      %v2808 = vpop.permute.xlu0 %2807
      %2809 = vrot.lane.b32.xlu0 %v2110, 28
      %v2810 = vpop.permute.xlu0 %2809
      %vm2811 = vcmask 228352
      %v2812 = vsel %vm2811, %v2808, %v2810
      %v2813 = vsel %vm2544, %v2812, 0
      %2815 = vmatprep.subr.mxu0 0.0
      %2816 = vmatpush1.xpose.msra.mxu0 %v2813
      %2817 = vmatprep.subr.mxu0 0.0
      %2818 = vmatpush1.xpose.msra.mxu0 0.0
      %2819 = vmatprep.subr.mxu0 0.0
      %2820 = vmatpush1.xpose.msra.mxu0 0.0
      %2821 = vmatprep.subr.mxu0 0.0
      %2822 = vmatpush1.xpose.msra.mxu0 0.0
      %2823 = vmatprep.subr.mxu0 0.0
      %2824 = vmatpush1.xpose.msra.mxu0 0.0
      %2825 = vmatprep.subr.mxu0 0.0
      %2826 = vmatpush1.xpose.msra.mxu0 0.0
      %2827 = vmatprep.subr.mxu0 0.0
      %2828 = vmatpush1.xpose.msra.mxu0 0.0
      %2829 = vmatprep.subr.mxu0 0.0
      %2830 = vmatpush1.xpose.msra.mxu0 0.0
      %2831 = vmatprep.subr.mxu0 0.0
      %2832 = vmatpush1.xpose.msra.mxu0 0.0
      %2833 = vmatprep.subr.mxu0 0.0
      %2834 = vmatpush1.xpose.msra.mxu0 0.0
      %2835 = vmatprep.subr.mxu0 0.0
      %2836 = vmatpush1.xpose.msra.mxu0 0.0
      %2837 = vmatprep.subr.mxu0 0.0
      %2838 = vmatpush1.xpose.msra.mxu0 0.0
      %2839 = vmatprep.subr.mxu0 0.0
      %2840 = vmatpush1.xpose.msra.mxu0 0.0
      %2841 = vmatprep.subr.mxu0 0.0
      %2842 = vmatpush1.xpose.msra.mxu0 0.0
      %2843 = vmatprep.subr.mxu0 0.0
      %2844 = vmatpush1.xpose.msra.mxu0 0.0
      %2845 = vmatprep.subr.mxu0 0.0
      %2846 = vmatpush1.xpose.msra.mxu0 0.0
      %2847 = vmatprep.subr.mxu0 0.0
      %2848 = vmatpush1.xpose.msra.mxu0 0.0
      %2849 = vmatprep.subr.mxu0 0.0
      %2850 = vmatpush1.xpose.msra.mxu0 0.0
      %2851 = vmatprep.subr.mxu0 0.0
      %2852 = vmatpush1.xpose.msra.mxu0 0.0
      %2853 = vmatprep.subr.mxu0 0.0
      %2854 = vmatpush1.xpose.msra.mxu0 0.0
      %2855 = vmatprep.subr.mxu0 0.0
      %2856 = vmatpush1.xpose.msra.mxu0 0.0
      %2857 = vmatprep.subr.mxu0 0.0
      %2858 = vmatpush1.xpose.msra.mxu0 0.0
      %2859 = vmatprep.subr.mxu0 0.0
      %2860 = vmatpush1.xpose.msra.mxu0 0.0
      %2861 = vmatprep.subr.mxu0 0.0
      %2862 = vmatpush1.xpose.msra.mxu0 0.0
      %2863 = vmatprep.subr.mxu0 0.0
      %2864 = vmatpush1.xpose.msra.mxu0 0.0
      %2865 = vmatprep.subr.mxu0 0.0
      %2866 = vmatpush1.xpose.msra.mxu0 0.0
      %2867 = vmatprep.subr.mxu0 0.0
      %2868 = vmatpush1.xpose.msra.mxu0 0.0
      %2869 = vmatprep.subr.mxu0 0.0
      %2870 = vmatpush1.xpose.msra.mxu0 0.0
      %2871 = vmatprep.subr.mxu0 0.0
      %2872 = vmatpush1.xpose.msra.mxu0 0.0
      %2873 = vmatprep.subr.mxu0 0.0
      %2874 = vmatpush1.xpose.msra.mxu0 0.0
      %2875 = vmatprep.subr.mxu0 0.0
      %2876 = vmatpush1.xpose.msra.mxu0 0.0
      %2877 = vmatprep.subr.mxu0 0.0
      %2878 = vmatpush1.xpose.msra.mxu0 0.0
      %2879 = vmatprep.mubr.f32.mxu0 0.0
      %2880 = vmatmul.mubr.f32.gmra.mrb[0].mxu0 %v2813
      %v2881 = vpop.f32.mrb[0].mxu0
      %v2882 = vadd.f32 0.0, %v2881
      %v2883 = vpop.f32.mrb[0].mxu0
      %2884 = vdwg.mxu0
      %v2885 = vmul.f32 %v2882, %v2541
      %v2886 = vsel %vm2619, %v2885, 0.0
      %2887 = vadd.xlane.f32.xlu0 %v2886
      %v2888 = vpop.xlane.xlu0 %2887
      %v2889 = vrot.slane %v2886, 4
      %v2890 = vadd.f32 %v2886, %v2889
      %v2891 = vrot.slane %v2890, 2
      %v2892 = vadd.f32 %v2890, %v2891
      %v2893 = vrot.slane %v2892, 1
      %v2894 = vadd.f32 %v2892, %v2893
      %v2895 = vadd.f32 %v2888, %v2894
      %v2896 = vmul.f32 %v2882, 2.0
      %v2897 = vsub.f32 %v2895, %v2896
      %v2898 = vadd.f32 %v2897, 0.05
      %v2899 = vmax.f32 %v2898, 0.0
      %v2900 = vrsqrt.pop %v2899
      %v2901 = vmul.f32 %v2899, %v2900
      %vm2902 = vcmp.eq.f32.partialorder %v2899, inf
      %v2903 = vsel %vm2902, %v2899, %v2901
      %vm2904 = vcmp.eq.f32.partialorder %v2899, 0.0
      %v2905 = vand.u32 %v2899, 2147483648
      %v2906 = vsel %vm2904, %v2905, %v2903
      %v2907 = vsub.f32 0.0, %v2906
      %v2908 = vsel %vm2619, %v2907, 0.0
      %2909 = vadd.xlane.f32.xlu0 %v2908
      %v2910 = vpop.xlane.xlu0 %2909
      %v2911 = vmul.f32 %v2910, %v2645
      %v2912 = vsel %vm2647, %v2911, 0.0
      %v2913 = vrot.slane %v2912, 4
      %v2914 = vadd.f32 %v2912, %v2913
      %v2915 = vrot.slane %v2914, 2
      %v2916 = vadd.f32 %v2914, %v2915
      %v2917 = vrot.slane %v2916, 1
      %v2918 = vadd.f32 %v2916, %v2917
      %v2919 = vmul.f32 %v2918, %v2645
      %v2920 = vsub.f32 %v2907, %v2919
      %v2921 = vmul.f32 %v2920, %v2920
      %v2922 = vsel %vm2619, %v2921, 0.0
      %2923 = vadd.xlane.f32.xlu0 %v2922
      %v2924 = vpop.xlane.xlu0 %2923
      %v2925 = vmul.f32 %v2924, %v2645
      %v2926 = vsel %vm2647, %v2925, 0.0
      %v2927 = vrot.slane %v2926, 4
      %v2928 = vadd.f32 %v2926, %v2927
      %v2929 = vrot.slane %v2928, 2
      %v2930 = vadd.f32 %v2928, %v2929
      %v2931 = vrot.slane %v2930, 1
      %v2932 = vadd.f32 %v2930, %v2931
      %v2933 = vmul.f32 %v2932, %v2645
      %v2934 = vadd.f32 %v2933, 1e-05
      %v2935 = vrsqrt.pop %v2934
      %v2936 = vmul.f32 %v2920, %v2935
      %v2937 = vmul.f32 %v2936, %v2542
      %v2938 = vadd.f32 %v2937, %v2543
      %s2939 = scalar_lea.vmem %s262, 16
      %2940 = vst.msk [vmem:[%s2939] sm:$0x3f] %vm2619, %v2938
      %2941 = vrot.lane.b32.xlu0 %v2110, 106
      %v2942 = vpop.permute.xlu0 %2941
      %v2943 = vsel %vm2544, %v2942, 0
      %2945 = vmatprep.subr.mxu0 0.0
      %2946 = vmatpush1.xpose.msra.mxu0 %v2943
      %2947 = vmatprep.subr.mxu0 0.0
      %2948 = vmatpush1.xpose.msra.mxu0 0.0
      %2949 = vmatprep.subr.mxu0 0.0
      %2950 = vmatpush1.xpose.msra.mxu0 0.0
      %2951 = vmatprep.subr.mxu0 0.0
      %2952 = vmatpush1.xpose.msra.mxu0 0.0
      %2953 = vmatprep.subr.mxu0 0.0
      %2954 = vmatpush1.xpose.msra.mxu0 0.0
      %2955 = vmatprep.subr.mxu0 0.0
      %2956 = vmatpush1.xpose.msra.mxu0 0.0
      %2957 = vmatprep.subr.mxu0 0.0
      %2958 = vmatpush1.xpose.msra.mxu0 0.0
      %2959 = vmatprep.subr.mxu0 0.0
      %2960 = vmatpush1.xpose.msra.mxu0 0.0
      %2961 = vmatprep.subr.mxu0 0.0
      %2962 = vmatpush1.xpose.msra.mxu0 0.0
      %2963 = vmatprep.subr.mxu0 0.0
      %2964 = vmatpush1.xpose.msra.mxu0 0.0
      %2965 = vmatprep.subr.mxu0 0.0
      %2966 = vmatpush1.xpose.msra.mxu0 0.0
      %2967 = vmatprep.subr.mxu0 0.0
      %2968 = vmatpush1.xpose.msra.mxu0 0.0
      %2969 = vmatprep.subr.mxu0 0.0
      %2970 = vmatpush1.xpose.msra.mxu0 0.0
      %2971 = vmatprep.subr.mxu0 0.0
      %2972 = vmatpush1.xpose.msra.mxu0 0.0
      %2973 = vmatprep.subr.mxu0 0.0
      %2974 = vmatpush1.xpose.msra.mxu0 0.0
      %2975 = vmatprep.subr.mxu0 0.0
      %2976 = vmatpush1.xpose.msra.mxu0 0.0
      %2977 = vmatprep.subr.mxu0 0.0
      %2978 = vmatpush1.xpose.msra.mxu0 0.0
      %2979 = vmatprep.subr.mxu0 0.0
      %2980 = vmatpush1.xpose.msra.mxu0 0.0
      %2981 = vmatprep.subr.mxu0 0.0
      %2982 = vmatpush1.xpose.msra.mxu0 0.0
      %2983 = vmatprep.subr.mxu0 0.0
      %2984 = vmatpush1.xpose.msra.mxu0 0.0
      %2985 = vmatprep.subr.mxu0 0.0
      %2986 = vmatpush1.xpose.msra.mxu0 0.0
      %2987 = vmatprep.subr.mxu0 0.0
      %2988 = vmatpush1.xpose.msra.mxu0 0.0
      %2989 = vmatprep.subr.mxu0 0.0
      %2990 = vmatpush1.xpose.msra.mxu0 0.0
      %2991 = vmatprep.subr.mxu0 0.0
      %2992 = vmatpush1.xpose.msra.mxu0 0.0
      %2993 = vmatprep.subr.mxu0 0.0
      %2994 = vmatpush1.xpose.msra.mxu0 0.0
      %2995 = vmatprep.subr.mxu0 0.0
      %2996 = vmatpush1.xpose.msra.mxu0 0.0
      %2997 = vmatprep.subr.mxu0 0.0
      %2998 = vmatpush1.xpose.msra.mxu0 0.0
      %2999 = vmatprep.subr.mxu0 0.0
      %3000 = vmatpush1.xpose.msra.mxu0 0.0
      %3001 = vmatprep.subr.mxu0 0.0
      %3002 = vmatpush1.xpose.msra.mxu0 0.0
      %3003 = vmatprep.subr.mxu0 0.0
      %3004 = vmatpush1.xpose.msra.mxu0 0.0
      %3005 = vmatprep.subr.mxu0 0.0
      %3006 = vmatpush1.xpose.msra.mxu0 0.0
      %3007 = vmatprep.subr.mxu0 0.0
      %3008 = vmatpush1.xpose.msra.mxu0 0.0
      %3009 = vmatprep.mubr.f32.mxu0 0.0
      %3010 = vmatmul.mubr.f32.gmra.mrb[0].mxu0 %v2943
      %v3011 = vpop.f32.mrb[0].mxu0
      %v3012 = vadd.f32 0.0, %v3011
      %v3013 = vpop.f32.mrb[0].mxu0
      %3014 = vdwg.mxu0
      %v3015 = vmul.f32 %v3012, %v2541
      %v3016 = vsel %vm2619, %v3015, 0.0
      %3017 = vadd.xlane.f32.xlu0 %v3016
      %v3018 = vpop.xlane.xlu0 %3017
      %v3019 = vrot.slane %v3016, 4
      %v3020 = vadd.f32 %v3016, %v3019
      %v3021 = vrot.slane %v3020, 2
      %v3022 = vadd.f32 %v3020, %v3021
      %v3023 = vrot.slane %v3022, 1
      %v3024 = vadd.f32 %v3022, %v3023
      %v3025 = vadd.f32 %v3018, %v3024
      %v3026 = vmul.f32 %v3012, 2.0
      %v3027 = vsub.f32 %v3025, %v3026
      %v3028 = vadd.f32 %v3027, 0.05
      %v3029 = vmax.f32 %v3028, 0.0
      %v3030 = vrsqrt.pop %v3029
      %v3031 = vmul.f32 %v3029, %v3030
      %vm3032 = vcmp.eq.f32.partialorder %v3029, inf
      %v3033 = vsel %vm3032, %v3029, %v3031
      %vm3034 = vcmp.eq.f32.partialorder %v3029, 0.0
      %v3035 = vand.u32 %v3029, 2147483648
      %v3036 = vsel %vm3034, %v3035, %v3033
      %v3037 = vsub.f32 0.0, %v3036
      %v3038 = vsel %vm2619, %v3037, 0.0
      %3039 = vadd.xlane.f32.xlu0 %v3038
      %v3040 = vpop.xlane.xlu0 %3039
      %v3041 = vmul.f32 %v3040, %v2645
      %v3042 = vsel %vm2647, %v3041, 0.0
      %v3043 = vrot.slane %v3042, 4
      %v3044 = vadd.f32 %v3042, %v3043
      %v3045 = vrot.slane %v3044, 2
      %v3046 = vadd.f32 %v3044, %v3045
      %v3047 = vrot.slane %v3046, 1
      %v3048 = vadd.f32 %v3046, %v3047
      %v3049 = vmul.f32 %v3048, %v2645
      %v3050 = vsub.f32 %v3037, %v3049
      %v3051 = vmul.f32 %v3050, %v3050
      %v3052 = vsel %vm2619, %v3051, 0.0
      %3053 = vadd.xlane.f32.xlu0 %v3052
      %v3054 = vpop.xlane.xlu0 %3053
      %v3055 = vmul.f32 %v3054, %v2645
      %v3056 = vsel %vm2647, %v3055, 0.0
      %v3057 = vrot.slane %v3056, 4
      %v3058 = vadd.f32 %v3056, %v3057
      %v3059 = vrot.slane %v3058, 2
      %v3060 = vadd.f32 %v3058, %v3059
      %v3061 = vrot.slane %v3060, 1
      %v3062 = vadd.f32 %v3060, %v3061
      %v3063 = vmul.f32 %v3062, %v2645
      %v3064 = vadd.f32 %v3063, 1e-05
      %v3065 = vrsqrt.pop %v3064
      %v3066 = vmul.f32 %v3050, %v3065
      %v3067 = vmul.f32 %v3066, %v2542
      %v3068 = vadd.f32 %v3067, %v2543
      %s3069 = scalar_lea.vmem %s262, 24
      %3070 = vst.msk [vmem:[%s3069] sm:$0x3f] %vm2619, %v3068
      %3071 = vrot.lane.b32.xlu0 %v2110, 56
      %v3072 = vpop.permute.xlu0 %3071
      %v3073 = vsel %vm2544, %v3072, 0
      %3075 = vmatprep.subr.mxu0 0.0
      %3076 = vmatpush1.xpose.msra.mxu0 %v3073
      %3077 = vmatprep.subr.mxu0 0.0
      %3078 = vmatpush1.xpose.msra.mxu0 0.0
      %3079 = vmatprep.subr.mxu0 0.0
      %3080 = vmatpush1.xpose.msra.mxu0 0.0
      %3081 = vmatprep.subr.mxu0 0.0
      %3082 = vmatpush1.xpose.msra.mxu0 0.0
      %3083 = vmatprep.subr.mxu0 0.0
      %3084 = vmatpush1.xpose.msra.mxu0 0.0
      %3085 = vmatprep.subr.mxu0 0.0
      %3086 = vmatpush1.xpose.msra.mxu0 0.0
      %3087 = vmatprep.subr.mxu0 0.0
      %3088 = vmatpush1.xpose.msra.mxu0 0.0
      %3089 = vmatprep.subr.mxu0 0.0
      %3090 = vmatpush1.xpose.msra.mxu0 0.0
      %3091 = vmatprep.subr.mxu0 0.0
      %3092 = vmatpush1.xpose.msra.mxu0 0.0
      %3093 = vmatprep.subr.mxu0 0.0
      %3094 = vmatpush1.xpose.msra.mxu0 0.0
      %3095 = vmatprep.subr.mxu0 0.0
      %3096 = vmatpush1.xpose.msra.mxu0 0.0
      %3097 = vmatprep.subr.mxu0 0.0
      %3098 = vmatpush1.xpose.msra.mxu0 0.0
      %3099 = vmatprep.subr.mxu0 0.0
      %3100 = vmatpush1.xpose.msra.mxu0 0.0
      %3101 = vmatprep.subr.mxu0 0.0
      %3102 = vmatpush1.xpose.msra.mxu0 0.0
      %3103 = vmatprep.subr.mxu0 0.0
      %3104 = vmatpush1.xpose.msra.mxu0 0.0
      %3105 = vmatprep.subr.mxu0 0.0
      %3106 = vmatpush1.xpose.msra.mxu0 0.0
      %3107 = vmatprep.subr.mxu0 0.0
      %3108 = vmatpush1.xpose.msra.mxu0 0.0
      %3109 = vmatprep.subr.mxu0 0.0
      %3110 = vmatpush1.xpose.msra.mxu0 0.0
      %3111 = vmatprep.subr.mxu0 0.0
      %3112 = vmatpush1.xpose.msra.mxu0 0.0
      %3113 = vmatprep.subr.mxu0 0.0
      %3114 = vmatpush1.xpose.msra.mxu0 0.0
      %3115 = vmatprep.subr.mxu0 0.0
      %3116 = vmatpush1.xpose.msra.mxu0 0.0
      %3117 = vmatprep.subr.mxu0 0.0
      %3118 = vmatpush1.xpose.msra.mxu0 0.0
      %3119 = vmatprep.subr.mxu0 0.0
      %3120 = vmatpush1.xpose.msra.mxu0 0.0
      %3121 = vmatprep.subr.mxu0 0.0
      %3122 = vmatpush1.xpose.msra.mxu0 0.0
      %3123 = vmatprep.subr.mxu0 0.0
      %3124 = vmatpush1.xpose.msra.mxu0 0.0
      %3125 = vmatprep.subr.mxu0 0.0
      %3126 = vmatpush1.xpose.msra.mxu0 0.0
      %3127 = vmatprep.subr.mxu0 0.0
      %3128 = vmatpush1.xpose.msra.mxu0 0.0
      %3129 = vmatprep.subr.mxu0 0.0
      %3130 = vmatpush1.xpose.msra.mxu0 0.0
      %3131 = vmatprep.subr.mxu0 0.0
      %3132 = vmatpush1.xpose.msra.mxu0 0.0
      %3133 = vmatprep.subr.mxu0 0.0
      %3134 = vmatpush1.xpose.msra.mxu0 0.0
      %3135 = vmatprep.subr.mxu0 0.0
      %3136 = vmatpush1.xpose.msra.mxu0 0.0
      %3137 = vmatprep.subr.mxu0 0.0
      %3138 = vmatpush1.xpose.msra.mxu0 0.0
      %3139 = vmatprep.mubr.f32.mxu0 0.0
      %3140 = vmatmul.mubr.f32.gmra.mrb[0].mxu0 %v3073
      %v3141 = vpop.f32.mrb[0].mxu0
      %v3142 = vadd.f32 0.0, %v3141
      %v3143 = vpop.f32.mrb[0].mxu0
      %3144 = vdwg.mxu0
      %v3145 = vmul.f32 %v3142, %v2541
      %v3146 = vsel %vm2619, %v3145, 0.0
      %3147 = vadd.xlane.f32.xlu0 %v3146
      %v3148 = vpop.xlane.xlu0 %3147
      %v3149 = vrot.slane %v3146, 4
      %v3150 = vadd.f32 %v3146, %v3149
      %v3151 = vrot.slane %v3150, 2
      %v3152 = vadd.f32 %v3150, %v3151
      %v3153 = vrot.slane %v3152, 1
      %v3154 = vadd.f32 %v3152, %v3153
      %v3155 = vadd.f32 %v3148, %v3154
      %v3156 = vmul.f32 %v3142, 2.0
      %v3157 = vsub.f32 %v3155, %v3156
      %v3158 = vadd.f32 %v3157, 0.05
      %v3159 = vmax.f32 %v3158, 0.0
      %v3160 = vrsqrt.pop %v3159
      %v3161 = vmul.f32 %v3159, %v3160
      %vm3162 = vcmp.eq.f32.partialorder %v3159, inf
      %v3163 = vsel %vm3162, %v3159, %v3161
      %vm3164 = vcmp.eq.f32.partialorder %v3159, 0.0
      %v3165 = vand.u32 %v3159, 2147483648
      %v3166 = vsel %vm3164, %v3165, %v3163
      %v3167 = vsub.f32 0.0, %v3166
      %v3168 = vsel %vm2619, %v3167, 0.0
      %3169 = vadd.xlane.f32.xlu0 %v3168
      %v3170 = vpop.xlane.xlu0 %3169
      %v3171 = vmul.f32 %v3170, %v2645
      %v3172 = vsel %vm2647, %v3171, 0.0
      %v3173 = vrot.slane %v3172, 4
      %v3174 = vadd.f32 %v3172, %v3173
      %v3175 = vrot.slane %v3174, 2
      %v3176 = vadd.f32 %v3174, %v3175
      %v3177 = vrot.slane %v3176, 1
      %v3178 = vadd.f32 %v3176, %v3177
      %v3179 = vmul.f32 %v3178, %v2645
      %v3180 = vsub.f32 %v3167, %v3179
      %v3181 = vmul.f32 %v3180, %v3180
      %v3182 = vsel %vm2619, %v3181, 0.0
      %3183 = vadd.xlane.f32.xlu0 %v3182
      %v3184 = vpop.xlane.xlu0 %3183
      %v3185 = vmul.f32 %v3184, %v2645
      %v3186 = vsel %vm2647, %v3185, 0.0
      %v3187 = vrot.slane %v3186, 4
      %v3188 = vadd.f32 %v3186, %v3187
      %v3189 = vrot.slane %v3188, 2
      %v3190 = vadd.f32 %v3188, %v3189
      %v3191 = vrot.slane %v3190, 1
      %v3192 = vadd.f32 %v3190, %v3191
      %v3193 = vmul.f32 %v3192, %v2645
      %v3194 = vadd.f32 %v3193, 1e-05
      %v3195 = vrsqrt.pop %v3194
      %v3196 = vmul.f32 %v3180, %v3195
      %v3197 = vmul.f32 %v3196, %v2542
      %v3198 = vadd.f32 %v3197, %v2543
      %s3199 = scalar_lea.vmem %s262, 32
      %3200 = vst.msk [vmem:[%s3199] sm:$0x3f] %vm2619, %v3198
      %3202 = vrot.lane.b32.xlu0 %v2110, 6
      %v3203 = vpop.permute.xlu0 %3202
      %3204 = vrot.lane.b32.xlu0 %v2112, 6
      %v3205 = vpop.permute.xlu0 %3204
      %vm3206 = vcmask 48128
      %v3207 = vsel %vm3206, %v3203, %v3205
      %v3208 = vsel %vm2544, %v3207, 0
      %3210 = vmatprep.subr.mxu0 0.0
      %3211 = vmatpush1.xpose.msra.mxu0 %v3208
      %3212 = vmatprep.subr.mxu0 0.0
      %3213 = vmatpush1.xpose.msra.mxu0 0.0
      %3214 = vmatprep.subr.mxu0 0.0
      %3215 = vmatpush1.xpose.msra.mxu0 0.0
      %3216 = vmatprep.subr.mxu0 0.0
      %3217 = vmatpush1.xpose.msra.mxu0 0.0
      %3218 = vmatprep.subr.mxu0 0.0
      %3219 = vmatpush1.xpose.msra.mxu0 0.0
      %3220 = vmatprep.subr.mxu0 0.0
      %3221 = vmatpush1.xpose.msra.mxu0 0.0
      %3222 = vmatprep.subr.mxu0 0.0
      %3223 = vmatpush1.xpose.msra.mxu0 0.0
      %3224 = vmatprep.subr.mxu0 0.0
      %3225 = vmatpush1.xpose.msra.mxu0 0.0
      %3226 = vmatprep.subr.mxu0 0.0
      %3227 = vmatpush1.xpose.msra.mxu0 0.0
      %3228 = vmatprep.subr.mxu0 0.0
      %3229 = vmatpush1.xpose.msra.mxu0 0.0
      %3230 = vmatprep.subr.mxu0 0.0
      %3231 = vmatpush1.xpose.msra.mxu0 0.0
      %3232 = vmatprep.subr.mxu0 0.0
      %3233 = vmatpush1.xpose.msra.mxu0 0.0
      %3234 = vmatprep.subr.mxu0 0.0
      %3235 = vmatpush1.xpose.msra.mxu0 0.0
      %3236 = vmatprep.subr.mxu0 0.0
      %3237 = vmatpush1.xpose.msra.mxu0 0.0
      %3238 = vmatprep.subr.mxu0 0.0
      %3239 = vmatpush1.xpose.msra.mxu0 0.0
      %3240 = vmatprep.subr.mxu0 0.0
      %3241 = vmatpush1.xpose.msra.mxu0 0.0
      %3242 = vmatprep.subr.mxu0 0.0
      %3243 = vmatpush1.xpose.msra.mxu0 0.0
      %3244 = vmatprep.subr.mxu0 0.0
      %3245 = vmatpush1.xpose.msra.mxu0 0.0
      %3246 = vmatprep.subr.mxu0 0.0
      %3247 = vmatpush1.xpose.msra.mxu0 0.0
      %3248 = vmatprep.subr.mxu0 0.0
      %3249 = vmatpush1.xpose.msra.mxu0 0.0
      %3250 = vmatprep.subr.mxu0 0.0
      %3251 = vmatpush1.xpose.msra.mxu0 0.0
      %3252 = vmatprep.subr.mxu0 0.0
      %3253 = vmatpush1.xpose.msra.mxu0 0.0
      %3254 = vmatprep.subr.mxu0 0.0
      %3255 = vmatpush1.xpose.msra.mxu0 0.0
      %3256 = vmatprep.subr.mxu0 0.0
      %3257 = vmatpush1.xpose.msra.mxu0 0.0
      %3258 = vmatprep.subr.mxu0 0.0
      %3259 = vmatpush1.xpose.msra.mxu0 0.0
      %3260 = vmatprep.subr.mxu0 0.0
      %3261 = vmatpush1.xpose.msra.mxu0 0.0
      %3262 = vmatprep.subr.mxu0 0.0
      %3263 = vmatpush1.xpose.msra.mxu0 0.0
      %3264 = vmatprep.subr.mxu0 0.0
      %3265 = vmatpush1.xpose.msra.mxu0 0.0
      %3266 = vmatprep.subr.mxu0 0.0
      %3267 = vmatpush1.xpose.msra.mxu0 0.0
      %3268 = vmatprep.subr.mxu0 0.0
      %3269 = vmatpush1.xpose.msra.mxu0 0.0
      %3270 = vmatprep.subr.mxu0 0.0
      %3271 = vmatpush1.xpose.msra.mxu0 0.0
      %3272 = vmatprep.subr.mxu0 0.0
      %3273 = vmatpush1.xpose.msra.mxu0 0.0
      %3274 = vmatprep.mubr.f32.mxu0 0.0
      %3275 = vmatmul.mubr.f32.gmra.mrb[0].mxu0 %v3208
      %v3276 = vpop.f32.mrb[0].mxu0
      %v3277 = vadd.f32 0.0, %v3276
      %v3278 = vpop.f32.mrb[0].mxu0
      %3279 = vdwg.mxu0
      %v3280 = vmul.f32 %v3277, %v2541
      %v3281 = vsel %vm2619, %v3280, 0.0
      %3282 = vadd.xlane.f32.xlu0 %v3281
      %v3283 = vpop.xlane.xlu0 %3282
      %v3284 = vrot.slane %v3281, 4
      %v3285 = vadd.f32 %v3281, %v3284
      %v3286 = vrot.slane %v3285, 2
      %v3287 = vadd.f32 %v3285, %v3286
      %v3288 = vrot.slane %v3287, 1
      %v3289 = vadd.f32 %v3287, %v3288
      %v3290 = vadd.f32 %v3283, %v3289
      %v3291 = vmul.f32 %v3277, 2.0
      %v3292 = vsub.f32 %v3290, %v3291
      %v3293 = vadd.f32 %v3292, 0.05
      %v3294 = vmax.f32 %v3293, 0.0
      %v3295 = vrsqrt.pop %v3294
      %v3296 = vmul.f32 %v3294, %v3295
      %vm3297 = vcmp.eq.f32.partialorder %v3294, inf
      %v3298 = vsel %vm3297, %v3294, %v3296
      %vm3299 = vcmp.eq.f32.partialorder %v3294, 0.0
      %v3300 = vand.u32 %v3294, 2147483648
      %v3301 = vsel %vm3299, %v3300, %v3298
      %v3302 = vsub.f32 0.0, %v3301
      %v3303 = vsel %vm2619, %v3302, 0.0
      %3304 = vadd.xlane.f32.xlu0 %v3303
      %v3305 = vpop.xlane.xlu0 %3304
      %v3306 = vmul.f32 %v3305, %v2645
      %v3307 = vsel %vm2647, %v3306, 0.0
      %v3308 = vrot.slane %v3307, 4
      %v3309 = vadd.f32 %v3307, %v3308
      %v3310 = vrot.slane %v3309, 2
      %v3311 = vadd.f32 %v3309, %v3310
      %v3312 = vrot.slane %v3311, 1
      %v3313 = vadd.f32 %v3311, %v3312
      %v3314 = vmul.f32 %v3313, %v2645
      %v3315 = vsub.f32 %v3302, %v3314
      %v3316 = vmul.f32 %v3315, %v3315
      %v3317 = vsel %vm2619, %v3316, 0.0
      %3318 = vadd.xlane.f32.xlu0 %v3317
      %v3319 = vpop.xlane.xlu0 %3318
      %v3320 = vmul.f32 %v3319, %v2645
      %v3321 = vsel %vm2647, %v3320, 0.0
      %v3322 = vrot.slane %v3321, 4
      %v3323 = vadd.f32 %v3321, %v3322
      %v3324 = vrot.slane %v3323, 2
      %v3325 = vadd.f32 %v3323, %v3324
      %v3326 = vrot.slane %v3325, 1
      %v3327 = vadd.f32 %v3325, %v3326
      %v3328 = vmul.f32 %v3327, %v2645
      %v3329 = vadd.f32 %v3328, 1e-05
      %v3330 = vrsqrt.pop %v3329
      %v3331 = vmul.f32 %v3315, %v3330
      %v3332 = vmul.f32 %v3331, %v2542
      %v3333 = vadd.f32 %v3332, %v2543
      %s3334 = scalar_lea.vmem %s262, 40
      %3335 = vst.msk [vmem:[%s3334] sm:$0x3f] %vm2619, %v3333
      %3336 = vrot.lane.b32.xlu0 %v2112, 84
      %v3337 = vpop.permute.xlu0 %3336
      %v3338 = vsel %vm2544, %v3337, 0
      %3340 = vmatprep.subr.mxu0 0.0
      %3341 = vmatpush1.xpose.msra.mxu0 %v3338
      %3342 = vmatprep.subr.mxu0 0.0
      %3343 = vmatpush1.xpose.msra.mxu0 0.0
      %3344 = vmatprep.subr.mxu0 0.0
      %3345 = vmatpush1.xpose.msra.mxu0 0.0
      %3346 = vmatprep.subr.mxu0 0.0
      %3347 = vmatpush1.xpose.msra.mxu0 0.0
      %3348 = vmatprep.subr.mxu0 0.0
      %3349 = vmatpush1.xpose.msra.mxu0 0.0
      %3350 = vmatprep.subr.mxu0 0.0
      %3351 = vmatpush1.xpose.msra.mxu0 0.0
      %3352 = vmatprep.subr.mxu0 0.0
      %3353 = vmatpush1.xpose.msra.mxu0 0.0
      %3354 = vmatprep.subr.mxu0 0.0
      %3355 = vmatpush1.xpose.msra.mxu0 0.0
      %3356 = vmatprep.subr.mxu0 0.0
      %3357 = vmatpush1.xpose.msra.mxu0 0.0
      %3358 = vmatprep.subr.mxu0 0.0
      %3359 = vmatpush1.xpose.msra.mxu0 0.0
      %3360 = vmatprep.subr.mxu0 0.0
      %3361 = vmatpush1.xpose.msra.mxu0 0.0
      %3362 = vmatprep.subr.mxu0 0.0
      %3363 = vmatpush1.xpose.msra.mxu0 0.0
      %3364 = vmatprep.subr.mxu0 0.0
      %3365 = vmatpush1.xpose.msra.mxu0 0.0
      %3366 = vmatprep.subr.mxu0 0.0
      %3367 = vmatpush1.xpose.msra.mxu0 0.0
      %3368 = vmatprep.subr.mxu0 0.0
      %3369 = vmatpush1.xpose.msra.mxu0 0.0
      %3370 = vmatprep.subr.mxu0 0.0
      %3371 = vmatpush1.xpose.msra.mxu0 0.0
      %3372 = vmatprep.subr.mxu0 0.0
      %3373 = vmatpush1.xpose.msra.mxu0 0.0
      %3374 = vmatprep.subr.mxu0 0.0
      %3375 = vmatpush1.xpose.msra.mxu0 0.0
      %3376 = vmatprep.subr.mxu0 0.0
      %3377 = vmatpush1.xpose.msra.mxu0 0.0
      %3378 = vmatprep.subr.mxu0 0.0
      %3379 = vmatpush1.xpose.msra.mxu0 0.0
      %3380 = vmatprep.subr.mxu0 0.0
      %3381 = vmatpush1.xpose.msra.mxu0 0.0
      %3382 = vmatprep.subr.mxu0 0.0
      %3383 = vmatpush1.xpose.msra.mxu0 0.0
      %3384 = vmatprep.subr.mxu0 0.0
      %3385 = vmatpush1.xpose.msra.mxu0 0.0
      %3386 = vmatprep.subr.mxu0 0.0
      %3387 = vmatpush1.xpose.msra.mxu0 0.0
      %3388 = vmatprep.subr.mxu0 0.0
      %3389 = vmatpush1.xpose.msra.mxu0 0.0
      %3390 = vmatprep.subr.mxu0 0.0
      %3391 = vmatpush1.xpose.msra.mxu0 0.0
      %3392 = vmatprep.subr.mxu0 0.0
      %3393 = vmatpush1.xpose.msra.mxu0 0.0
      %3394 = vmatprep.subr.mxu0 0.0
      %3395 = vmatpush1.xpose.msra.mxu0 0.0
      %3396 = vmatprep.subr.mxu0 0.0
      %3397 = vmatpush1.xpose.msra.mxu0 0.0
      %3398 = vmatprep.subr.mxu0 0.0
      %3399 = vmatpush1.xpose.msra.mxu0 0.0
      %3400 = vmatprep.subr.mxu0 0.0
      %3401 = vmatpush1.xpose.msra.mxu0 0.0
      %3402 = vmatprep.subr.mxu0 0.0
      %3403 = vmatpush1.xpose.msra.mxu0 0.0
      %3404 = vmatprep.mubr.f32.mxu0 0.0
      %3405 = vmatmul.mubr.f32.gmra.mrb[0].mxu0 %v3338
      %v3406 = vpop.f32.mrb[0].mxu0
      %v3407 = vadd.f32 0.0, %v3406
      %v3408 = vpop.f32.mrb[0].mxu0
      %3409 = vdwg.mxu0
      %v3410 = vmul.f32 %v3407, %v2541
      %v3411 = vsel %vm2619, %v3410, 0.0
      %3412 = vadd.xlane.f32.xlu0 %v3411
      %v3413 = vpop.xlane.xlu0 %3412
      %v3414 = vrot.slane %v3411, 4
      %v3415 = vadd.f32 %v3411, %v3414
      %v3416 = vrot.slane %v3415, 2
      %v3417 = vadd.f32 %v3415, %v3416
      %v3418 = vrot.slane %v3417, 1
      %v3419 = vadd.f32 %v3417, %v3418
      %v3420 = vadd.f32 %v3413, %v3419
      %v3421 = vmul.f32 %v3407, 2.0
      %v3422 = vsub.f32 %v3420, %v3421
      %v3423 = vadd.f32 %v3422, 0.05
      %v3424 = vmax.f32 %v3423, 0.0
      %v3425 = vrsqrt.pop %v3424
      %v3426 = vmul.f32 %v3424, %v3425
      %vm3427 = vcmp.eq.f32.partialorder %v3424, inf
      %v3428 = vsel %vm3427, %v3424, %v3426
      %vm3429 = vcmp.eq.f32.partialorder %v3424, 0.0
      %v3430 = vand.u32 %v3424, 2147483648
      %v3431 = vsel %vm3429, %v3430, %v3428
      %v3432 = vsub.f32 0.0, %v3431
      %v3433 = vsel %vm2619, %v3432, 0.0
      %3434 = vadd.xlane.f32.xlu0 %v3433
      %v3435 = vpop.xlane.xlu0 %3434
      %v3436 = vmul.f32 %v3435, %v2645
      %v3437 = vsel %vm2647, %v3436, 0.0
      %v3438 = vrot.slane %v3437, 4
      %v3439 = vadd.f32 %v3437, %v3438
      %v3440 = vrot.slane %v3439, 2
      %v3441 = vadd.f32 %v3439, %v3440
      %v3442 = vrot.slane %v3441, 1
      %v3443 = vadd.f32 %v3441, %v3442
      %v3444 = vmul.f32 %v3443, %v2645
      %v3445 = vsub.f32 %v3432, %v3444
      %v3446 = vmul.f32 %v3445, %v3445
      %v3447 = vsel %vm2619, %v3446, 0.0
      %3448 = vadd.xlane.f32.xlu0 %v3447
      %v3449 = vpop.xlane.xlu0 %3448
      %v3450 = vmul.f32 %v3449, %v2645
      %v3451 = vsel %vm2647, %v3450, 0.0
      %v3452 = vrot.slane %v3451, 4
      %v3453 = vadd.f32 %v3451, %v3452
      %v3454 = vrot.slane %v3453, 2
      %v3455 = vadd.f32 %v3453, %v3454
      %v3456 = vrot.slane %v3455, 1
      %v3457 = vadd.f32 %v3455, %v3456
      %v3458 = vmul.f32 %v3457, %v2645
      %v3459 = vadd.f32 %v3458, 1e-05
      %v3460 = vrsqrt.pop %v3459
      %v3461 = vmul.f32 %v3445, %v3460
      %v3462 = vmul.f32 %v3461, %v2542
      %v3463 = vadd.f32 %v3462, %v2543
      %s3464 = scalar_lea.vmem %s262, 48
      %3465 = vst.msk [vmem:[%s3464] sm:$0x3f] %vm2619, %v3463
      %3467 = vrot.lane.b32.xlu0 %v2112, 34
      %v3468 = vpop.permute.xlu0 %3467
      %3469 = vrot.lane.b32.xlu0 %v2531, 34
      %v3470 = vpop.permute.xlu0 %3469
      %vm3471 = vcmask 277504
      %v3472 = vsel %vm3471, %v3468, %v3470
      %v3473 = vsel %vm2544, %v3472, 0
      %3475 = vmatprep.subr.mxu0 0.0
      %3476 = vmatpush1.xpose.msra.mxu0 %v3473
      %3477 = vmatprep.subr.mxu0 0.0
      %3478 = vmatpush1.xpose.msra.mxu0 0.0
      %3479 = vmatprep.subr.mxu0 0.0
      %3480 = vmatpush1.xpose.msra.mxu0 0.0
      %3481 = vmatprep.subr.mxu0 0.0
      %3482 = vmatpush1.xpose.msra.mxu0 0.0
      %3483 = vmatprep.subr.mxu0 0.0
      %3484 = vmatpush1.xpose.msra.mxu0 0.0
      %3485 = vmatprep.subr.mxu0 0.0
      %3486 = vmatpush1.xpose.msra.mxu0 0.0
      %3487 = vmatprep.subr.mxu0 0.0
      %3488 = vmatpush1.xpose.msra.mxu0 0.0
      %3489 = vmatprep.subr.mxu0 0.0
      %3490 = vmatpush1.xpose.msra.mxu0 0.0
      %3491 = vmatprep.subr.mxu0 0.0
      %3492 = vmatpush1.xpose.msra.mxu0 0.0
      %3493 = vmatprep.subr.mxu0 0.0
      %3494 = vmatpush1.xpose.msra.mxu0 0.0
      %3495 = vmatprep.subr.mxu0 0.0
      %3496 = vmatpush1.xpose.msra.mxu0 0.0
      %3497 = vmatprep.subr.mxu0 0.0
      %3498 = vmatpush1.xpose.msra.mxu0 0.0
      %3499 = vmatprep.subr.mxu0 0.0
      %3500 = vmatpush1.xpose.msra.mxu0 0.0
      %3501 = vmatprep.subr.mxu0 0.0
      %3502 = vmatpush1.xpose.msra.mxu0 0.0
      %3503 = vmatprep.subr.mxu0 0.0
      %3504 = vmatpush1.xpose.msra.mxu0 0.0
      %3505 = vmatprep.subr.mxu0 0.0
      %3506 = vmatpush1.xpose.msra.mxu0 0.0
      %3507 = vmatprep.subr.mxu0 0.0
      %3508 = vmatpush1.xpose.msra.mxu0 0.0
      %3509 = vmatprep.subr.mxu0 0.0
      %3510 = vmatpush1.xpose.msra.mxu0 0.0
      %3511 = vmatprep.subr.mxu0 0.0
      %3512 = vmatpush1.xpose.msra.mxu0 0.0
      %3513 = vmatprep.subr.mxu0 0.0
      %3514 = vmatpush1.xpose.msra.mxu0 0.0
      %3515 = vmatprep.subr.mxu0 0.0
      %3516 = vmatpush1.xpose.msra.mxu0 0.0
      %3517 = vmatprep.subr.mxu0 0.0
      %3518 = vmatpush1.xpose.msra.mxu0 0.0
      %3519 = vmatprep.subr.mxu0 0.0
      %3520 = vmatpush1.xpose.msra.mxu0 0.0
      %3521 = vmatprep.subr.mxu0 0.0
      %3522 = vmatpush1.xpose.msra.mxu0 0.0
      %3523 = vmatprep.subr.mxu0 0.0
      %3524 = vmatpush1.xpose.msra.mxu0 0.0
      %3525 = vmatprep.subr.mxu0 0.0
      %3526 = vmatpush1.xpose.msra.mxu0 0.0
      %3527 = vmatprep.subr.mxu0 0.0
      %3528 = vmatpush1.xpose.msra.mxu0 0.0
      %3529 = vmatprep.subr.mxu0 0.0
      %3530 = vmatpush1.xpose.msra.mxu0 0.0
      %3531 = vmatprep.subr.mxu0 0.0
      %3532 = vmatpush1.xpose.msra.mxu0 0.0
      %3533 = vmatprep.subr.mxu0 0.0
      %3534 = vmatpush1.xpose.msra.mxu0 0.0
      %3535 = vmatprep.subr.mxu0 0.0
      %3536 = vmatpush1.xpose.msra.mxu0 0.0
      %3537 = vmatprep.subr.mxu0 0.0
      %3538 = vmatpush1.xpose.msra.mxu0 0.0
      %3539 = vmatprep.mubr.f32.mxu0 0.0
      %3540 = vmatmul.mubr.f32.gmra.mrb[0].mxu0 %v3473
      %v3541 = vpop.f32.mrb[0].mxu0
      %v3542 = vadd.f32 0.0, %v3541
      %v3543 = vpop.f32.mrb[0].mxu0
      %3544 = vdwg.mxu0
      %v3545 = vmul.f32 %v3542, %v2541
      %v3546 = vsel %vm2619, %v3545, 0.0
      %3547 = vadd.xlane.f32.xlu0 %v3546
      %v3548 = vpop.xlane.xlu0 %3547
      %v3549 = vrot.slane %v3546, 4
      %v3550 = vadd.f32 %v3546, %v3549
      %v3551 = vrot.slane %v3550, 2
      %v3552 = vadd.f32 %v3550, %v3551
      %v3553 = vrot.slane %v3552, 1
      %v3554 = vadd.f32 %v3552, %v3553
      %v3555 = vadd.f32 %v3548, %v3554
      %v3556 = vmul.f32 %v3542, 2.0
      %v3557 = vsub.f32 %v3555, %v3556
      %v3558 = vadd.f32 %v3557, 0.05
      %v3559 = vmax.f32 %v3558, 0.0
      %v3560 = vrsqrt.pop %v3559
      %v3561 = vmul.f32 %v3559, %v3560
      %vm3562 = vcmp.eq.f32.partialorder %v3559, inf
      %v3563 = vsel %vm3562, %v3559, %v3561
      %vm3564 = vcmp.eq.f32.partialorder %v3559, 0.0
      %v3565 = vand.u32 %v3559, 2147483648
      %v3566 = vsel %vm3564, %v3565, %v3563
      %v3567 = vsub.f32 0.0, %v3566
      %v3568 = vsel %vm2619, %v3567, 0.0
      %3569 = vadd.xlane.f32.xlu0 %v3568
      %v3570 = vpop.xlane.xlu0 %3569
      %v3571 = vmul.f32 %v3570, %v2645
      %v3572 = vsel %vm2647, %v3571, 0.0
      %v3573 = vrot.slane %v3572, 4
      %v3574 = vadd.f32 %v3572, %v3573
      %v3575 = vrot.slane %v3574, 2
      %v3576 = vadd.f32 %v3574, %v3575
      %v3577 = vrot.slane %v3576, 1
      %v3578 = vadd.f32 %v3576, %v3577
      %v3579 = vmul.f32 %v3578, %v2645
      %v3580 = vsub.f32 %v3567, %v3579
      %v3581 = vmul.f32 %v3580, %v3580
      %v3582 = vsel %vm2619, %v3581, 0.0
      %3583 = vadd.xlane.f32.xlu0 %v3582
      %v3584 = vpop.xlane.xlu0 %3583
      %v3585 = vmul.f32 %v3584, %v2645
      %v3586 = vsel %vm2647, %v3585, 0.0
      %v3587 = vrot.slane %v3586, 4
      %v3588 = vadd.f32 %v3586, %v3587
      %v3589 = vrot.slane %v3588, 2
      %v3590 = vadd.f32 %v3588, %v3589
      %v3591 = vrot.slane %v3590, 1
      %v3592 = vadd.f32 %v3590, %v3591
      %v3593 = vmul.f32 %v3592, %v2645
      %v3594 = vadd.f32 %v3593, 1e-05
      %v3595 = vrsqrt.pop %v3594
      %v3596 = vmul.f32 %v3580, %v3595
      %v3597 = vmul.f32 %v3596, %v2542
      %v3598 = vadd.f32 %v3597, %v2543
      %s3599 = scalar_lea.vmem %s262, 56
      %3600 = vst.msk [vmem:[%s3599] sm:$0x3f] %vm2619, %v3598
      %p3601 = scmp.lt.s32.totalorder %s18, 1
      %s3602 = scalar_select %p3601, %s18, 1
      %s3603 = smul.addr %s3602, 8
      %s3604 = scalar_lea.vmem %s5, %s3603
      %p3605 = scmp.lt.s32.totalorder %s18, 1
      %s3606 = scalar_select %p3605, %s18, 1
      %s3607 = smul.addr %s3606, 8
      %s3608 = smul.addr %s3607, 8
      %s3609 = scalar_lea.vmem %s6, %s3608
      // Predicated region
      $region41: #{tpu_custom_call.1} parent=39 // pred_check
        %p3610 = pneg %p146
      $region42: #{tpu_custom_call.1} parent=39 // pred_check_branch
        %3612 = sbr.rel (%p3610) target = $region44
      $region43: #{tpu_custom_call.1} parent=39 // pred_region
        _
      $region44: #{tpu_custom_call.1} parent=39 // pred_fallthru
        _
      // Predicated region
      $region45: #{tpu_custom_call.1} parent=39 // pred_check
        %p3613 = pneg %p172
      $region46: #{tpu_custom_call.1} parent=39 // pred_check_branch
        %3615 = sbr.rel (%p3613) target = $region48
      $region47: #{tpu_custom_call.1} parent=39 // pred_region
        _
      $region48: #{tpu_custom_call.1} parent=39 // pred_fallthru
        _
    $region40: #{tpu_custom_call.1} parent=5 // pred_fallthru
      _
    %p3616 = scmp.le.s32.totalorder 2, %s13
    // Predicated region
    $region49: #{tpu_custom_call.1} parent=5 // pred_check
      %p3617 = pneg %p3616
    $region50: #{tpu_custom_call.1} parent=5 // pred_check_branch
      %3619 = sbr.rel (%p3617) target = $region52
    $region51: #{tpu_custom_call.1} parent=5 // pred_region
      %s3620 = ssub.s32 %s13, 2
      // Predicated region
      $region53: #{tpu_custom_call.1} parent=51 // pred_check
        %p3621 = pneg %p152
      $region54: #{tpu_custom_call.1} parent=51 // pred_check_branch
        %3623 = sbr.rel (%p3621) target = $region56
      $region55: #{tpu_custom_call.1} parent=51 // pred_region
        %p3624 = scmp.lt.s32.totalorder %s19, 1
        %s3625 = scalar_select %p3624, %s19, 1
        %s3626 = smul.addr %s3625, 8
        %s3627 = scalar_lea.vmem %s5, %s3626
      $region56: #{tpu_custom_call.1} parent=51 // pred_fallthru
        _
      // Predicated region
      $region57: #{tpu_custom_call.1} parent=51 // pred_check
        %p3628 = pneg %p178
      $region58: #{tpu_custom_call.1} parent=51 // pred_check_branch
        %3630 = sbr.rel (%p3628) target = $region60
      $region59: #{tpu_custom_call.1} parent=51 // pred_region
        %p3631 = scmp.lt.s32.totalorder %s19, 1
        %s3632 = scalar_select %p3631, %s19, 1
        %s3633 = smul.addr %s3632, 8
        %s3634 = smul.addr %s3633, 8
        %s3635 = scalar_lea.vmem %s6, %s3634
      $region60: #{tpu_custom_call.1} parent=51 // pred_fallthru
        _
    $region52: #{tpu_custom_call.1} parent=5 // pred_fallthru
      _
  $region6: #{tpu_custom_call.1} parent=0 // loop_footer
    %s17 = sadd.s32 1, %s13
  $region7: #{tpu_custom_call.1} parent=0 // loop_footer_branch
    %12 = sbr.rel target = $region3
  $region8: #{tpu_custom_call.1} parent=0 // loop_exit
    _

</llo_original>
